<compile_context>
chip_gen: v7x
topology: tpu7x:2x2x1
jax: 0.10.0
libtpu: 0.0.40
codegen_flags: <defaults>
</compile_context>

<pallas_src>
import functools

import jax
import jax.numpy as jnp
from jax import lax
from jax.experimental import pallas as pl
from jax.experimental.pallas import tpu as pltpu

_EPS = 1e-5  # nn.LayerNorm default eps

_PARAM_ORDER = ("ln1_g", "ln1_b", "w_qkv", "w_out", "b_out",
                "ln2_g", "ln2_b", "w_ff1", "b_ff1", "w_ff2", "b_ff2")


def _gelu(x):
    # TODO(synk): nn.GELU() is the exact erf formulation; the tanh approximation is used here (and
    # in the reference) since erf has no guaranteed Mosaic lowering.  Max abs deviation ~1e-3.
    return jax.nn.gelu(x, approximate=True)


def _layer_norm(v, g_ref, b_ref):
    mu = jnp.mean(v, axis=-1, keepdims=True)
    var = jnp.mean(jnp.square(v - mu), axis=-1, keepdims=True)
    return (v - mu) * lax.rsqrt(var + _EPS) * g_ref[0] + b_ref[0]


# ---------------------------------------------------------------------------
# Fused transformer-layer kernel.  grid = (batch_block, depth); one step = one
# layer for Bb sequences.  The f32 residual stream lives in the output block
# (constant block index across depth -> VMEM-resident, single HBM writeback).
# ---------------------------------------------------------------------------
def _transformer_layer_kernel(x_ref, ln1_g, ln1_b, w_qkv, w_out, b_out,
                              ln2_g, ln2_b, w_ff1, b_ff1, w_ff2, b_ff2,
                              o_ref, *, heads, dim_head, scale):
    Bb, N, D = x_ref.shape
    M = Bb * N
    inner = heads * dim_head

    # First layer for this batch block: load the input into the resident residual stream.
    @pl.when(pl.program_id(1) == 0)
    def _():
        o_ref[...] = x_ref[...]

    x = o_ref[...].reshape(M, D)                                       # (M, D) f32 residual

    # ---- PreNorm + multi-head self-attention (f32 norm/softmax, bf16 MXU) ----
    xn = _layer_norm(x, ln1_g, ln1_b).astype(jnp.bfloat16)             # (M, D)
    qkv = jnp.dot(xn, w_qkv[0],
                  preferred_element_type=jnp.float32).astype(jnp.bfloat16)  # one cast, (M, 3*inner)
    qkv = qkv.reshape(Bb, N, 3 * inner)

    head_outs = []
    for h in range(heads):                                             # static, fully unrolled
        lo = h * dim_head
        q = qkv[:, :, lo:lo + dim_head]                                # (Bb, N, dh) bf16
        k = qkv[:, :, inner + lo:inner + lo + dim_head]
        v = qkv[:, :, 2 * inner + lo:2 * inner + lo + dim_head]
        # scores = q @ k^T per sequence (batched over Bb), f32 accumulation.
        s = jnp.einsum("bnd,bmd->bnm", q, k,
                       preferred_element_type=jnp.float32) * scale     # (Bb, N, N) f32
        s = s - jnp.max(s, axis=-1, keepdims=True)
        p = jnp.exp(s)
        p = p * pl.reciprocal(jnp.sum(p, axis=-1, keepdims=True), approx=True)
        head_outs.append(jnp.einsum("bnm,bmd->bnd", p.astype(jnp.bfloat16), v,
                                    preferred_element_type=jnp.float32))   # (Bb, N, dh)
    # Concatenate heads (lane-aligned) and run ONE K=inner output projection.
    ao = jnp.concatenate(head_outs, axis=-1).reshape(M, inner).astype(jnp.bfloat16)
    x = x + jnp.dot(ao, w_out[0], preferred_element_type=jnp.float32) + b_out[0]

    # ---- PreNorm + GELU MLP --------------------------------------------------
    yn = _layer_norm(x, ln2_g, ln2_b).astype(jnp.bfloat16)
    h1 = jnp.dot(yn, w_ff1[0], preferred_element_type=jnp.float32) + b_ff1[0]
    h1 = _gelu(h1)
    h2 = jnp.dot(h1.astype(jnp.bfloat16), w_ff2[0], preferred_element_type=jnp.float32) + b_ff2[0]
    x = x + h2

    o_ref[...] = x.reshape(Bb, N, D)                                   # stays resident across depth


# ---------------------------------------------------------------------------
# Wrapper
# ---------------------------------------------------------------------------
def transformer_forward(params, x, *, heads, dim_head, batch_block=None):
    """x: (B, N, D) float32 -> (B, N, D) float32."""
    B, N, D = x.shape
    depth = params["w_qkv"].shape[0]

    if batch_block is None:
        # Prefer Bb with Bb*N >= 128 (fills MXU rows) while keeping >= 2 batch grid steps
        # (v7x megacore sharding); fall back gracefully for small B.
        divisors = [d for d in range(1, B + 1) if B % d == 0]
        cands = ([d for d in divisors if d * N >= 128 and B // d >= 2]
                 or [d for d in divisors if B // d >= 2]
                 or divisors)
        batch_block = max(cands)
    assert B % batch_block == 0, (B, batch_block)

    def wspec(arr):
        # (depth, a, b) stacked weights: stream one layer's slab per depth step (prefetched).
        return pl.BlockSpec((1,) + arr.shape[1:], lambda bb, l: (l, 0, 0))

    seq_spec = pl.BlockSpec((batch_block, N, D), lambda bb, l: (bb, 0, 0))
    kernel = functools.partial(_transformer_layer_kernel, heads=heads,
                               dim_head=dim_head, scale=float(dim_head) ** -0.5)
    return pl.pallas_call(
        kernel,
        out_shape=jax.ShapeDtypeStruct((B, N, D), jnp.float32),
        grid=(B // batch_block, depth),                    # depth (sequential carry) innermost
        in_specs=[seq_spec] + [wspec(params[name]) for name in _PARAM_ORDER],
        out_specs=seq_spec,                                # f32 residual stream lives here
        compiler_params=pltpu.CompilerParams(
            dimension_semantics=("parallel", "arbitrary"),
            # Explicit VMEM budget (double-buffered per-layer weights + seq blocks are well under
            # this at demo sizes); keeps weight prefetch pipelined and is v7x-safe (64 MiB phys).
            vmem_limit_bytes=32 * 1024 * 1024),
    )(x.astype(jnp.float32), *(params[name] for name in _PARAM_ORDER))


# ---------------------------------------------------------------------------
# Parameters (deterministic init; weights bf16, norm/bias params f32)
# ---------------------------------------------------------------------------
def init_transformer_params(key, *, dim, depth, heads, dim_head, mlp_dim):
    inner = heads * dim_head
    keys = jax.random.split(key, depth * 7)

    def dense(k, fan_in, fan_out):
        w = jax.random.normal(k, (fan_in, fan_out), jnp.float32) * (fan_in ** -0.5)
        return w.astype(jnp.bfloat16)          # HBM-resident / MXU-input dtype

    def bias(k, n):
        return 0.02 * jax.random.normal(k, (1, n), jnp.float32)

    w_qkv, w_out, w_ff1, w_ff2, b_out, b_ff1, b_ff2 = [], [], [], [], [], [], []
    for l in range(depth):
        k = keys[l * 7:(l + 1) * 7]
        w_qkv.append(dense(k[0], dim, 3 * inner))
        w_out.append(dense(k[1], inner, dim))
        w_ff1.append(dense(k[2], dim, mlp_dim))
        w_ff2.append(dense(k[3], mlp_dim, dim))
        b_out.append(bias(k[4], dim))
        b_ff1.append(bias(k[5], mlp_dim))
        b_ff2.append(bias(k[6], dim))

    return {
        "ln1_g": jnp.ones((depth, 1, dim), jnp.float32),
        "ln1_b": jnp.zeros((depth, 1, dim), jnp.float32),
        "ln2_g": jnp.ones((depth, 1, dim), jnp.float32),
        "ln2_b": jnp.zeros((depth, 1, dim), jnp.float32),
        "w_qkv": jnp.stack(w_qkv), "w_out": jnp.stack(w_out), "b_out": jnp.stack(b_out),
        "w_ff1": jnp.stack(w_ff1), "b_ff1": jnp.stack(b_ff1),
        "w_ff2": jnp.stack(w_ff2), "b_ff2": jnp.stack(b_ff2),
    }


# ---------------------------------------------------------------------------
# Pure-JAX f32 reference (mirrors the PyTorch Transformer forward, dropout=0)
# ---------------------------------------------------------------------------
def transformer_reference(params, x, *, heads, dim_head):
    depth = params["w_qkv"].shape[0]
    inner = heads * dim_head
    scale = float(dim_head) ** -0.5
    hi = lax.Precision.HIGHEST
    f32 = lambda a: a.astype(jnp.float32)
    out = x.astype(jnp.float32)
    B, N, D = out.shape

    def ln(v, g, b):
        mu = v.mean(-1, keepdims=True)
        var = jnp.square(v - mu).mean(-1, keepdims=True)
        return (v - mu) / jnp.sqrt(var + _EPS) * g + b

    for l in range(depth):
        # PreNorm + attention + residual
        xn = ln(out, f32(params["ln1_g"][l]), f32(params["ln1_b"][l]))
        qkv = jnp.einsum("bnd,df->bnf", xn, f32(params["w_qkv"][l]), precision=hi)
        q, k, v = jnp.split(qkv, 3, axis=-1)
        q, k, v = (t.reshape(B, N, heads, dim_head).transpose(0, 2, 1, 3) for t in (q, k, v))
        s = jnp.einsum("bhnd,bhmd->bhnm", q, k, precision=hi) * scale
        p = jax.nn.softmax(s, axis=-1)
        o = jnp.einsum("bhnm,bhmd->bhnd", p, v, precision=hi)
        o = o.transpose(0, 2, 1, 3).reshape(B, N, inner)
        o = jnp.einsum("bnf,fd->bnd", o, f32(params["w_out"][l]), precision=hi) + f32(params["b_out"][l])
        out = out + o
        # PreNorm + MLP + residual
        yn = ln(out, f32(params["ln2_g"][l]), f32(params["ln2_b"][l]))
        h = jnp.einsum("bnd,dm->bnm", yn, f32(params["w_ff1"][l]), precision=hi) + f32(params["b_ff1"][l])
        h = _gelu(h)
        h = jnp.einsum("bnm,md->bnd", h, f32(params["w_ff2"][l]), precision=hi) + f32(params["b_ff2"][l])
        out = out + h
    return out


if __name__ == "__main__":
    key = jax.random.PRNGKey(0)
    pkey, xkey = jax.random.split(key)

    # Transformer(dim=128, depth=2, heads=4, dim_head=128, mlp_dim=256, dropout=0.0)
    dim, depth, heads, dim_head, mlp_dim = 128, 2, 4, 128, 256
    B, N = 8, 16   # batch-blocked: grid batch axis gets B/Bb=2 steps with Bb=4 (M = 64 rows/step)

    params = init_transformer_params(pkey, dim=dim, depth=depth, heads=heads,
                                     dim_head=dim_head, mlp_dim=mlp_dim)
    x = jax.random.normal(xkey, (B, N, dim), jnp.float32)

    fwd = jax.jit(functools.partial(transformer_forward, heads=heads, dim_head=dim_head))
    out = jax.block_until_ready(fwd(params, x))
    ref = jax.block_until_ready(transformer_reference(params, x, heads=heads, dim_head=dim_head))

    rel_err = float(jnp.max(jnp.abs(out - ref)) / (jnp.max(jnp.abs(ref)) + 1e-6))
    assert out.shape == (B, N, dim), out.shape
    assert rel_err < 5e-2, f"mismatch vs reference: rel_err={rel_err}"
    print("KERNEL_OK")
</pallas_src>

<mosaic_0001>
module attributes {stable_mosaic.version = 11 : i64} {
  func.func @_transformer_layer_kernel(%arg0: i32, %arg1: i32, %arg2: memref<4x16x128xf32, #tpu.memory_space<vmem>>, %arg3: memref<1x1x128xf32, #tpu.memory_space<vmem>>, %arg4: memref<1x1x128xf32, #tpu.memory_space<vmem>>, %arg5: memref<1x128x1536xbf16, #tpu.memory_space<vmem>>, %arg6: memref<1x512x128xbf16, #tpu.memory_space<vmem>>, %arg7: memref<1x1x128xf32, #tpu.memory_space<vmem>>, %arg8: memref<1x1x128xf32, #tpu.memory_space<vmem>>, %arg9: memref<1x1x128xf32, #tpu.memory_space<vmem>>, %arg10: memref<1x128x256xbf16, #tpu.memory_space<vmem>>, %arg11: memref<1x1x256xf32, #tpu.memory_space<vmem>>, %arg12: memref<1x256x128xbf16, #tpu.memory_space<vmem>>, %arg13: memref<1x1x128xf32, #tpu.memory_space<vmem>>, %arg14: memref<4x16x128xf32, #tpu.memory_space<vmem>>) attributes {dimension_semantics = [#tpu.dimension_semantics<parallel>, #tpu.dimension_semantics<arbitrary>], iteration_bounds = array<i64: 2, 2>, scalar_prefetch = 0 : i64, scratch_operands = 0 : i64, tpu.core_type = #tpu.core_type<tc>, window_params = [{transform_indices = @transform_0, window_bounds = array<i64: 4, 16, 128>}, {transform_indices = @transform_1, window_bounds = array<i64: 1, 1, 128>}, {transform_indices = @transform_2, window_bounds = array<i64: 1, 1, 128>}, {transform_indices = @transform_3, window_bounds = array<i64: 1, 128, 1536>}, {transform_indices = @transform_4, window_bounds = array<i64: 1, 512, 128>}, {transform_indices = @transform_5, window_bounds = array<i64: 1, 1, 128>}, {transform_indices = @transform_6, window_bounds = array<i64: 1, 1, 128>}, {transform_indices = @transform_7, window_bounds = array<i64: 1, 1, 128>}, {transform_indices = @transform_8, window_bounds = array<i64: 1, 128, 256>}, {transform_indices = @transform_9, window_bounds = array<i64: 1, 1, 256>}, {transform_indices = @transform_10, window_bounds = array<i64: 1, 256, 128>}, {transform_indices = @transform_11, window_bounds = array<i64: 1, 1, 128>}, {transform_indices = @transform_12, window_bounds = array<i64: 4, 16, 128>}]} {
    %c0_i32 = arith.constant 0 : i32
    %0 = arith.cmpi eq, %arg1, %c0_i32 : i32
    %1 = arith.extui %0 : i1 to i32
    %c0_i32_0 = arith.constant 0 : i32
    %2 = arith.cmpi ne, %1, %c0_i32_0 : i32
    scf.if %2 {
      %c0_76 = arith.constant 0 : index
      %c0_77 = arith.constant 0 : index
      %c0_78 = arith.constant 0 : index
      %178 = vector.load %arg2[%c0_76, %c0_77, %c0_78] : memref<4x16x128xf32, #tpu.memory_space<vmem>>, vector<4x16x128xf32>
      %c0_79 = arith.constant 0 : index
      %c0_80 = arith.constant 0 : index
      %c0_81 = arith.constant 0 : index
      %179 = vector.load %arg14[%c0_79, %c0_80, %c0_81] : memref<4x16x128xf32, #tpu.memory_space<vmem>>, vector<4x16x128xf32>
      tpu.vector_store %arg14[%c0_79, %c0_80, %c0_81], %178 {strides = array<i32>} : memref<4x16x128xf32, #tpu.memory_space<vmem>>, vector<4x16x128xf32>,
    } else {
    }
    %c0 = arith.constant 0 : index
    %c0_1 = arith.constant 0 : index
    %c0_2 = arith.constant 0 : index
    %3 = vector.load %arg14[%c0, %c0_1, %c0_2] : memref<4x16x128xf32, #tpu.memory_space<vmem>>, vector<4x16x128xf32>
    %4 = vector.shape_cast %3 : vector<4x16x128xf32> to vector<64x128xf32>
    %cst = arith.constant dense<0.000000e+00> : vector<64xf32>
    %5 = vector.multi_reduction <add>, %4, %cst [1] : vector<64x128xf32> to vector<64xf32>
    %6 = vector.shape_cast %5 : vector<64xf32> to vector<64x1xf32>
    %cst_3 = arith.constant 1.280000e+02 : f32
    %7 = vector.broadcast %cst_3 : f32 to vector<64x1xf32>
    %8 = arith.divf %6, %7 : vector<64x1xf32>
    %9 = vector.broadcast %8 : vector<64x1xf32> to vector<64x128xf32>
    %10 = arith.subf %4, %9 : vector<64x128xf32>
    %11 = arith.mulf %10, %10 : vector<64x128xf32>
    %cst_4 = arith.constant dense<0.000000e+00> : vector<64xf32>
    %12 = vector.multi_reduction <add>, %11, %cst_4 [1] : vector<64x128xf32> to vector<64xf32>
    %13 = vector.shape_cast %12 : vector<64xf32> to vector<64x1xf32>
    %cst_5 = arith.constant 1.280000e+02 : f32
    %14 = vector.broadcast %cst_5 : f32 to vector<64x1xf32>
    %15 = arith.divf %13, %14 : vector<64x1xf32>
    %16 = vector.broadcast %8 : vector<64x1xf32> to vector<64x128xf32>
    %17 = arith.subf %4, %16 : vector<64x128xf32>
    %cst_6 = arith.constant 9.99999974E-6 : f32
    %18 = vector.broadcast %cst_6 : f32 to vector<64x1xf32>
    %19 = arith.addf %15, %18 : vector<64x1xf32>
    %20 = math.rsqrt %19 : vector<64x1xf32>
    %21 = vector.broadcast %20 : vector<64x1xf32> to vector<64x128xf32>
    %22 = arith.mulf %17, %21 : vector<64x128xf32>
    %c0_7 = arith.constant 0 : index
    %c0_8 = arith.constant 0 : index
    %c0_9 = arith.constant 0 : index
    %23 = vector.load %arg3[%c0_7, %c0_8, %c0_9] : memref<1x1x128xf32, #tpu.memory_space<vmem>>, vector<1x1x128xf32>
    %24 = vector.shape_cast %23 : vector<1x1x128xf32> to vector<1x128xf32>
    %25 = vector.broadcast %24 : vector<1x128xf32> to vector<64x128xf32>
    %26 = arith.mulf %22, %25 : vector<64x128xf32>
    %c0_10 = arith.constant 0 : index
    %c0_11 = arith.constant 0 : index
    %c0_12 = arith.constant 0 : index
    %27 = vector.load %arg4[%c0_10, %c0_11, %c0_12] : memref<1x1x128xf32, #tpu.memory_space<vmem>>, vector<1x1x128xf32>
    %28 = vector.shape_cast %27 : vector<1x1x128xf32> to vector<1x128xf32>
    %29 = vector.broadcast %28 : vector<1x128xf32> to vector<64x128xf32>
    %30 = arith.addf %26, %29 : vector<64x128xf32>
    %31 = arith.truncf %30 : vector<64x128xf32> to vector<64x128xbf16>
    %c0_13 = arith.constant 0 : index
    %c0_14 = arith.constant 0 : index
    %c0_15 = arith.constant 0 : index
    %32 = vector.load %arg5[%c0_13, %c0_14, %c0_15] : memref<1x128x1536xbf16, #tpu.memory_space<vmem>>, vector<1x128x1536xbf16>
    %33 = vector.shape_cast %32 : vector<1x128x1536xbf16> to vector<128x1536xbf16>
    %cst_16 = arith.constant dense<0.000000e+00> : vector<64x1536xf32>
    %34 = tpu.matmul %31, %33, %cst_16 {dimension_numbers = #tpu.dot_dimension_numbers<[1], [0], [0], [1], [0, 0, 1, 1], [], []>} : vector<64x128xbf16>, vector<128x1536xbf16>, vector<64x1536xf32> -> vector<64x1536xf32>
    %35 = arith.truncf %34 : vector<64x1536xf32> to vector<64x1536xbf16>
    %36 = vector.shape_cast %35 : vector<64x1536xbf16> to vector<4x16x1536xbf16>
    %37 = vector.extract_strided_slice %36 {offsets = [0, 0, 0], sizes = [4, 16, 128], strides = [1, 1, 1]} : vector<4x16x1536xbf16> to vector<4x16x128xbf16>
    %38 = vector.extract_strided_slice %36 {offsets = [0, 0, 512], sizes = [4, 16, 128], strides = [1, 1, 1]} : vector<4x16x1536xbf16> to vector<4x16x128xbf16>
    %39 = vector.extract_strided_slice %36 {offsets = [0, 0, 1024], sizes = [4, 16, 128], strides = [1, 1, 1]} : vector<4x16x1536xbf16> to vector<4x16x128xbf16>
    "tpu.trace_start"() <{level = 10 : i32, message = "bnd,bmd->bnm"}> : () -> ()
    %cst_17 = arith.constant dense<0.000000e+00> : vector<4x16x16xf32>
    %40 = tpu.matmul %37, %38, %cst_17 {dimension_numbers = #tpu.dot_dimension_numbers<[2], [2], [1], [1], [0, 0, 0, 1, 1, 1], [0], [0]>} : vector<4x16x128xbf16>, vector<4x16x128xbf16>, vector<4x16x16xf32> -> vector<4x16x16xf32>
    "tpu.trace_stop"() : () -> ()
    %cst_18 = arith.constant 0.0883883461 : f32
    %41 = vector.broadcast %cst_18 : f32 to vector<4x16x16xf32>
    %42 = arith.mulf %40, %41 : vector<4x16x16xf32>
    %cst_19 = arith.constant dense<0xFF800000> : vector<4x16xf32>
    %43 = vector.multi_reduction <maximumf>, %42, %cst_19 [2] : vector<4x16x16xf32> to vector<4x16xf32>
    %44 = vector.shape_cast %43 : vector<4x16xf32> to vector<4x16x1xf32>
    %45 = vector.broadcast %44 : vector<4x16x1xf32> to vector<4x16x16xf32>
    %46 = arith.subf %42, %45 : vector<4x16x16xf32>
    %47 = math.exp %46 : vector<4x16x16xf32>
    %cst_20 = arith.constant dense<0.000000e+00> : vector<4x16xf32>
    %48 = vector.multi_reduction <add>, %47, %cst_20 [2] : vector<4x16x16xf32> to vector<4x16xf32>
    %49 = vector.shape_cast %48 : vector<4x16xf32> to vector<4x16x1xf32>
    %50 = tpu.reciprocal %49 {approx = true} : vector<4x16x1xf32> -> vector<4x16x1xf32>
    %51 = vector.broadcast %50 : vector<4x16x1xf32> to vector<4x16x16xf32>
    %52 = arith.mulf %47, %51 : vector<4x16x16xf32>
    %53 = arith.truncf %52 : vector<4x16x16xf32> to vector<4x16x16xbf16>
    "tpu.trace_start"() <{level = 10 : i32, message = "bnm,bmd->bnd"}> : () -> ()
    %cst_21 = arith.constant dense<0.000000e+00> : vector<4x16x128xf32>
    %54 = tpu.matmul %53, %39, %cst_21 {dimension_numbers = #tpu.dot_dimension_numbers<[2], [1], [1], [2], [0, 0, 0, 1, 1, 2], [0], [0]>} : vector<4x16x16xbf16>, vector<4x16x128xbf16>, vector<4x16x128xf32> -> vector<4x16x128xf32>
    "tpu.trace_stop"() : () -> ()
    %55 = vector.extract_strided_slice %36 {offsets = [0, 0, 128], sizes = [4, 16, 128], strides = [1, 1, 1]} : vector<4x16x1536xbf16> to vector<4x16x128xbf16>
    %56 = vector.extract_strided_slice %36 {offsets = [0, 0, 640], sizes = [4, 16, 128], strides = [1, 1, 1]} : vector<4x16x1536xbf16> to vector<4x16x128xbf16>
    %57 = vector.extract_strided_slice %36 {offsets = [0, 0, 1152], sizes = [4, 16, 128], strides = [1, 1, 1]} : vector<4x16x1536xbf16> to vector<4x16x128xbf16>
    "tpu.trace_start"() <{level = 10 : i32, message = "bnd,bmd->bnm"}> : () -> ()
    %cst_22 = arith.constant dense<0.000000e+00> : vector<4x16x16xf32>
    %58 = tpu.matmul %55, %56, %cst_22 {dimension_numbers = #tpu.dot_dimension_numbers<[2], [2], [1], [1], [0, 0, 0, 1, 1, 1], [0], [0]>} : vector<4x16x128xbf16>, vector<4x16x128xbf16>, vector<4x16x16xf32> -> vector<4x16x16xf32>
    "tpu.trace_stop"() : () -> ()
    %cst_23 = arith.constant 0.0883883461 : f32
    %59 = vector.broadcast %cst_23 : f32 to vector<4x16x16xf32>
    %60 = arith.mulf %58, %59 : vector<4x16x16xf32>
    %cst_24 = arith.constant dense<0xFF800000> : vector<4x16xf32>
    %61 = vector.multi_reduction <maximumf>, %60, %cst_24 [2] : vector<4x16x16xf32> to vector<4x16xf32>
    %62 = vector.shape_cast %61 : vector<4x16xf32> to vector<4x16x1xf32>
    %63 = vector.broadcast %62 : vector<4x16x1xf32> to vector<4x16x16xf32>
    %64 = arith.subf %60, %63 : vector<4x16x16xf32>
    %65 = math.exp %64 : vector<4x16x16xf32>
    %cst_25 = arith.constant dense<0.000000e+00> : vector<4x16xf32>
    %66 = vector.multi_reduction <add>, %65, %cst_25 [2] : vector<4x16x16xf32> to vector<4x16xf32>
    %67 = vector.shape_cast %66 : vector<4x16xf32> to vector<4x16x1xf32>
    %68 = tpu.reciprocal %67 {approx = true} : vector<4x16x1xf32> -> vector<4x16x1xf32>
    %69 = vector.broadcast %68 : vector<4x16x1xf32> to vector<4x16x16xf32>
    %70 = arith.mulf %65, %69 : vector<4x16x16xf32>
    %71 = arith.truncf %70 : vector<4x16x16xf32> to vector<4x16x16xbf16>
    "tpu.trace_start"() <{level = 10 : i32, message = "bnm,bmd->bnd"}> : () -> ()
    %cst_26 = arith.constant dense<0.000000e+00> : vector<4x16x128xf32>
    %72 = tpu.matmul %71, %57, %cst_26 {dimension_numbers = #tpu.dot_dimension_numbers<[2], [1], [1], [2], [0, 0, 0, 1, 1, 2], [0], [0]>} : vector<4x16x16xbf16>, vector<4x16x128xbf16>, vector<4x16x128xf32> -> vector<4x16x128xf32>
    "tpu.trace_stop"() : () -> ()
    %73 = vector.extract_strided_slice %36 {offsets = [0, 0, 256], sizes = [4, 16, 128], strides = [1, 1, 1]} : vector<4x16x1536xbf16> to vector<4x16x128xbf16>
    %74 = vector.extract_strided_slice %36 {offsets = [0, 0, 768], sizes = [4, 16, 128], strides = [1, 1, 1]} : vector<4x16x1536xbf16> to vector<4x16x128xbf16>
    %75 = vector.extract_strided_slice %36 {offsets = [0, 0, 1280], sizes = [4, 16, 128], strides = [1, 1, 1]} : vector<4x16x1536xbf16> to vector<4x16x128xbf16>
    "tpu.trace_start"() <{level = 10 : i32, message = "bnd,bmd->bnm"}> : () -> ()
    %cst_27 = arith.constant dense<0.000000e+00> : vector<4x16x16xf32>
    %76 = tpu.matmul %73, %74, %cst_27 {dimension_numbers = #tpu.dot_dimension_numbers<[2], [2], [1], [1], [0, 0, 0, 1, 1, 1], [0], [0]>} : vector<4x16x128xbf16>, vector<4x16x128xbf16>, vector<4x16x16xf32> -> vector<4x16x16xf32>
    "tpu.trace_stop"() : () -> ()
    %cst_28 = arith.constant 0.0883883461 : f32
    %77 = vector.broadcast %cst_28 : f32 to vector<4x16x16xf32>
    %78 = arith.mulf %76, %77 : vector<4x16x16xf32>
    %cst_29 = arith.constant dense<0xFF800000> : vector<4x16xf32>
    %79 = vector.multi_reduction <maximumf>, %78, %cst_29 [2] : vector<4x16x16xf32> to vector<4x16xf32>
    %80 = vector.shape_cast %79 : vector<4x16xf32> to vector<4x16x1xf32>
    %81 = vector.broadcast %80 : vector<4x16x1xf32> to vector<4x16x16xf32>
    %82 = arith.subf %78, %81 : vector<4x16x16xf32>
    %83 = math.exp %82 : vector<4x16x16xf32>
    %cst_30 = arith.constant dense<0.000000e+00> : vector<4x16xf32>
    %84 = vector.multi_reduction <add>, %83, %cst_30 [2] : vector<4x16x16xf32> to vector<4x16xf32>
    %85 = vector.shape_cast %84 : vector<4x16xf32> to vector<4x16x1xf32>
    %86 = tpu.reciprocal %85 {approx = true} : vector<4x16x1xf32> -> vector<4x16x1xf32>
    %87 = vector.broadcast %86 : vector<4x16x1xf32> to vector<4x16x16xf32>
    %88 = arith.mulf %83, %87 : vector<4x16x16xf32>
    %89 = arith.truncf %88 : vector<4x16x16xf32> to vector<4x16x16xbf16>
    "tpu.trace_start"() <{level = 10 : i32, message = "bnm,bmd->bnd"}> : () -> ()
    %cst_31 = arith.constant dense<0.000000e+00> : vector<4x16x128xf32>
    %90 = tpu.matmul %89, %75, %cst_31 {dimension_numbers = #tpu.dot_dimension_numbers<[2], [1], [1], [2], [0, 0, 0, 1, 1, 2], [0], [0]>} : vector<4x16x16xbf16>, vector<4x16x128xbf16>, vector<4x16x128xf32> -> vector<4x16x128xf32>
    "tpu.trace_stop"() : () -> ()
    %91 = vector.extract_strided_slice %36 {offsets = [0, 0, 384], sizes = [4, 16, 128], strides = [1, 1, 1]} : vector<4x16x1536xbf16> to vector<4x16x128xbf16>
    %92 = vector.extract_strided_slice %36 {offsets = [0, 0, 896], sizes = [4, 16, 128], strides = [1, 1, 1]} : vector<4x16x1536xbf16> to vector<4x16x128xbf16>
    %93 = vector.extract_strided_slice %36 {offsets = [0, 0, 1408], sizes = [4, 16, 128], strides = [1, 1, 1]} : vector<4x16x1536xbf16> to vector<4x16x128xbf16>
    "tpu.trace_start"() <{level = 10 : i32, message = "bnd,bmd->bnm"}> : () -> ()
    %cst_32 = arith.constant dense<0.000000e+00> : vector<4x16x16xf32>
    %94 = tpu.matmul %91, %92, %cst_32 {dimension_numbers = #tpu.dot_dimension_numbers<[2], [2], [1], [1], [0, 0, 0, 1, 1, 1], [0], [0]>} : vector<4x16x128xbf16>, vector<4x16x128xbf16>, vector<4x16x16xf32> -> vector<4x16x16xf32>
    "tpu.trace_stop"() : () -> ()
    %cst_33 = arith.constant 0.0883883461 : f32
    %95 = vector.broadcast %cst_33 : f32 to vector<4x16x16xf32>
    %96 = arith.mulf %94, %95 : vector<4x16x16xf32>
    %cst_34 = arith.constant dense<0xFF800000> : vector<4x16xf32>
    %97 = vector.multi_reduction <maximumf>, %96, %cst_34 [2] : vector<4x16x16xf32> to vector<4x16xf32>
    %98 = vector.shape_cast %97 : vector<4x16xf32> to vector<4x16x1xf32>
    %99 = vector.broadcast %98 : vector<4x16x1xf32> to vector<4x16x16xf32>
    %100 = arith.subf %96, %99 : vector<4x16x16xf32>
    %101 = math.exp %100 : vector<4x16x16xf32>
    %cst_35 = arith.constant dense<0.000000e+00> : vector<4x16xf32>
    %102 = vector.multi_reduction <add>, %101, %cst_35 [2] : vector<4x16x16xf32> to vector<4x16xf32>
    %103 = vector.shape_cast %102 : vector<4x16xf32> to vector<4x16x1xf32>
    %104 = tpu.reciprocal %103 {approx = true} : vector<4x16x1xf32> -> vector<4x16x1xf32>
    %105 = vector.broadcast %104 : vector<4x16x1xf32> to vector<4x16x16xf32>
    %106 = arith.mulf %101, %105 : vector<4x16x16xf32>
    %107 = arith.truncf %106 : vector<4x16x16xf32> to vector<4x16x16xbf16>
    "tpu.trace_start"() <{level = 10 : i32, message = "bnm,bmd->bnd"}> : () -> ()
    %cst_36 = arith.constant dense<0.000000e+00> : vector<4x16x128xf32>
    %108 = tpu.matmul %107, %93, %cst_36 {dimension_numbers = #tpu.dot_dimension_numbers<[2], [1], [1], [2], [0, 0, 0, 1, 1, 2], [0], [0]>} : vector<4x16x16xbf16>, vector<4x16x128xbf16>, vector<4x16x128xf32> -> vector<4x16x128xf32>
    "tpu.trace_stop"() : () -> ()
    %109 = tpu.concatenate %54, %72, %90, %108 in 2 : vector<4x16x128xf32>, vector<4x16x128xf32>, vector<4x16x128xf32>, vector<4x16x128xf32> -> vector<4x16x512xf32>
    %110 = vector.shape_cast %109 : vector<4x16x512xf32> to vector<64x512xf32>
    %111 = arith.truncf %110 : vector<64x512xf32> to vector<64x512xbf16>
    %c0_37 = arith.constant 0 : index
    %c0_38 = arith.constant 0 : index
    %c0_39 = arith.constant 0 : index
    %112 = vector.load %arg6[%c0_37, %c0_38, %c0_39] : memref<1x512x128xbf16, #tpu.memory_space<vmem>>, vector<1x512x128xbf16>
    %113 = vector.shape_cast %112 : vector<1x512x128xbf16> to vector<512x128xbf16>
    %cst_40 = arith.constant dense<0.000000e+00> : vector<64x128xf32>
    %114 = tpu.matmul %111, %113, %cst_40 {dimension_numbers = #tpu.dot_dimension_numbers<[1], [0], [0], [1], [0, 0, 1, 1], [], []>} : vector<64x512xbf16>, vector<512x128xbf16>, vector<64x128xf32> -> vector<64x128xf32>
    %115 = arith.addf %4, %114 : vector<64x128xf32>
    %c0_41 = arith.constant 0 : index
    %c0_42 = arith.constant 0 : index
    %c0_43 = arith.constant 0 : index
    %116 = vector.load %arg7[%c0_41, %c0_42, %c0_43] : memref<1x1x128xf32, #tpu.memory_space<vmem>>, vector<1x1x128xf32>
    %117 = vector.shape_cast %116 : vector<1x1x128xf32> to vector<1x128xf32>
    %118 = vector.broadcast %117 : vector<1x128xf32> to vector<64x128xf32>
    %119 = arith.addf %115, %118 : vector<64x128xf32>
    %cst_44 = arith.constant dense<0.000000e+00> : vector<64xf32>
    %120 = vector.multi_reduction <add>, %119, %cst_44 [1] : vector<64x128xf32> to vector<64xf32>
    %121 = vector.shape_cast %120 : vector<64xf32> to vector<64x1xf32>
    %cst_45 = arith.constant 1.280000e+02 : f32
    %122 = vector.broadcast %cst_45 : f32 to vector<64x1xf32>
    %123 = arith.divf %121, %122 : vector<64x1xf32>
    %124 = vector.broadcast %123 : vector<64x1xf32> to vector<64x128xf32>
    %125 = arith.subf %119, %124 : vector<64x128xf32>
    %126 = arith.mulf %125, %125 : vector<64x128xf32>
    %cst_46 = arith.constant dense<0.000000e+00> : vector<64xf32>
    %127 = vector.multi_reduction <add>, %126, %cst_46 [1] : vector<64x128xf32> to vector<64xf32>
    %128 = vector.shape_cast %127 : vector<64xf32> to vector<64x1xf32>
    %cst_47 = arith.constant 1.280000e+02 : f32
    %129 = vector.broadcast %cst_47 : f32 to vector<64x1xf32>
    %130 = arith.divf %128, %129 : vector<64x1xf32>
    %131 = vector.broadcast %123 : vector<64x1xf32> to vector<64x128xf32>
    %132 = arith.subf %119, %131 : vector<64x128xf32>
    %cst_48 = arith.constant 9.99999974E-6 : f32
    %133 = vector.broadcast %cst_48 : f32 to vector<64x1xf32>
    %134 = arith.addf %130, %133 : vector<64x1xf32>
    %135 = math.rsqrt %134 : vector<64x1xf32>
    %136 = vector.broadcast %135 : vector<64x1xf32> to vector<64x128xf32>
    %137 = arith.mulf %132, %136 : vector<64x128xf32>
    %c0_49 = arith.constant 0 : index
    %c0_50 = arith.constant 0 : index
    %c0_51 = arith.constant 0 : index
    %138 = vector.load %arg8[%c0_49, %c0_50, %c0_51] : memref<1x1x128xf32, #tpu.memory_space<vmem>>, vector<1x1x128xf32>
    %139 = vector.shape_cast %138 : vector<1x1x128xf32> to vector<1x128xf32>
    %140 = vector.broadcast %139 : vector<1x128xf32> to vector<64x128xf32>
    %141 = arith.mulf %137, %140 : vector<64x128xf32>
    %c0_52 = arith.constant 0 : index
    %c0_53 = arith.constant 0 : index
    %c0_54 = arith.constant 0 : index
    %142 = vector.load %arg9[%c0_52, %c0_53, %c0_54] : memref<1x1x128xf32, #tpu.memory_space<vmem>>, vector<1x1x128xf32>
    %143 = vector.shape_cast %142 : vector<1x1x128xf32> to vector<1x128xf32>
    %144 = vector.broadcast %143 : vector<1x128xf32> to vector<64x128xf32>
    %145 = arith.addf %141, %144 : vector<64x128xf32>
    %146 = arith.truncf %145 : vector<64x128xf32> to vector<64x128xbf16>
    %c0_55 = arith.constant 0 : index
    %c0_56 = arith.constant 0 : index
    %c0_57 = arith.constant 0 : index
    %147 = vector.load %arg10[%c0_55, %c0_56, %c0_57] : memref<1x128x256xbf16, #tpu.memory_space<vmem>>, vector<1x128x256xbf16>
    %148 = vector.shape_cast %147 : vector<1x128x256xbf16> to vector<128x256xbf16>
    %cst_58 = arith.constant dense<0.000000e+00> : vector<64x256xf32>
    %149 = tpu.matmul %146, %148, %cst_58 {dimension_numbers = #tpu.dot_dimension_numbers<[1], [0], [0], [1], [0, 0, 1, 1], [], []>} : vector<64x128xbf16>, vector<128x256xbf16>, vector<64x256xf32> -> vector<64x256xf32>
    %c0_59 = arith.constant 0 : index
    %c0_60 = arith.constant 0 : index
    %c0_61 = arith.constant 0 : index
    %150 = vector.load %arg11[%c0_59, %c0_60, %c0_61] : memref<1x1x256xf32, #tpu.memory_space<vmem>>, vector<1x1x256xf32>
    %151 = vector.shape_cast %150 : vector<1x1x256xf32> to vector<1x256xf32>
    %152 = vector.broadcast %151 : vector<1x256xf32> to vector<64x256xf32>
    %153 = arith.addf %149, %152 : vector<64x256xf32>
    %154 = arith.mulf %153, %153 : vector<64x256xf32>
    %155 = arith.mulf %153, %154 : vector<64x256xf32>
    %cst_62 = arith.constant 4.471500e-02 : f32
    %156 = vector.broadcast %cst_62 : f32 to vector<64x256xf32>
    %157 = arith.mulf %156, %155 : vector<64x256xf32>
    %158 = arith.addf %153, %157 : vector<64x256xf32>
    %cst_63 = arith.constant 0.797884583 : f32
    %159 = vector.broadcast %cst_63 : f32 to vector<64x256xf32>
    %160 = arith.mulf %159, %158 : vector<64x256xf32>
    %161 = math.tanh %160 : vector<64x256xf32>
    %cst_64 = arith.constant 1.000000e+00 : f32
    %162 = vector.broadcast %cst_64 : f32 to vector<64x256xf32>
    %163 = arith.addf %162, %161 : vector<64x256xf32>
    %cst_65 = arith.constant 5.000000e-01 : f32
    %164 = vector.broadcast %cst_65 : f32 to vector<64x256xf32>
    %165 = arith.mulf %164, %163 : vector<64x256xf32>
    %166 = arith.mulf %153, %165 : vector<64x256xf32>
    %167 = arith.truncf %166 : vector<64x256xf32> to vector<64x256xbf16>
    %c0_66 = arith.constant 0 : index
    %c0_67 = arith.constant 0 : index
    %c0_68 = arith.constant 0 : index
    %168 = vector.load %arg12[%c0_66, %c0_67, %c0_68] : memref<1x256x128xbf16, #tpu.memory_space<vmem>>, vector<1x256x128xbf16>
    %169 = vector.shape_cast %168 : vector<1x256x128xbf16> to vector<256x128xbf16>
    %cst_69 = arith.constant dense<0.000000e+00> : vector<64x128xf32>
    %170 = tpu.matmul %167, %169, %cst_69 {dimension_numbers = #tpu.dot_dimension_numbers<[1], [0], [0], [1], [0, 0, 1, 1], [], []>} : vector<64x256xbf16>, vector<256x128xbf16>, vector<64x128xf32> -> vector<64x128xf32>
    %c0_70 = arith.constant 0 : index
    %c0_71 = arith.constant 0 : index
    %c0_72 = arith.constant 0 : index
    %171 = vector.load %arg13[%c0_70, %c0_71, %c0_72] : memref<1x1x128xf32, #tpu.memory_space<vmem>>, vector<1x1x128xf32>
    %172 = vector.shape_cast %171 : vector<1x1x128xf32> to vector<1x128xf32>
    %173 = vector.broadcast %172 : vector<1x128xf32> to vector<64x128xf32>
    %174 = arith.addf %170, %173 : vector<64x128xf32>
    %175 = arith.addf %119, %174 : vector<64x128xf32>
    %176 = vector.shape_cast %175 : vector<64x128xf32> to vector<4x16x128xf32>
    %c0_73 = arith.constant 0 : index
    %c0_74 = arith.constant 0 : index
    %c0_75 = arith.constant 0 : index
    %177 = vector.load %arg14[%c0_73, %c0_74, %c0_75] : memref<4x16x128xf32, #tpu.memory_space<vmem>>, vector<4x16x128xf32>
    tpu.vector_store %arg14[%c0_73, %c0_74, %c0_75], %176 {strides = array<i32>} : memref<4x16x128xf32, #tpu.memory_space<vmem>>, vector<4x16x128xf32>,
    return
  }
  func.func @transform_0(%arg0: i32, %arg1: i32) -> (i32, i32, i32) {
    %c0_i32 = arith.constant 0 : i32
    %c0_i32_0 = arith.constant 0 : i32
    %c0_i32_1 = arith.constant 0 : i32
    return %arg0, %c0_i32, %c0_i32_0 : i32, i32, i32
  }
  func.func @transform_1(%arg0: i32, %arg1: i32) -> (i32, i32, i32) {
    %c0_i32 = arith.constant 0 : i32
    %c0_i32_0 = arith.constant 0 : i32
    %c0_i32_1 = arith.constant 0 : i32
    return %arg1, %c0_i32, %c0_i32_0 : i32, i32, i32
  }
  func.func @transform_2(%arg0: i32, %arg1: i32) -> (i32, i32, i32) {
    %c0_i32 = arith.constant 0 : i32
    %c0_i32_0 = arith.constant 0 : i32
    %c0_i32_1 = arith.constant 0 : i32
    return %arg1, %c0_i32, %c0_i32_0 : i32, i32, i32
  }
  func.func @transform_3(%arg0: i32, %arg1: i32) -> (i32, i32, i32) {
    %c0_i32 = arith.constant 0 : i32
    %c0_i32_0 = arith.constant 0 : i32
    %c0_i32_1 = arith.constant 0 : i32
    return %arg1, %c0_i32, %c0_i32_0 : i32, i32, i32
  }
  func.func @transform_4(%arg0: i32, %arg1: i32) -> (i32, i32, i32) {
    %c0_i32 = arith.constant 0 : i32
    %c0_i32_0 = arith.constant 0 : i32
    %c0_i32_1 = arith.constant 0 : i32
    return %arg1, %c0_i32, %c0_i32_0 : i32, i32, i32
  }
  func.func @transform_5(%arg0: i32, %arg1: i32) -> (i32, i32, i32) {
    %c0_i32 = arith.constant 0 : i32
    %c0_i32_0 = arith.constant 0 : i32
    %c0_i32_1 = arith.constant 0 : i32
    return %arg1, %c0_i32, %c0_i32_0 : i32, i32, i32
  }
  func.func @transform_6(%arg0: i32, %arg1: i32) -> (i32, i32, i32) {
    %c0_i32 = arith.constant 0 : i32
    %c0_i32_0 = arith.constant 0 : i32
    %c0_i32_1 = arith.constant 0 : i32
    return %arg1, %c0_i32, %c0_i32_0 : i32, i32, i32
  }
  func.func @transform_7(%arg0: i32, %arg1: i32) -> (i32, i32, i32) {
    %c0_i32 = arith.constant 0 : i32
    %c0_i32_0 = arith.constant 0 : i32
    %c0_i32_1 = arith.constant 0 : i32
    return %arg1, %c0_i32, %c0_i32_0 : i32, i32, i32
  }
  func.func @transform_8(%arg0: i32, %arg1: i32) -> (i32, i32, i32) {
    %c0_i32 = arith.constant 0 : i32
    %c0_i32_0 = arith.constant 0 : i32
    %c0_i32_1 = arith.constant 0 : i32
    return %arg1, %c0_i32, %c0_i32_0 : i32, i32, i32
  }
  func.func @transform_9(%arg0: i32, %arg1: i32) -> (i32, i32, i32) {
    %c0_i32 = arith.constant 0 : i32
    %c0_i32_0 = arith.constant 0 : i32
    %c0_i32_1 = arith.constant 0 : i32
    return %arg1, %c0_i32, %c0_i32_0 : i32, i32, i32
  }
  func.func @transform_10(%arg0: i32, %arg1: i32) -> (i32, i32, i32) {
    %c0_i32 = arith.constant 0 : i32
    %c0_i32_0 = arith.constant 0 : i32
    %c0_i32_1 = arith.constant 0 : i32
    return %arg1, %c0_i32, %c0_i32_0 : i32, i32, i32
  }
  func.func @transform_11(%arg0: i32, %arg1: i32) -> (i32, i32, i32) {
    %c0_i32 = arith.constant 0 : i32
    %c0_i32_0 = arith.constant 0 : i32
    %c0_i32_1 = arith.constant 0 : i32
    return %arg1, %c0_i32, %c0_i32_0 : i32, i32, i32
  }
  func.func @transform_12(%arg0: i32, %arg1: i32) -> (i32, i32, i32) {
    %c0_i32 = arith.constant 0 : i32
    %c0_i32_0 = arith.constant 0 : i32
    %c0_i32_1 = arith.constant 0 : i32
    return %arg0, %c0_i32, %c0_i32_0 : i32, i32, i32
  }
}

</mosaic_0001>

<llo_original>
// kernel: transformer_forward.1
$region0: #{transformer_forward.1}
  #allocation0 [shape = 'u32[]', space=smem, size = 0x4, offset = 0x4, fixed_abs, tag = 'smem constant byte address 0x4 - core index']
  #allocation1 [shape = 'u32[144,128]{1,0:T(1,128)}', space=vmem, size = 0x12000, scoped, tag = 'internal scratch']
  %s0 = inlined_call_operand.hbm [shape: f32[8,16,128], index: 0, kind: input, shape index: {}]
  %s1 = inlined_call_operand.vmem [shape: f32[2,1,128], index: 1, kind: input, shape index: {}]
  %s2 = inlined_call_operand.vmem [shape: f32[2,1,128], index: 2, kind: input, shape index: {}]
  %s3 = inlined_call_operand.hbm [shape: bf16[2,128,1536], index: 3, kind: input, shape index: {}]
  %s4 = inlined_call_operand.hbm [shape: bf16[2,512,128], index: 4, kind: input, shape index: {}]
  %s5 = inlined_call_operand.vmem [shape: f32[2,1,128], index: 5, kind: input, shape index: {}]
  %s6 = inlined_call_operand.vmem [shape: f32[2,1,128], index: 6, kind: input, shape index: {}]
  %s7 = inlined_call_operand.vmem [shape: f32[2,1,128], index: 7, kind: input, shape index: {}]
  %s8 = inlined_call_operand.hbm [shape: bf16[2,128,256], index: 8, kind: input, shape index: {}]
  %s9 = inlined_call_operand.hbm [shape: f32[2,1,256], index: 9, kind: input, shape index: {}]
  %s10 = inlined_call_operand.hbm [shape: bf16[2,256,128], index: 10, kind: input, shape index: {}]
  %s11 = inlined_call_operand.hbm [shape: f32[2,1,128], index: 11, kind: input, shape index: {}]
  %s12 = inlined_call_operand.hbm [shape: f32[8,16,128], index: 12, kind: output, shape index: {}]
  %s13 = sld [smem:[#allocation0]]
  $region113: #{transformer_forward.1} parent=0
    _
  %s15 = ssub.s32 1, %s13
  %s16 = scalar_select 0, %s15, %s13
  $region1: #{transformer_forward.1} parent=0
    #allocation2 [shape = 'u8[65536]{0}', space=vmem, size = 0x10000, scoped, tag = 'input window, operand 0']
    #allocation3 [shape = 's32[2]{0}', space=sflag, size = 0x8, scoped, tag = 'scoped memory for transformer_forward.1']
    #allocation4 [shape = 's32[2]{0}', space=sflag, size = 0x8, scoped, tag = 'scoped memory for transformer_forward.1']
    #allocation5 [shape = 'u8[786432]{0}', space=vmem, size = 0xc0000, scoped, tag = 'input window, operand 3']
    #allocation6 [shape = 's32[2]{0}', space=sflag, size = 0x8, scoped, tag = 'scoped memory for transformer_forward.1']
    #allocation7 [shape = 'u8[262144]{0}', space=vmem, size = 0x40000, scoped, tag = 'input window, operand 4']
    #allocation8 [shape = 'u8[131072]{0}', space=vmem, size = 0x20000, scoped, tag = 'input window, operand 8']
    #allocation9 [shape = 's32[2]{0}', space=sflag, size = 0x8, scoped, tag = 'scoped memory for transformer_forward.1']
    #allocation10 [shape = 'u8[2048]{0}', space=vmem, size = 0x800, scoped, tag = 'input window, operand 9']
    #allocation11 [shape = 'u8[131072]{0}', space=vmem, size = 0x20000, scoped, tag = 'input window, operand 10']
    #allocation12 [shape = 's32[2]{0}', space=sflag, size = 0x8, scoped, tag = 'scoped memory for transformer_forward.1']
    #allocation13 [shape = 'u8[1024]{0}', space=vmem, size = 0x400, scoped, tag = 'input window, operand 11']
    #allocation14 [shape = 'u8[65536]{0}', space=vmem, size = 0x10000, scoped, tag = 'output window, operand 0']
    %17 = vsyncpa [#allocation3], 0
    %s18 = scalar_lea.sflag [#allocation3], 1
    %19 = vsyncpa %s18, 0
    %20 = vsyncpa [#allocation6], 0
    %s21 = scalar_lea.sflag [#allocation6], 1
    %22 = vsyncpa %s21, 0
    %23 = vsyncpa [#allocation9], 0
    %s24 = scalar_lea.sflag [#allocation9], 1
    %25 = vsyncpa %s24, 0
    %26 = vsyncpa [#allocation12], 0
    %s27 = scalar_lea.sflag [#allocation12], 1
    %28 = vsyncpa %s27, 0
    %29 = vsyncpa [#allocation4], 0
    %s30 = scalar_lea.sflag [#allocation4], 1
    %31 = vsyncpa %s30, 0
    loop: start=0, step=1, limit=6
    $region2: #{transformer_forward.1} parent=1 // loop_pre_header
      _
    $region3: #{transformer_forward.1} parent=1 // loop_header
      %s33 = sphi 0, %s37
      %p34 = scmp.ge.s32.totalorder %s33, 6
      %s40 = sphi 0, %s52
      %s41 = sphi 0, %s48
      %s42 = sphi 0, %s40
      %s43 = sphi 0, %s41
      %s44 = sphi 0, %s42
      %s45 = sphi 0, %s43
      %s55 = sphi 0, %s57
      %s58 = sphi 0, %s55
      %s59 = sphi 0, %s58
      %s75 = sphi 0, %s59
      %s81 = sphi 0, %s83
      %s84 = sphi 0, %s81
      %s85 = sphi 0, %s84
      %s101 = sphi 0, %s85
      %s107 = sphi 0, %s109
      %s110 = sphi 0, %s107
      %s111 = sphi 0, %s110
      %s127 = sphi 0, %s111
      %s133 = sphi 0, %s135
      %s136 = sphi 0, %s133
      %s137 = sphi 0, %s136
      %s153 = sphi 0, %s137
      %s159 = sphi 0, %s161
      %s162 = sphi 0, %s159
      %s163 = sphi 0, %s162
      %s179 = sphi 0, %s163
      %s185 = sphi 0, %s187
      %s188 = sphi 0, %s185
      %s189 = sphi 0, %s188
      %s205 = sphi 0, %s189
      %s211 = sphi 0, %s213
      %s214 = sphi 0, %s211
      %s215 = sphi 0, %s214
      %s231 = sphi 0, %s215
      %s237 = sphi 0, %s239
      %s240 = sphi 0, %s237
      %s241 = sphi 0, %s240
      %s257 = sphi 0, %s241
      %s263 = sphi 0, %s265
      %s266 = sphi 0, %s263
      %s267 = sphi 0, %s266
      %s283 = sphi 0, %s267
      %s289 = sphi 0, %s291
      %s292 = sphi 0, %s289
      %s293 = sphi 0, %s292
      %s309 = sphi 0, %s293
      %s315 = sphi 0, %s317
      %s318 = sphi 0, %s315
      %s319 = sphi 0, %s318
      %s335 = sphi 0, %s319
      %s341 = sphi 0, %s343
      %s344 = sphi 0, %s341
      %s345 = sphi 0, %s344
      %s361 = sphi 0, %s345
      %s367 = sphi 0, %s369
      %s370 = sphi 0, %s367
      %s371 = sphi 0, %s370
      %s387 = sphi 0, %s371
    $region4: #{transformer_forward.1} parent=1 // loop_header_branch
      %36 = sbr.rel (%p34) target = $region8
    $region5: #{transformer_forward.1} parent=1 // loop_body
      %s38 = ssub.s32 %s33, 1
      %s39 = ssub.s32 %s33, 2
      %s46 = sadd.s32 1, %s41
      %p47 = scmp.ge.s32.totalorder %s46, 2
      %s48 = scalar_select %p47, 0, %s46
      %s49 = sadd.s32 1, %s40
      %s50 = scalar_select %p47, %s49, %s40
      %p51 = scmp.ge.s32.totalorder %s50, 2
      %s52 = scalar_select %p51, 0, %s50
      %s53 = ssub.s32 %s40, %s52
      %p54 = scmp.eq.s32.totalorder %s53, 0
      %s56 = sadd.s32 %s55, 1
      %s57 = scalar_select %p54, %s55, %s56
      %p60 = pneg %p54
      %p61 = scmp.eq.s32.totalorder %s33, 3
      %p62 = por %p60, %p61
      %p63 = scmp.ne.s32.totalorder %s55, %s58
      %p64 = scmp.eq.s32.totalorder %s33, 0
      %p65 = por %p63, %p64
      %p66 = scmp.ne.s32.totalorder %s55, %s58
      %p67 = scmp.eq.s32.totalorder %s38, 3
      %p68 = por %p66, %p67
      %p69 = scmp.ne.s32.totalorder %s58, %s59
      %p70 = scmp.eq.s32.totalorder %s38, 0
      %p71 = por %p69, %p70
      %p72 = scmp.ne.s32.totalorder %s58, %s59
      %p73 = scmp.eq.s32.totalorder %s39, 3
      %p74 = por %p72, %p73
      %p76 = scmp.ne.s32.totalorder %s59, %s75
      %p77 = scmp.eq.s32.totalorder %s39, 0
      %p78 = por %p76, %p77
      %s79 = ssub.s32 %s41, %s48
      %p80 = scmp.eq.s32.totalorder %s79, 0
      %s82 = sadd.s32 %s81, 1
      %s83 = scalar_select %p80, %s81, %s82
      %p86 = pneg %p80
      %p87 = scmp.eq.s32.totalorder %s33, 3
      %p88 = por %p86, %p87
      %p89 = scmp.ne.s32.totalorder %s81, %s84
      %p90 = scmp.eq.s32.totalorder %s33, 0
      %p91 = por %p89, %p90
      %p92 = scmp.ne.s32.totalorder %s81, %s84
      %p93 = scmp.eq.s32.totalorder %s38, 3
      %p94 = por %p92, %p93
      %p95 = scmp.ne.s32.totalorder %s84, %s85
      %p96 = scmp.eq.s32.totalorder %s38, 0
      %p97 = por %p95, %p96
      %p98 = scmp.ne.s32.totalorder %s84, %s85
      %p99 = scmp.eq.s32.totalorder %s39, 3
      %p100 = por %p98, %p99
      %p102 = scmp.ne.s32.totalorder %s85, %s101
      %p103 = scmp.eq.s32.totalorder %s39, 0
      %p104 = por %p102, %p103
      %s105 = ssub.s32 %s41, %s48
      %p106 = scmp.eq.s32.totalorder %s105, 0
      %s108 = sadd.s32 %s107, 1
      %s109 = scalar_select %p106, %s107, %s108
      %p112 = pneg %p106
      %p113 = scmp.eq.s32.totalorder %s33, 3
      %p114 = por %p112, %p113
      %p115 = scmp.ne.s32.totalorder %s107, %s110
      %p116 = scmp.eq.s32.totalorder %s33, 0
      %p117 = por %p115, %p116
      %p118 = scmp.ne.s32.totalorder %s107, %s110
      %p119 = scmp.eq.s32.totalorder %s38, 3
      %p120 = por %p118, %p119
      %p121 = scmp.ne.s32.totalorder %s110, %s111
      %p122 = scmp.eq.s32.totalorder %s38, 0
      %p123 = por %p121, %p122
      %p124 = scmp.ne.s32.totalorder %s110, %s111
      %p125 = scmp.eq.s32.totalorder %s39, 3
      %p126 = por %p124, %p125
      %p128 = scmp.ne.s32.totalorder %s111, %s127
      %p129 = scmp.eq.s32.totalorder %s39, 0
      %p130 = por %p128, %p129
      %s131 = ssub.s32 %s41, %s48
      %p132 = scmp.eq.s32.totalorder %s131, 0
      %s134 = sadd.s32 %s133, 1
      %s135 = scalar_select %p132, %s133, %s134
      %p138 = pneg %p132
      %p139 = scmp.eq.s32.totalorder %s33, 3
      %p140 = por %p138, %p139
      %p141 = scmp.ne.s32.totalorder %s133, %s136
      %p142 = scmp.eq.s32.totalorder %s33, 0
      %p143 = por %p141, %p142
      %p144 = scmp.ne.s32.totalorder %s133, %s136
      %p145 = scmp.eq.s32.totalorder %s38, 3
      %p146 = por %p144, %p145
      %p147 = scmp.ne.s32.totalorder %s136, %s137
      %p148 = scmp.eq.s32.totalorder %s38, 0
      %p149 = por %p147, %p148
      %p150 = scmp.ne.s32.totalorder %s136, %s137
      %p151 = scmp.eq.s32.totalorder %s39, 3
      %p152 = por %p150, %p151
      %p154 = scmp.ne.s32.totalorder %s137, %s153
      %p155 = scmp.eq.s32.totalorder %s39, 0
      %p156 = por %p154, %p155
      %s157 = ssub.s32 %s41, %s48
      %p158 = scmp.eq.s32.totalorder %s157, 0
      %s160 = sadd.s32 %s159, 1
      %s161 = scalar_select %p158, %s159, %s160
      %p164 = pneg %p158
      %p165 = scmp.eq.s32.totalorder %s33, 3
      %p166 = por %p164, %p165
      %p167 = scmp.ne.s32.totalorder %s159, %s162
      %p168 = scmp.eq.s32.totalorder %s33, 0
      %p169 = por %p167, %p168
      %p170 = scmp.ne.s32.totalorder %s159, %s162
      %p171 = scmp.eq.s32.totalorder %s38, 3
      %p172 = por %p170, %p171
      %p173 = scmp.ne.s32.totalorder %s162, %s163
      %p174 = scmp.eq.s32.totalorder %s38, 0
      %p175 = por %p173, %p174
      %p176 = scmp.ne.s32.totalorder %s162, %s163
      %p177 = scmp.eq.s32.totalorder %s39, 3
      %p178 = por %p176, %p177
      %p180 = scmp.ne.s32.totalorder %s163, %s179
      %p181 = scmp.eq.s32.totalorder %s39, 0
      %p182 = por %p180, %p181
      %s183 = ssub.s32 %s41, %s48
      %p184 = scmp.eq.s32.totalorder %s183, 0
      %s186 = sadd.s32 %s185, 1
      %s187 = scalar_select %p184, %s185, %s186
      %p190 = pneg %p184
      %p191 = scmp.eq.s32.totalorder %s33, 3
      %p192 = por %p190, %p191
      %p193 = scmp.ne.s32.totalorder %s185, %s188
      %p194 = scmp.eq.s32.totalorder %s33, 0
      %p195 = por %p193, %p194
      %p196 = scmp.ne.s32.totalorder %s185, %s188
      %p197 = scmp.eq.s32.totalorder %s38, 3
      %p198 = por %p196, %p197
      %p199 = scmp.ne.s32.totalorder %s188, %s189
      %p200 = scmp.eq.s32.totalorder %s38, 0
      %p201 = por %p199, %p200
      %p202 = scmp.ne.s32.totalorder %s188, %s189
      %p203 = scmp.eq.s32.totalorder %s39, 3
      %p204 = por %p202, %p203
      %p206 = scmp.ne.s32.totalorder %s189, %s205
      %p207 = scmp.eq.s32.totalorder %s39, 0
      %p208 = por %p206, %p207
      %s209 = ssub.s32 %s41, %s48
      %p210 = scmp.eq.s32.totalorder %s209, 0
      %s212 = sadd.s32 %s211, 1
      %s213 = scalar_select %p210, %s211, %s212
      %p216 = pneg %p210
      %p217 = scmp.eq.s32.totalorder %s33, 3
      %p218 = por %p216, %p217
      %p219 = scmp.ne.s32.totalorder %s211, %s214
      %p220 = scmp.eq.s32.totalorder %s33, 0
      %p221 = por %p219, %p220
      %p222 = scmp.ne.s32.totalorder %s211, %s214
      %p223 = scmp.eq.s32.totalorder %s38, 3
      %p224 = por %p222, %p223
      %p225 = scmp.ne.s32.totalorder %s214, %s215
      %p226 = scmp.eq.s32.totalorder %s38, 0
      %p227 = por %p225, %p226
      %p228 = scmp.ne.s32.totalorder %s214, %s215
      %p229 = scmp.eq.s32.totalorder %s39, 3
      %p230 = por %p228, %p229
      %p232 = scmp.ne.s32.totalorder %s215, %s231
      %p233 = scmp.eq.s32.totalorder %s39, 0
      %p234 = por %p232, %p233
      %s235 = ssub.s32 %s41, %s48
      %p236 = scmp.eq.s32.totalorder %s235, 0
      %s238 = sadd.s32 %s237, 1
      %s239 = scalar_select %p236, %s237, %s238
      %p242 = pneg %p236
      %p243 = scmp.eq.s32.totalorder %s33, 3
      %p244 = por %p242, %p243
      %p245 = scmp.ne.s32.totalorder %s237, %s240
      %p246 = scmp.eq.s32.totalorder %s33, 0
      %p247 = por %p245, %p246
      %p248 = scmp.ne.s32.totalorder %s237, %s240
      %p249 = scmp.eq.s32.totalorder %s38, 3
      %p250 = por %p248, %p249
      %p251 = scmp.ne.s32.totalorder %s240, %s241
      %p252 = scmp.eq.s32.totalorder %s38, 0
      %p253 = por %p251, %p252
      %p254 = scmp.ne.s32.totalorder %s240, %s241
      %p255 = scmp.eq.s32.totalorder %s39, 3
      %p256 = por %p254, %p255
      %p258 = scmp.ne.s32.totalorder %s241, %s257
      %p259 = scmp.eq.s32.totalorder %s39, 0
      %p260 = por %p258, %p259
      %s261 = ssub.s32 %s41, %s48
      %p262 = scmp.eq.s32.totalorder %s261, 0
      %s264 = sadd.s32 %s263, 1
      %s265 = scalar_select %p262, %s263, %s264
      %p268 = pneg %p262
      %p269 = scmp.eq.s32.totalorder %s33, 3
      %p270 = por %p268, %p269
      %p271 = scmp.ne.s32.totalorder %s263, %s266
      %p272 = scmp.eq.s32.totalorder %s33, 0
      %p273 = por %p271, %p272
      %p274 = scmp.ne.s32.totalorder %s263, %s266
      %p275 = scmp.eq.s32.totalorder %s38, 3
      %p276 = por %p274, %p275
      %p277 = scmp.ne.s32.totalorder %s266, %s267
      %p278 = scmp.eq.s32.totalorder %s38, 0
      %p279 = por %p277, %p278
      %p280 = scmp.ne.s32.totalorder %s266, %s267
      %p281 = scmp.eq.s32.totalorder %s39, 3
      %p282 = por %p280, %p281
      %p284 = scmp.ne.s32.totalorder %s267, %s283
      %p285 = scmp.eq.s32.totalorder %s39, 0
      %p286 = por %p284, %p285
      %s287 = ssub.s32 %s41, %s48
      %p288 = scmp.eq.s32.totalorder %s287, 0
      %s290 = sadd.s32 %s289, 1
      %s291 = scalar_select %p288, %s289, %s290
      %p294 = pneg %p288
      %p295 = scmp.eq.s32.totalorder %s33, 3
      %p296 = por %p294, %p295
      %p297 = scmp.ne.s32.totalorder %s289, %s292
      %p298 = scmp.eq.s32.totalorder %s33, 0
      %p299 = por %p297, %p298
      %p300 = scmp.ne.s32.totalorder %s289, %s292
      %p301 = scmp.eq.s32.totalorder %s38, 3
      %p302 = por %p300, %p301
      %p303 = scmp.ne.s32.totalorder %s292, %s293
      %p304 = scmp.eq.s32.totalorder %s38, 0
      %p305 = por %p303, %p304
      %p306 = scmp.ne.s32.totalorder %s292, %s293
      %p307 = scmp.eq.s32.totalorder %s39, 3
      %p308 = por %p306, %p307
      %p310 = scmp.ne.s32.totalorder %s293, %s309
      %p311 = scmp.eq.s32.totalorder %s39, 0
      %p312 = por %p310, %p311
      %s313 = ssub.s32 %s41, %s48
      %p314 = scmp.eq.s32.totalorder %s313, 0
      %s316 = sadd.s32 %s315, 1
      %s317 = scalar_select %p314, %s315, %s316
      %p320 = pneg %p314
      %p321 = scmp.eq.s32.totalorder %s33, 3
      %p322 = por %p320, %p321
      %p323 = scmp.ne.s32.totalorder %s315, %s318
      %p324 = scmp.eq.s32.totalorder %s33, 0
      %p325 = por %p323, %p324
      %p326 = scmp.ne.s32.totalorder %s315, %s318
      %p327 = scmp.eq.s32.totalorder %s38, 3
      %p328 = por %p326, %p327
      %p329 = scmp.ne.s32.totalorder %s318, %s319
      %p330 = scmp.eq.s32.totalorder %s38, 0
      %p331 = por %p329, %p330
      %p332 = scmp.ne.s32.totalorder %s318, %s319
      %p333 = scmp.eq.s32.totalorder %s39, 3
      %p334 = por %p332, %p333
      %p336 = scmp.ne.s32.totalorder %s319, %s335
      %p337 = scmp.eq.s32.totalorder %s39, 0
      %p338 = por %p336, %p337
      %s339 = ssub.s32 %s41, %s48
      %p340 = scmp.eq.s32.totalorder %s339, 0
      %s342 = sadd.s32 %s341, 1
      %s343 = scalar_select %p340, %s341, %s342
      %p346 = pneg %p340
      %p347 = scmp.eq.s32.totalorder %s33, 3
      %p348 = por %p346, %p347
      %p349 = scmp.ne.s32.totalorder %s341, %s344
      %p350 = scmp.eq.s32.totalorder %s33, 0
      %p351 = por %p349, %p350
      %p352 = scmp.ne.s32.totalorder %s341, %s344
      %p353 = scmp.eq.s32.totalorder %s38, 3
      %p354 = por %p352, %p353
      %p355 = scmp.ne.s32.totalorder %s344, %s345
      %p356 = scmp.eq.s32.totalorder %s38, 0
      %p357 = por %p355, %p356
      %p358 = scmp.ne.s32.totalorder %s344, %s345
      %p359 = scmp.eq.s32.totalorder %s39, 3
      %p360 = por %p358, %p359
      %p362 = scmp.ne.s32.totalorder %s345, %s361
      %p363 = scmp.eq.s32.totalorder %s39, 0
      %p364 = por %p362, %p363
      %s365 = ssub.s32 %s40, %s52
      %p366 = scmp.eq.s32.totalorder %s365, 0
      %s368 = sadd.s32 %s367, 1
      %s369 = scalar_select %p366, %s367, %s368
      %p372 = pneg %p366
      %p373 = scmp.eq.s32.totalorder %s33, 3
      %p374 = por %p372, %p373
      %p375 = scmp.ne.s32.totalorder %s367, %s370
      %p376 = scmp.eq.s32.totalorder %s33, 0
      %p377 = por %p375, %p376
      %p378 = scmp.ne.s32.totalorder %s367, %s370
      %p379 = scmp.eq.s32.totalorder %s38, 3
      %p380 = por %p378, %p379
      %p381 = scmp.ne.s32.totalorder %s370, %s371
      %p382 = scmp.eq.s32.totalorder %s38, 0
      %p383 = por %p381, %p382
      %p384 = scmp.ne.s32.totalorder %s370, %s371
      %p385 = scmp.eq.s32.totalorder %s39, 3
      %p386 = por %p384, %p385
      %p388 = scmp.ne.s32.totalorder %s371, %s387
      %p389 = scmp.eq.s32.totalorder %s39, 0
      %p390 = por %p388, %p389
      %p391 = scmp.le.s32.totalorder 1, %s33
      %p392 = scmp.lt.s32.totalorder %s33, 5
      %p393 = pnand %p391, %p392
      %p394 = pneg %p393
      // Predicated region
      $region9: #{transformer_forward.1} parent=5 // pred_check
        _
      $region10: #{transformer_forward.1} parent=5 // pred_check_branch
        %396 = sbr.rel (%p393) target = $region12
      $region11: #{transformer_forward.1} parent=5 // pred_region
        %s397 = ssub.s32 %s33, 1
      $region12: #{transformer_forward.1} parent=5 // pred_fallthru
        _
      %p398 = scmp.lt.s32.totalorder %s33, 4
      // Predicated region
      $region13: #{transformer_forward.1} parent=5 // pred_check
        %p399 = pneg %p398
      $region14: #{transformer_forward.1} parent=5 // pred_check_branch
        %401 = sbr.rel (%p399) target = $region16
      $region15: #{transformer_forward.1} parent=5 // pred_region
        // Predicated region
        $region17: #{transformer_forward.1} parent=15 // pred_check
          %p402 = pneg %p65
        $region18: #{transformer_forward.1} parent=15 // pred_check_branch
          %404 = sbr.rel (%p402) target = $region20
        $region19: #{transformer_forward.1} parent=15 // pred_region
          %s405 = sand.u32 %s55, 1
          %s406 = scalar_lea.sflag [#allocation3], %s405
          %s407 = sand.u32 %s55, 1
          %s408 = smul.addr %s407, 64
          %s409 = scalar_lea.vmem [#allocation2], %s408
          %s410 = smul.u32 4, %s40
          %s412 = ssub.s32 1024, 1024
          %413 = vsyncadd %s406, %s412
          %s414 = smul.addr %s410, 2
          %s415 = smul.addr %s414, 128
          %s416 = scalar_lea.hbm %s0, %s415
          %s417 = sshll.u32 %s409, 4
          %s418 = int_to_ptr.vmem [resolvable:$true] %s417
          %423 = dma.hbm_to_vmem [thread:$0]  %s416, 1024, %s418, %s406, 128, 128, 8
        $region20: #{transformer_forward.1} parent=15 // pred_fallthru
          _
        // Predicated region
        $region21: #{transformer_forward.1} parent=15 // pred_check
          %p424 = pneg %p91
        $region22: #{transformer_forward.1} parent=15 // pred_check_branch
          %426 = sbr.rel (%p424) target = $region24
        $region23: #{transformer_forward.1} parent=15 // pred_region
          %p427 = scmp.lt.s32.totalorder %s41, 1
          %s428 = scalar_select %p427, %s41, 1
          %s429 = scalar_lea.vmem %s1, %s428
        $region24: #{transformer_forward.1} parent=15 // pred_fallthru
          _
        // Predicated region
        $region25: #{transformer_forward.1} parent=15 // pred_check
          %p430 = pneg %p117
        $region26: #{transformer_forward.1} parent=15 // pred_check_branch
          %432 = sbr.rel (%p430) target = $region28
        $region27: #{transformer_forward.1} parent=15 // pred_region
          %p433 = scmp.lt.s32.totalorder %s41, 1
          %s434 = scalar_select %p433, %s41, 1
          %s435 = scalar_lea.vmem %s2, %s434
        $region28: #{transformer_forward.1} parent=15 // pred_fallthru
          _
        // Predicated region
        $region29: #{transformer_forward.1} parent=15 // pred_check
          %p436 = pneg %p143
        $region30: #{transformer_forward.1} parent=15 // pred_check_branch
          %438 = sbr.rel (%p436) target = $region32
        $region31: #{transformer_forward.1} parent=15 // pred_region
          %s439 = sand.u32 %s33, 1
          %s440 = scalar_lea.sflag [#allocation6], %s439
          %s441 = sand.u32 %s133, 1
          %s442 = smul.addr %s441, 768
          %s443 = scalar_lea.vmem [#allocation5], %s442
          %s445 = ssub.s32 12288, 12288
          %446 = vsyncadd %s440, %s445
          %s447 = smul.addr %s41, 192
          %s448 = smul.addr %s447, 64
          %s449 = scalar_lea.hbm %s3, %s448
          %s450 = sshll.u32 %s443, 4
          %s451 = int_to_ptr.vmem [resolvable:$true] %s450
          %456 = dma.hbm_to_vmem [thread:$0]  %s449, 12288, %s451, %s440, 768, 768, 48
        $region32: #{transformer_forward.1} parent=15 // pred_fallthru
          _
        // Predicated region
        $region33: #{transformer_forward.1} parent=15 // pred_check
          %p457 = pneg %p169
        $region34: #{transformer_forward.1} parent=15 // pred_check_branch
          %459 = sbr.rel (%p457) target = $region36
        $region35: #{transformer_forward.1} parent=15 // pred_region
          %s460 = sand.u32 %s33, 1
          %s461 = scalar_lea.sflag [#allocation6], %s460
          %s462 = sand.u32 %s159, 1
          %s463 = smul.addr %s462, 256
          %s464 = scalar_lea.vmem [#allocation7], %s463
          %s466 = ssub.s32 4096, 4096
          %467 = vsyncadd %s461, %s466
          %s468 = smul.addr %s41, 64
          %s469 = smul.addr %s468, 64
          %s470 = scalar_lea.hbm %s4, %s469
          %s471 = sshll.u32 %s464, 4
          %s472 = int_to_ptr.vmem [resolvable:$true] %s471
          %477 = dma.hbm_to_vmem [thread:$0]  %s470, 4096, %s472, %s461, 64, 64, 4
        $region36: #{transformer_forward.1} parent=15 // pred_fallthru
          _
        // Predicated region
        $region37: #{transformer_forward.1} parent=15 // pred_check
          %p478 = pneg %p195
        $region38: #{transformer_forward.1} parent=15 // pred_check_branch
          %480 = sbr.rel (%p478) target = $region40
        $region39: #{transformer_forward.1} parent=15 // pred_region
          %p481 = scmp.lt.s32.totalorder %s41, 1
          %s482 = scalar_select %p481, %s41, 1
          %s483 = scalar_lea.vmem %s5, %s482
        $region40: #{transformer_forward.1} parent=15 // pred_fallthru
          _
        // Predicated region
        $region41: #{transformer_forward.1} parent=15 // pred_check
          %p484 = pneg %p221
        $region42: #{transformer_forward.1} parent=15 // pred_check_branch
          %486 = sbr.rel (%p484) target = $region44
        $region43: #{transformer_forward.1} parent=15 // pred_region
          %p487 = scmp.lt.s32.totalorder %s41, 1
          %s488 = scalar_select %p487, %s41, 1
          %s489 = scalar_lea.vmem %s6, %s488
        $region44: #{transformer_forward.1} parent=15 // pred_fallthru
          _
        // Predicated region
        $region45: #{transformer_forward.1} parent=15 // pred_check
          %p490 = pneg %p247
        $region46: #{transformer_forward.1} parent=15 // pred_check_branch
          %492 = sbr.rel (%p490) target = $region48
        $region47: #{transformer_forward.1} parent=15 // pred_region
          %p493 = scmp.lt.s32.totalorder %s41, 1
          %s494 = scalar_select %p493, %s41, 1
          %s495 = scalar_lea.vmem %s7, %s494
        $region48: #{transformer_forward.1} parent=15 // pred_fallthru
          _
        // Predicated region
        $region49: #{transformer_forward.1} parent=15 // pred_check
          %p496 = pneg %p273
        $region50: #{transformer_forward.1} parent=15 // pred_check_branch
          %498 = sbr.rel (%p496) target = $region52
        $region51: #{transformer_forward.1} parent=15 // pred_region
          %s499 = sand.u32 %s33, 1
          %s500 = scalar_lea.sflag [#allocation9], %s499
          %s501 = sand.u32 %s263, 1
          %s502 = smul.addr %s501, 128
          %s503 = scalar_lea.vmem [#allocation8], %s502
          %s505 = ssub.s32 2048, 2048
          %506 = vsyncadd %s500, %s505
          %s507 = smul.addr %s41, 32
          %s508 = smul.addr %s507, 64
          %s509 = scalar_lea.hbm %s8, %s508
          %s510 = sshll.u32 %s503, 4
          %s511 = int_to_ptr.vmem [resolvable:$true] %s510
          %516 = dma.hbm_to_vmem [thread:$0]  %s509, 2048, %s511, %s500, 128, 128, 8
        $region52: #{transformer_forward.1} parent=15 // pred_fallthru
          _
        // Predicated region
        $region53: #{transformer_forward.1} parent=15 // pred_check
          %p517 = pneg %p299
        $region54: #{transformer_forward.1} parent=15 // pred_check_branch
          %519 = sbr.rel (%p517) target = $region56
        $region55: #{transformer_forward.1} parent=15 // pred_region
          %s520 = sand.u32 %s33, 1
          %s521 = scalar_lea.sflag [#allocation9], %s520
          %s522 = sand.u32 %s289, 1
          %s523 = smul.addr %s522, 2
          %s524 = scalar_lea.vmem [#allocation10], %s523
          %s526 = ssub.s32 32, 32
          %527 = vsyncadd %s521, %s526
          %s528 = smul.addr %s41, 2
          %s529 = smul.addr %s528, 16
          %s530 = scalar_lea.hbm %s9, %s529
          %s532 = sshll.u32 %s524, 4
          %s533 = int_to_ptr.vmem [resolvable:$true] %s532
          %535 = dma.hbm_to_vmem [thread:$0]  %s530, 32, %s533, %s521
        $region56: #{transformer_forward.1} parent=15 // pred_fallthru
          _
        // Predicated region
        $region57: #{transformer_forward.1} parent=15 // pred_check
          %p536 = pneg %p325
        $region58: #{transformer_forward.1} parent=15 // pred_check_branch
          %538 = sbr.rel (%p536) target = $region60
        $region59: #{transformer_forward.1} parent=15 // pred_region
          %s539 = sand.u32 %s33, 1
          %s540 = scalar_lea.sflag [#allocation12], %s539
          %s541 = sand.u32 %s315, 1
          %s542 = smul.addr %s541, 128
          %s543 = scalar_lea.vmem [#allocation11], %s542
          %s545 = ssub.s32 2048, 2048
          %546 = vsyncadd %s540, %s545
          %s547 = smul.addr %s41, 32
          %s548 = smul.addr %s547, 64
          %s549 = scalar_lea.hbm %s10, %s548
          %s550 = sshll.u32 %s543, 4
          %s551 = int_to_ptr.vmem [resolvable:$true] %s550
          %556 = dma.hbm_to_vmem [thread:$0]  %s549, 2048, %s551, %s540, 64, 64, 4
        $region60: #{transformer_forward.1} parent=15 // pred_fallthru
          _
        // Predicated region
        $region61: #{transformer_forward.1} parent=15 // pred_check
          %p557 = pneg %p351
        $region62: #{transformer_forward.1} parent=15 // pred_check_branch
          %559 = sbr.rel (%p557) target = $region64
        $region63: #{transformer_forward.1} parent=15 // pred_region
          %s560 = sand.u32 %s33, 1
          %s561 = scalar_lea.sflag [#allocation12], %s560
          %s562 = sand.u32 %s341, 1
          %s563 = scalar_lea.vmem [#allocation13], %s562
          %s565 = ssub.s32 16, 16
          %566 = vsyncadd %s561, %s565
          %s567 = smul.addr %s41, 16
          %s568 = scalar_lea.hbm %s11, %s567
          %s570 = sshll.u32 %s563, 4
          %s571 = int_to_ptr.vmem [resolvable:$true] %s570
          %573 = dma.hbm_to_vmem [thread:$0]  %s568, 16, %s571, %s561
        $region64: #{transformer_forward.1} parent=15 // pred_fallthru
          _
      $region16: #{transformer_forward.1} parent=5 // pred_fallthru
        _
      %p574 = scmp.le.s32.totalorder 1, %s33
      %p575 = scmp.lt.s32.totalorder %s33, 5
      %p576 = pnand %p574, %p575
      %p577 = pneg %p576
      // Predicated region
      $region65: #{transformer_forward.1} parent=5 // pred_check
        _
      $region66: #{transformer_forward.1} parent=5 // pred_check_branch
        %579 = sbr.rel (%p576) target = $region68
      $region67: #{transformer_forward.1} parent=5 // pred_region
        %s580 = ssub.s32 %s33, 1
        %s581 = sand.u32 %s58, 1
        %s582 = scalar_lea.sflag [#allocation3], %s581
        %s583 = sand.u32 %s58, 1
        %s584 = smul.addr %s583, 64
        %s585 = scalar_lea.vmem [#allocation2], %s584
        // Predicated region
        $region69: #{transformer_forward.1} parent=67 // pred_check
          %p586 = pneg %p71
        $region70: #{transformer_forward.1} parent=67 // pred_check_branch
          %588 = sbr.rel (%p586) target = $region72
        $region71: #{transformer_forward.1} parent=67 // pred_region
          %589 = dma.done %s582, 1024
        $region72: #{transformer_forward.1} parent=67 // pred_fallthru
          _
        %s590 = sand.u32 %s38, 1
        %s591 = scalar_lea.sflag [#allocation6], %s590
        %s592 = sand.u32 %s136, 1
        %s593 = smul.addr %s592, 768
        %s594 = scalar_lea.vmem [#allocation5], %s593
        // Predicated region
        $region73: #{transformer_forward.1} parent=67 // pred_check
          %p595 = pneg %p149
        $region74: #{transformer_forward.1} parent=67 // pred_check_branch
          %597 = sbr.rel (%p595) target = $region76
        $region75: #{transformer_forward.1} parent=67 // pred_region
          %598 = dma.done %s591, 12288
        $region76: #{transformer_forward.1} parent=67 // pred_fallthru
          _
        %s599 = sand.u32 %s38, 1
        %s600 = scalar_lea.sflag [#allocation6], %s599
        %s601 = sand.u32 %s162, 1
        %s602 = smul.addr %s601, 256
        %s603 = scalar_lea.vmem [#allocation7], %s602
        // Predicated region
        $region77: #{transformer_forward.1} parent=67 // pred_check
          %p604 = pneg %p175
        $region78: #{transformer_forward.1} parent=67 // pred_check_branch
          %606 = sbr.rel (%p604) target = $region80
        $region79: #{transformer_forward.1} parent=67 // pred_region
          %607 = dma.done %s600, 4096
        $region80: #{transformer_forward.1} parent=67 // pred_fallthru
          _
        %s608 = sand.u32 %s38, 1
        %s609 = scalar_lea.sflag [#allocation9], %s608
        %s610 = sand.u32 %s266, 1
        %s611 = smul.addr %s610, 128
        %s612 = scalar_lea.vmem [#allocation8], %s611
        // Predicated region
        $region81: #{transformer_forward.1} parent=67 // pred_check
          %p613 = pneg %p279
        $region82: #{transformer_forward.1} parent=67 // pred_check_branch
          %615 = sbr.rel (%p613) target = $region84
        $region83: #{transformer_forward.1} parent=67 // pred_region
          %616 = dma.done %s609, 2048
        $region84: #{transformer_forward.1} parent=67 // pred_fallthru
          _
        %s617 = sand.u32 %s38, 1
        %s618 = scalar_lea.sflag [#allocation9], %s617
        %s619 = sand.u32 %s292, 1
        %s620 = smul.addr %s619, 2
        %s621 = scalar_lea.vmem [#allocation10], %s620
        // Predicated region
        $region85: #{transformer_forward.1} parent=67 // pred_check
          %p622 = pneg %p305
        $region86: #{transformer_forward.1} parent=67 // pred_check_branch
          %624 = sbr.rel (%p622) target = $region88
        $region87: #{transformer_forward.1} parent=67 // pred_region
          %625 = dma.done %s618, 32
        $region88: #{transformer_forward.1} parent=67 // pred_fallthru
          _
        %s626 = sand.u32 %s38, 1
        %s627 = scalar_lea.sflag [#allocation12], %s626
        %s628 = sand.u32 %s318, 1
        %s629 = smul.addr %s628, 128
        %s630 = scalar_lea.vmem [#allocation11], %s629
        // Predicated region
        $region89: #{transformer_forward.1} parent=67 // pred_check
          %p631 = pneg %p331
        $region90: #{transformer_forward.1} parent=67 // pred_check_branch
          %633 = sbr.rel (%p631) target = $region92
        $region91: #{transformer_forward.1} parent=67 // pred_region
          %634 = dma.done %s627, 2048
        $region92: #{transformer_forward.1} parent=67 // pred_fallthru
          _
        %s635 = sand.u32 %s38, 1
        %s636 = scalar_lea.sflag [#allocation12], %s635
        %s637 = sand.u32 %s344, 1
        %s638 = scalar_lea.vmem [#allocation13], %s637
        // Predicated region
        $region93: #{transformer_forward.1} parent=67 // pred_check
          %p639 = pneg %p357
        $region94: #{transformer_forward.1} parent=67 // pred_check_branch
          %641 = sbr.rel (%p639) target = $region96
        $region95: #{transformer_forward.1} parent=67 // pred_region
          %642 = dma.done %s636, 16
        $region96: #{transformer_forward.1} parent=67 // pred_fallthru
          _
        %s643 = sand.u32 %s58, 1
        %s644 = scalar_lea.sflag [#allocation3], %s643
        %s645 = sand.u32 %s58, 1
        %s646 = smul.addr %s645, 64
        %s647 = scalar_lea.vmem [#allocation2], %s646
        %p648 = pneg %p71
        %p649 = pneg %p68
        %p650 = scmp.lt.s32.totalorder %s43, 1
        %s651 = scalar_select %p650, %s43, 1
        %s652 = scalar_lea.vmem %s1, %s651
        %p653 = pneg %p97
        %p654 = pneg %p94
        %p655 = scmp.lt.s32.totalorder %s43, 1
        %s656 = scalar_select %p655, %s43, 1
        %s657 = scalar_lea.vmem %s2, %s656
        %p658 = pneg %p123
        %p659 = pneg %p120
        %s660 = sand.u32 %s38, 1
        %s661 = scalar_lea.sflag [#allocation6], %s660
        %s662 = sand.u32 %s136, 1
        %s663 = smul.addr %s662, 768
        %s664 = scalar_lea.vmem [#allocation5], %s663
        %p665 = pneg %p149
        %p666 = pneg %p146
        %s667 = sand.u32 %s38, 1
        %s668 = scalar_lea.sflag [#allocation6], %s667
        %s669 = sand.u32 %s162, 1
        %s670 = smul.addr %s669, 256
        %s671 = scalar_lea.vmem [#allocation7], %s670
        %p672 = pneg %p175
        %p673 = pneg %p172
        %p674 = scmp.lt.s32.totalorder %s43, 1
        %s675 = scalar_select %p674, %s43, 1
        %s676 = scalar_lea.vmem %s5, %s675
        %p677 = pneg %p201
        %p678 = pneg %p198
        %p679 = scmp.lt.s32.totalorder %s43, 1
        %s680 = scalar_select %p679, %s43, 1
        %s681 = scalar_lea.vmem %s6, %s680
        %p682 = pneg %p227
        %p683 = pneg %p224
        %p684 = scmp.lt.s32.totalorder %s43, 1
        %s685 = scalar_select %p684, %s43, 1
        %s686 = scalar_lea.vmem %s7, %s685
        %p687 = pneg %p253
        %p688 = pneg %p250
        %s689 = sand.u32 %s38, 1
        %s690 = scalar_lea.sflag [#allocation9], %s689
        %s691 = sand.u32 %s266, 1
        %s692 = smul.addr %s691, 128
        %s693 = scalar_lea.vmem [#allocation8], %s692
        %p694 = pneg %p279
        %p695 = pneg %p276
        %s696 = sand.u32 %s38, 1
        %s697 = scalar_lea.sflag [#allocation9], %s696
        %s698 = sand.u32 %s292, 1
        %s699 = smul.addr %s698, 2
        %s700 = scalar_lea.vmem [#allocation10], %s699
        %p701 = pneg %p305
        %p702 = pneg %p302
        %s703 = sand.u32 %s38, 1
        %s704 = scalar_lea.sflag [#allocation12], %s703
        %s705 = sand.u32 %s318, 1
        %s706 = smul.addr %s705, 128
        %s707 = scalar_lea.vmem [#allocation11], %s706
        %p708 = pneg %p331
        %p709 = pneg %p328
        %s710 = sand.u32 %s38, 1
        %s711 = scalar_lea.sflag [#allocation12], %s710
        %s712 = sand.u32 %s344, 1
        %s713 = scalar_lea.vmem [#allocation13], %s712
        %p714 = pneg %p357
        %p715 = pneg %p354
        %p716 = pneg %p383
        %p717 = pneg %p380
        %s718 = sand.u32 %s370, 1
        %s719 = scalar_lea.sflag [#allocation4], %s718
        %s720 = sand.u32 %s370, 1
        %s721 = smul.addr %s720, 64
        %s722 = scalar_lea.vmem [#allocation14], %s721
        %s723 = smul.u32 4, %s42
        %p724 = scmp.lt.s32.totalorder %s43, 1
        %s725 = scalar_select %p724, %s43, 1
        %s726 = scalar_lea.vmem %s1, %s725
        %p727 = scmp.lt.s32.totalorder %s43, 1
        %s728 = scalar_select %p727, %s43, 1
        %s729 = scalar_lea.vmem %s2, %s728
        %p730 = scmp.lt.s32.totalorder %s43, 1
        %s731 = scalar_select %p730, %s43, 1
        %s732 = scalar_lea.vmem %s5, %s731
        %p733 = scmp.lt.s32.totalorder %s43, 1
        %s734 = scalar_select %p733, %s43, 1
        %s735 = scalar_lea.vmem %s6, %s734
        %p736 = scmp.lt.s32.totalorder %s43, 1
        %s737 = scalar_select %p736, %s43, 1
        %s738 = scalar_lea.vmem %s7, %s737
        %s739 = smul.u32 4, %s42
        %p741 = scmp.eq.s32.totalorder %s43, 0
        // Predicated region
        $region97: #{transformer_forward.1} parent=67 // pred_check
          %p742 = pneg %p741
        $region98: #{transformer_forward.1} parent=67 // pred_check_branch
          %744 = sbr.rel (%p742) target = $region100
        $region99: #{transformer_forward.1} parent=67 // pred_region
          %v745 = vld [vmem:[%s585] sm:$0xff]
          %v746 = vld [vmem:[%s585 + $0x8] sm:$0xff]
          %v747 = vld [vmem:[%s585 + $0x10] sm:$0xff]
          %v748 = vld [vmem:[%s585 + $0x18] sm:$0xff]
          %v749 = vld [vmem:[%s585 + $0x20] sm:$0xff]
          %v750 = vld [vmem:[%s585 + $0x28] sm:$0xff]
          %v751 = vld [vmem:[%s585 + $0x30] sm:$0xff]
          %v752 = vld [vmem:[%s585 + $0x38] sm:$0xff]
          %753 = vst [vmem:[%s722] sm:$0xff] %v745
          %754 = vst [vmem:[%s722 + $0x8] sm:$0xff] %v746
          %755 = vst [vmem:[%s722 + $0x10] sm:$0xff] %v747
          %756 = vst [vmem:[%s722 + $0x18] sm:$0xff] %v748
          %757 = vst [vmem:[%s722 + $0x20] sm:$0xff] %v749
          %758 = vst [vmem:[%s722 + $0x28] sm:$0xff] %v750
          %759 = vst [vmem:[%s722 + $0x30] sm:$0xff] %v751
          %760 = vst [vmem:[%s722 + $0x38] sm:$0xff] %v752
        $region100: #{transformer_forward.1} parent=67 // pred_fallthru
          _
        %v761 = vld [vmem:[%s722] sm:$0xff]
        %v762 = vld [vmem:[%s722 + $0x8] sm:$0xff]
        %v763 = vld [vmem:[%s722 + $0x10] sm:$0xff]
        %v764 = vld [vmem:[%s722 + $0x18] sm:$0xff]
        %v765 = vld [vmem:[%s722 + $0x20] sm:$0xff]
        %v766 = vld [vmem:[%s722 + $0x28] sm:$0xff]
        %v767 = vld [vmem:[%s722 + $0x30] sm:$0xff]
        %v768 = vld [vmem:[%s722 + $0x38] sm:$0xff]
        %769 = vadd.xlane.f32.xlu0 %v761
        %v770 = vpop.xlane.xlu0 %769
        %771 = vadd.xlane.f32.xlu0 %v762
        %v772 = vpop.xlane.xlu0 %771
        %773 = vadd.xlane.f32.xlu0 %v763
        %v774 = vpop.xlane.xlu0 %773
        %775 = vadd.xlane.f32.xlu0 %v764
        %v776 = vpop.xlane.xlu0 %775
        %777 = vadd.xlane.f32.xlu0 %v765
        %v778 = vpop.xlane.xlu0 %777
        %779 = vadd.xlane.f32.xlu0 %v766
        %v780 = vpop.xlane.xlu0 %779
        %781 = vadd.xlane.f32.xlu0 %v767
        %v782 = vpop.xlane.xlu0 %781
        %783 = vadd.xlane.f32.xlu0 %v768
        %v784 = vpop.xlane.xlu0 %783
        %v785 = vrcp.pop 128.0
        %v786 = vmul.f32 %v770, %v785
        %v787 = vmul.f32 %v772, %v785
        %v788 = vmul.f32 %v774, %v785
        %v789 = vmul.f32 %v776, %v785
        %v790 = vmul.f32 %v778, %v785
        %v791 = vmul.f32 %v780, %v785
        %v792 = vmul.f32 %v782, %v785
        %v793 = vmul.f32 %v784, %v785
        %v794 = vsub.f32 %v761, %v786
        %v795 = vsub.f32 %v762, %v787
        %v796 = vsub.f32 %v763, %v788
        %v797 = vsub.f32 %v764, %v789
        %v798 = vsub.f32 %v765, %v790
        %v799 = vsub.f32 %v766, %v791
        %v800 = vsub.f32 %v767, %v792
        %v801 = vsub.f32 %v768, %v793
        %v802 = vmul.f32 %v794, %v794
        %v803 = vmul.f32 %v795, %v795
        %v804 = vmul.f32 %v796, %v796
        %v805 = vmul.f32 %v797, %v797
        %v806 = vmul.f32 %v798, %v798
        %v807 = vmul.f32 %v799, %v799
        %v808 = vmul.f32 %v800, %v800
        %v809 = vmul.f32 %v801, %v801
        %810 = vadd.xlane.f32.xlu0 %v802
        %v811 = vpop.xlane.xlu0 %810
        %812 = vadd.xlane.f32.xlu0 %v803
        %v813 = vpop.xlane.xlu0 %812
        %814 = vadd.xlane.f32.xlu0 %v804
        %v815 = vpop.xlane.xlu0 %814
        %816 = vadd.xlane.f32.xlu0 %v805
        %v817 = vpop.xlane.xlu0 %816
        %818 = vadd.xlane.f32.xlu0 %v806
        %v819 = vpop.xlane.xlu0 %818
        %820 = vadd.xlane.f32.xlu0 %v807
        %v821 = vpop.xlane.xlu0 %820
        %822 = vadd.xlane.f32.xlu0 %v808
        %v823 = vpop.xlane.xlu0 %822
        %824 = vadd.xlane.f32.xlu0 %v809
        %v825 = vpop.xlane.xlu0 %824
        %v826 = vmul.f32 %v811, %v785
        %v827 = vmul.f32 %v813, %v785
        %v828 = vmul.f32 %v815, %v785
        %v829 = vmul.f32 %v817, %v785
        %v830 = vmul.f32 %v819, %v785
        %v831 = vmul.f32 %v821, %v785
        %v832 = vmul.f32 %v823, %v785
        %v833 = vmul.f32 %v825, %v785
        %v834 = vadd.f32 %v826, 1e-05
        %v835 = vadd.f32 %v827, 1e-05
        %v836 = vadd.f32 %v828, 1e-05
        %v837 = vadd.f32 %v829, 1e-05
        %v838 = vadd.f32 %v830, 1e-05
        %v839 = vadd.f32 %v831, 1e-05
        %v840 = vadd.f32 %v832, 1e-05
        %v841 = vadd.f32 %v833, 1e-05
        %v842 = vrsqrt.pop %v834
        %v843 = vrsqrt.pop %v835
        %v844 = vrsqrt.pop %v836
        %v845 = vrsqrt.pop %v837
        %v846 = vrsqrt.pop %v838
        %v847 = vrsqrt.pop %v839
        %v848 = vrsqrt.pop %v840
        %v849 = vrsqrt.pop %v841
        %v850 = vmul.f32 %v794, %v842
        %v851 = vmul.f32 %v795, %v843
        %v852 = vmul.f32 %v796, %v844
        %v853 = vmul.f32 %v797, %v845
        %v854 = vmul.f32 %v798, %v846
        %v855 = vmul.f32 %v799, %v847
        %v856 = vmul.f32 %v800, %v848
        %v857 = vmul.f32 %v801, %v849
        %v858 = vld [vmem:[%s726] sm:$0x1]
        %v860 = vlaneseq
        %v861 = vshrl.u32 %v860, 7
        %v862 = vsub.s32 0, %v861
        %v863 = vrot.slane %v858, %v862
        %v865 = vmul.f32 %v850, %v863
        %v866 = vmul.f32 %v851, %v863
        %v867 = vmul.f32 %v852, %v863
        %v868 = vmul.f32 %v853, %v863
        %v869 = vmul.f32 %v854, %v863
        %v870 = vmul.f32 %v855, %v863
        %v871 = vmul.f32 %v856, %v863
        %v872 = vmul.f32 %v857, %v863
        %v873 = vld [vmem:[%s729] sm:$0x1]
        %v875 = vlaneseq
        %v876 = vshrl.u32 %v875, 7
        %v877 = vsub.s32 0, %v876
        %v878 = vrot.slane %v873, %v877
        %v880 = vadd.f32 %v865, %v878
        %v881 = vadd.f32 %v866, %v878
        %v882 = vadd.f32 %v867, %v878
        %v883 = vadd.f32 %v868, %v878
        %v884 = vadd.f32 %v869, %v878
        %v885 = vadd.f32 %v870, %v878
        %v886 = vadd.f32 %v871, %v878
        %v887 = vadd.f32 %v872, %v878
        %v888 = vpack.c.bf16 %v881, %v880
        %v889 = vpack.c.bf16 %v883, %v882
        %v890 = vpack.c.bf16 %v885, %v884
        %v891 = vpack.c.bf16 %v887, %v886
        %v892 = vld [vmem:[%s594] sm:$0xff]
        %v893 = vld [vmem:[%s594 + $0x8] sm:$0xff]
        %v894 = vld [vmem:[%s594 + $0x10] sm:$0xff]
        %v895 = vld [vmem:[%s594 + $0x18] sm:$0xff]
        %v896 = vld [vmem:[%s594 + $0x20] sm:$0xff]
        %v897 = vld [vmem:[%s594 + $0x28] sm:$0xff]
        %v898 = vld [vmem:[%s594 + $0x30] sm:$0xff]
        %v899 = vld [vmem:[%s594 + $0x38] sm:$0xff]
        %v900 = vld [vmem:[%s594 + $0x40] sm:$0xff]
        %v901 = vld [vmem:[%s594 + $0x48] sm:$0xff]
        %v902 = vld [vmem:[%s594 + $0x50] sm:$0xff]
        %v903 = vld [vmem:[%s594 + $0x58] sm:$0xff]
        %v904 = vld [vmem:[%s594 + $0x60] sm:$0xff]
        %v905 = vld [vmem:[%s594 + $0x68] sm:$0xff]
        %v906 = vld [vmem:[%s594 + $0x70] sm:$0xff]
        %v907 = vld [vmem:[%s594 + $0x78] sm:$0xff]
        %v908 = vld [vmem:[%s594 + $0x80] sm:$0xff]
        %v909 = vld [vmem:[%s594 + $0x88] sm:$0xff]
        %v910 = vld [vmem:[%s594 + $0x90] sm:$0xff]
        %v911 = vld [vmem:[%s594 + $0x98] sm:$0xff]
        %v912 = vld [vmem:[%s594 + $0xa0] sm:$0xff]
        %v913 = vld [vmem:[%s594 + $0xa8] sm:$0xff]
        %v914 = vld [vmem:[%s594 + $0xb0] sm:$0xff]
        %v915 = vld [vmem:[%s594 + $0xb8] sm:$0xff]
        %v916 = vld [vmem:[%s594 + $0xc0] sm:$0xff]
        %v917 = vld [vmem:[%s594 + $0xc8] sm:$0xff]
        %v918 = vld [vmem:[%s594 + $0xd0] sm:$0xff]
        %v919 = vld [vmem:[%s594 + $0xd8] sm:$0xff]
        %v920 = vld [vmem:[%s594 + $0xe0] sm:$0xff]
        %v921 = vld [vmem:[%s594 + $0xe8] sm:$0xff]
        %v922 = vld [vmem:[%s594 + $0xf0] sm:$0xff]
        %v923 = vld [vmem:[%s594 + $0xf8] sm:$0xff]
        %v924 = vld [vmem:[%s594 + $0x100] sm:$0xff]
        %v925 = vld [vmem:[%s594 + $0x108] sm:$0xff]
        %v926 = vld [vmem:[%s594 + $0x110] sm:$0xff]
        %v927 = vld [vmem:[%s594 + $0x118] sm:$0xff]
        %v928 = vld [vmem:[%s594 + $0x120] sm:$0xff]
        %v929 = vld [vmem:[%s594 + $0x128] sm:$0xff]
        %v930 = vld [vmem:[%s594 + $0x130] sm:$0xff]
        %v931 = vld [vmem:[%s594 + $0x138] sm:$0xff]
        %v932 = vld [vmem:[%s594 + $0x140] sm:$0xff]
        %v933 = vld [vmem:[%s594 + $0x148] sm:$0xff]
        %v934 = vld [vmem:[%s594 + $0x150] sm:$0xff]
        %v935 = vld [vmem:[%s594 + $0x158] sm:$0xff]
        %v936 = vld [vmem:[%s594 + $0x160] sm:$0xff]
        %v937 = vld [vmem:[%s594 + $0x168] sm:$0xff]
        %v938 = vld [vmem:[%s594 + $0x170] sm:$0xff]
        %v939 = vld [vmem:[%s594 + $0x178] sm:$0xff]
        %v940 = vld [vmem:[%s594 + $0x180] sm:$0xff]
        %v941 = vld [vmem:[%s594 + $0x188] sm:$0xff]
        %v942 = vld [vmem:[%s594 + $0x190] sm:$0xff]
        %v943 = vld [vmem:[%s594 + $0x198] sm:$0xff]
        %v944 = vld [vmem:[%s594 + $0x1a0] sm:$0xff]
        %v945 = vld [vmem:[%s594 + $0x1a8] sm:$0xff]
        %v946 = vld [vmem:[%s594 + $0x1b0] sm:$0xff]
        %v947 = vld [vmem:[%s594 + $0x1b8] sm:$0xff]
        %v948 = vld [vmem:[%s594 + $0x1c0] sm:$0xff]
        %v949 = vld [vmem:[%s594 + $0x1c8] sm:$0xff]
        %v950 = vld [vmem:[%s594 + $0x1d0] sm:$0xff]
        %v951 = vld [vmem:[%s594 + $0x1d8] sm:$0xff]
        %v952 = vld [vmem:[%s594 + $0x1e0] sm:$0xff]
        %v953 = vld [vmem:[%s594 + $0x1e8] sm:$0xff]
        %v954 = vld [vmem:[%s594 + $0x1f0] sm:$0xff]
        %v955 = vld [vmem:[%s594 + $0x1f8] sm:$0xff]
        %v956 = vld [vmem:[%s594 + $0x200] sm:$0xff]
        %v957 = vld [vmem:[%s594 + $0x208] sm:$0xff]
        %v958 = vld [vmem:[%s594 + $0x210] sm:$0xff]
        %v959 = vld [vmem:[%s594 + $0x218] sm:$0xff]
        %v960 = vld [vmem:[%s594 + $0x220] sm:$0xff]
        %v961 = vld [vmem:[%s594 + $0x228] sm:$0xff]
        %v962 = vld [vmem:[%s594 + $0x230] sm:$0xff]
        %v963 = vld [vmem:[%s594 + $0x238] sm:$0xff]
        %v964 = vld [vmem:[%s594 + $0x240] sm:$0xff]
        %v965 = vld [vmem:[%s594 + $0x248] sm:$0xff]
        %v966 = vld [vmem:[%s594 + $0x250] sm:$0xff]
        %v967 = vld [vmem:[%s594 + $0x258] sm:$0xff]
        %v968 = vld [vmem:[%s594 + $0x260] sm:$0xff]
        %v969 = vld [vmem:[%s594 + $0x268] sm:$0xff]
        %v970 = vld [vmem:[%s594 + $0x270] sm:$0xff]
        %v971 = vld [vmem:[%s594 + $0x278] sm:$0xff]
        %v972 = vld [vmem:[%s594 + $0x280] sm:$0xff]
        %v973 = vld [vmem:[%s594 + $0x288] sm:$0xff]
        %v974 = vld [vmem:[%s594 + $0x290] sm:$0xff]
        %v975 = vld [vmem:[%s594 + $0x298] sm:$0xff]
        %v976 = vld [vmem:[%s594 + $0x2a0] sm:$0xff]
        %v977 = vld [vmem:[%s594 + $0x2a8] sm:$0xff]
        %v978 = vld [vmem:[%s594 + $0x2b0] sm:$0xff]
        %v979 = vld [vmem:[%s594 + $0x2b8] sm:$0xff]
        %v980 = vld [vmem:[%s594 + $0x2c0] sm:$0xff]
        %v981 = vld [vmem:[%s594 + $0x2c8] sm:$0xff]
        %v982 = vld [vmem:[%s594 + $0x2d0] sm:$0xff]
        %v983 = vld [vmem:[%s594 + $0x2d8] sm:$0xff]
        %v984 = vld [vmem:[%s594 + $0x2e0] sm:$0xff]
        %v985 = vld [vmem:[%s594 + $0x2e8] sm:$0xff]
        %v986 = vld [vmem:[%s594 + $0x2f0] sm:$0xff]
        %v987 = vld [vmem:[%s594 + $0x2f8] sm:$0xff]
        %v1084 = vunpack.c.l.b16 %v892
        %v1085 = vunpack.c.h.b16 %v892
        %v1086 = vunpack.c.l.b16 %v893
        %v1087 = vunpack.c.h.b16 %v893
        %v1088 = vunpack.c.l.b16 %v894
        %v1089 = vunpack.c.h.b16 %v894
        %v1090 = vunpack.c.l.b16 %v895
        %v1091 = vunpack.c.h.b16 %v895
        %v1092 = vunpack.c.l.b16 %v896
        %v1093 = vunpack.c.h.b16 %v896
        %v1094 = vunpack.c.l.b16 %v897
        %v1095 = vunpack.c.h.b16 %v897
        %v1096 = vunpack.c.l.b16 %v898
        %v1097 = vunpack.c.h.b16 %v898
        %v1098 = vunpack.c.l.b16 %v899
        %v1099 = vunpack.c.h.b16 %v899
        %v1100 = vunpack.c.l.b16 %v900
        %v1101 = vunpack.c.h.b16 %v900
        %v1102 = vunpack.c.l.b16 %v901
        %v1103 = vunpack.c.h.b16 %v901
        %v1104 = vunpack.c.l.b16 %v902
        %v1105 = vunpack.c.h.b16 %v902
        %v1106 = vunpack.c.l.b16 %v903
        %v1107 = vunpack.c.h.b16 %v903
        %v1108 = vunpack.c.l.b16 %v904
        %v1109 = vunpack.c.h.b16 %v904
        %v1110 = vunpack.c.l.b16 %v905
        %v1111 = vunpack.c.h.b16 %v905
        %v1112 = vunpack.c.l.b16 %v906
        %v1113 = vunpack.c.h.b16 %v906
        %v1114 = vunpack.c.l.b16 %v907
        %v1115 = vunpack.c.h.b16 %v907
        %v1116 = vunpack.c.l.b16 %v908
        %v1117 = vunpack.c.h.b16 %v908
        %v1118 = vunpack.c.l.b16 %v909
        %v1119 = vunpack.c.h.b16 %v909
        %v1120 = vunpack.c.l.b16 %v910
        %v1121 = vunpack.c.h.b16 %v910
        %v1122 = vunpack.c.l.b16 %v911
        %v1123 = vunpack.c.h.b16 %v911
        %v1124 = vunpack.c.l.b16 %v912
        %v1125 = vunpack.c.h.b16 %v912
        %v1126 = vunpack.c.l.b16 %v913
        %v1127 = vunpack.c.h.b16 %v913
        %v1128 = vunpack.c.l.b16 %v914
        %v1129 = vunpack.c.h.b16 %v914
        %v1130 = vunpack.c.l.b16 %v915
        %v1131 = vunpack.c.h.b16 %v915
        %v1132 = vunpack.c.l.b16 %v916
        %v1133 = vunpack.c.h.b16 %v916
        %v1134 = vunpack.c.l.b16 %v917
        %v1135 = vunpack.c.h.b16 %v917
        %v1136 = vunpack.c.l.b16 %v918
        %v1137 = vunpack.c.h.b16 %v918
        %v1138 = vunpack.c.l.b16 %v919
        %v1139 = vunpack.c.h.b16 %v919
        %v1140 = vunpack.c.l.b16 %v920
        %v1141 = vunpack.c.h.b16 %v920
        %v1142 = vunpack.c.l.b16 %v921
        %v1143 = vunpack.c.h.b16 %v921
        %v1144 = vunpack.c.l.b16 %v922
        %v1145 = vunpack.c.h.b16 %v922
        %v1146 = vunpack.c.l.b16 %v923
        %v1147 = vunpack.c.h.b16 %v923
        %v1148 = vunpack.c.l.b16 %v924
        %v1149 = vunpack.c.h.b16 %v924
        %v1150 = vunpack.c.l.b16 %v925
        %v1151 = vunpack.c.h.b16 %v925
        %v1152 = vunpack.c.l.b16 %v926
        %v1153 = vunpack.c.h.b16 %v926
        %v1154 = vunpack.c.l.b16 %v927
        %v1155 = vunpack.c.h.b16 %v927
        %v1156 = vunpack.c.l.b16 %v928
        %v1157 = vunpack.c.h.b16 %v928
        %v1158 = vunpack.c.l.b16 %v929
        %v1159 = vunpack.c.h.b16 %v929
        %v1160 = vunpack.c.l.b16 %v930
        %v1161 = vunpack.c.h.b16 %v930
        %v1162 = vunpack.c.l.b16 %v931
        %v1163 = vunpack.c.h.b16 %v931
        %v1164 = vunpack.c.l.b16 %v932
        %v1165 = vunpack.c.h.b16 %v932
        %v1166 = vunpack.c.l.b16 %v933
        %v1167 = vunpack.c.h.b16 %v933
        %v1168 = vunpack.c.l.b16 %v934
        %v1169 = vunpack.c.h.b16 %v934
        %v1170 = vunpack.c.l.b16 %v935
        %v1171 = vunpack.c.h.b16 %v935
        %v1172 = vunpack.c.l.b16 %v936
        %v1173 = vunpack.c.h.b16 %v936
        %v1174 = vunpack.c.l.b16 %v937
        %v1175 = vunpack.c.h.b16 %v937
        %v1176 = vunpack.c.l.b16 %v938
        %v1177 = vunpack.c.h.b16 %v938
        %v1178 = vunpack.c.l.b16 %v939
        %v1179 = vunpack.c.h.b16 %v939
        %v1180 = vunpack.c.l.b16 %v940
        %v1181 = vunpack.c.h.b16 %v940
        %v1182 = vunpack.c.l.b16 %v941
        %v1183 = vunpack.c.h.b16 %v941
        %v1184 = vunpack.c.l.b16 %v942
        %v1185 = vunpack.c.h.b16 %v942
        %v1186 = vunpack.c.l.b16 %v943
        %v1187 = vunpack.c.h.b16 %v943
        %v1188 = vunpack.c.l.b16 %v944
        %v1189 = vunpack.c.h.b16 %v944
        %v1190 = vunpack.c.l.b16 %v945
        %v1191 = vunpack.c.h.b16 %v945
        %v1192 = vunpack.c.l.b16 %v946
        %v1193 = vunpack.c.h.b16 %v946
        %v1194 = vunpack.c.l.b16 %v947
        %v1195 = vunpack.c.h.b16 %v947
        %v1196 = vunpack.c.l.b16 %v948
        %v1197 = vunpack.c.h.b16 %v948
        %v1198 = vunpack.c.l.b16 %v949
        %v1199 = vunpack.c.h.b16 %v949
        %v1200 = vunpack.c.l.b16 %v950
        %v1201 = vunpack.c.h.b16 %v950
        %v1202 = vunpack.c.l.b16 %v951
        %v1203 = vunpack.c.h.b16 %v951
        %v1204 = vunpack.c.l.b16 %v952
        %v1205 = vunpack.c.h.b16 %v952
        %v1206 = vunpack.c.l.b16 %v953
        %v1207 = vunpack.c.h.b16 %v953
        %v1208 = vunpack.c.l.b16 %v954
        %v1209 = vunpack.c.h.b16 %v954
        %v1210 = vunpack.c.l.b16 %v955
        %v1211 = vunpack.c.h.b16 %v955
        %v1212 = vunpack.c.l.b16 %v956
        %v1213 = vunpack.c.h.b16 %v956
        %v1214 = vunpack.c.l.b16 %v957
        %v1215 = vunpack.c.h.b16 %v957
        %v1216 = vunpack.c.l.b16 %v958
        %v1217 = vunpack.c.h.b16 %v958
        %v1218 = vunpack.c.l.b16 %v959
        %v1219 = vunpack.c.h.b16 %v959
        %v1220 = vunpack.c.l.b16 %v960
        %v1221 = vunpack.c.h.b16 %v960
        %v1222 = vunpack.c.l.b16 %v961
        %v1223 = vunpack.c.h.b16 %v961
        %v1224 = vunpack.c.l.b16 %v962
        %v1225 = vunpack.c.h.b16 %v962
        %v1226 = vunpack.c.l.b16 %v963
        %v1227 = vunpack.c.h.b16 %v963
        %v1228 = vunpack.c.l.b16 %v964
        %v1229 = vunpack.c.h.b16 %v964
        %v1230 = vunpack.c.l.b16 %v965
        %v1231 = vunpack.c.h.b16 %v965
        %v1232 = vunpack.c.l.b16 %v966
        %v1233 = vunpack.c.h.b16 %v966
        %v1234 = vunpack.c.l.b16 %v967
        %v1235 = vunpack.c.h.b16 %v967
        %v1236 = vunpack.c.l.b16 %v968
        %v1237 = vunpack.c.h.b16 %v968
        %v1238 = vunpack.c.l.b16 %v969
        %v1239 = vunpack.c.h.b16 %v969
        %v1240 = vunpack.c.l.b16 %v970
        %v1241 = vunpack.c.h.b16 %v970
        %v1242 = vunpack.c.l.b16 %v971
        %v1243 = vunpack.c.h.b16 %v971
        %v1244 = vunpack.c.l.b16 %v972
        %v1245 = vunpack.c.h.b16 %v972
        %v1246 = vunpack.c.l.b16 %v973
        %v1247 = vunpack.c.h.b16 %v973
        %v1248 = vunpack.c.l.b16 %v974
        %v1249 = vunpack.c.h.b16 %v974
        %v1250 = vunpack.c.l.b16 %v975
        %v1251 = vunpack.c.h.b16 %v975
        %v1252 = vunpack.c.l.b16 %v976
        %v1253 = vunpack.c.h.b16 %v976
        %v1254 = vunpack.c.l.b16 %v977
        %v1255 = vunpack.c.h.b16 %v977
        %v1256 = vunpack.c.l.b16 %v978
        %v1257 = vunpack.c.h.b16 %v978
        %v1258 = vunpack.c.l.b16 %v979
        %v1259 = vunpack.c.h.b16 %v979
        %v1260 = vunpack.c.l.b16 %v980
        %v1261 = vunpack.c.h.b16 %v980
        %v1262 = vunpack.c.l.b16 %v981
        %v1263 = vunpack.c.h.b16 %v981
        %v1264 = vunpack.c.l.b16 %v982
        %v1265 = vunpack.c.h.b16 %v982
        %v1266 = vunpack.c.l.b16 %v983
        %v1267 = vunpack.c.h.b16 %v983
        %v1268 = vunpack.c.l.b16 %v984
        %v1269 = vunpack.c.h.b16 %v984
        %v1270 = vunpack.c.l.b16 %v985
        %v1271 = vunpack.c.h.b16 %v985
        %v1272 = vunpack.c.l.b16 %v986
        %v1273 = vunpack.c.h.b16 %v986
        %v1274 = vunpack.c.l.b16 %v987
        %v1275 = vunpack.c.h.b16 %v987
        %v1276 = vpack.c.b16 %v1096, %v1084
        %v1277 = vpack.c.b16 %v1097, %v1085
        %v1278 = vpack.c.b16 %v1098, %v1086
        %v1279 = vpack.c.b16 %v1099, %v1087
        %v1280 = vpack.c.b16 %v1100, %v1088
        %v1281 = vpack.c.b16 %v1101, %v1089
        %v1282 = vpack.c.b16 %v1102, %v1090
        %v1283 = vpack.c.b16 %v1103, %v1091
        %v1284 = vpack.c.b16 %v1104, %v1092
        %v1285 = vpack.c.b16 %v1105, %v1093
        %v1286 = vpack.c.b16 %v1106, %v1094
        %v1287 = vpack.c.b16 %v1107, %v1095
        %v1288 = vpack.c.b16 %v1120, %v1108
        %v1289 = vpack.c.b16 %v1121, %v1109
        %v1290 = vpack.c.b16 %v1122, %v1110
        %v1291 = vpack.c.b16 %v1123, %v1111
        %v1292 = vpack.c.b16 %v1124, %v1112
        %v1293 = vpack.c.b16 %v1125, %v1113
        %v1294 = vpack.c.b16 %v1126, %v1114
        %v1295 = vpack.c.b16 %v1127, %v1115
        %v1296 = vpack.c.b16 %v1128, %v1116
        %v1297 = vpack.c.b16 %v1129, %v1117
        %v1298 = vpack.c.b16 %v1130, %v1118
        %v1299 = vpack.c.b16 %v1131, %v1119
        %v1300 = vpack.c.b16 %v1144, %v1132
        %v1301 = vpack.c.b16 %v1145, %v1133
        %v1302 = vpack.c.b16 %v1146, %v1134
        %v1303 = vpack.c.b16 %v1147, %v1135
        %v1304 = vpack.c.b16 %v1148, %v1136
        %v1305 = vpack.c.b16 %v1149, %v1137
        %v1306 = vpack.c.b16 %v1150, %v1138
        %v1307 = vpack.c.b16 %v1151, %v1139
        %v1308 = vpack.c.b16 %v1152, %v1140
        %v1309 = vpack.c.b16 %v1153, %v1141
        %v1310 = vpack.c.b16 %v1154, %v1142
        %v1311 = vpack.c.b16 %v1155, %v1143
        %v1312 = vpack.c.b16 %v1168, %v1156
        %v1313 = vpack.c.b16 %v1169, %v1157
        %v1314 = vpack.c.b16 %v1170, %v1158
        %v1315 = vpack.c.b16 %v1171, %v1159
        %v1316 = vpack.c.b16 %v1172, %v1160
        %v1317 = vpack.c.b16 %v1173, %v1161
        %v1318 = vpack.c.b16 %v1174, %v1162
        %v1319 = vpack.c.b16 %v1175, %v1163
        %v1320 = vpack.c.b16 %v1176, %v1164
        %v1321 = vpack.c.b16 %v1177, %v1165
        %v1322 = vpack.c.b16 %v1178, %v1166
        %v1323 = vpack.c.b16 %v1179, %v1167
        %v1324 = vpack.c.b16 %v1192, %v1180
        %v1325 = vpack.c.b16 %v1193, %v1181
        %v1326 = vpack.c.b16 %v1194, %v1182
        %v1327 = vpack.c.b16 %v1195, %v1183
        %v1328 = vpack.c.b16 %v1196, %v1184
        %v1329 = vpack.c.b16 %v1197, %v1185
        %v1330 = vpack.c.b16 %v1198, %v1186
        %v1331 = vpack.c.b16 %v1199, %v1187
        %v1332 = vpack.c.b16 %v1200, %v1188
        %v1333 = vpack.c.b16 %v1201, %v1189
        %v1334 = vpack.c.b16 %v1202, %v1190
        %v1335 = vpack.c.b16 %v1203, %v1191
        %v1336 = vpack.c.b16 %v1216, %v1204
        %v1337 = vpack.c.b16 %v1217, %v1205
        %v1338 = vpack.c.b16 %v1218, %v1206
        %v1339 = vpack.c.b16 %v1219, %v1207
        %v1340 = vpack.c.b16 %v1220, %v1208
        %v1341 = vpack.c.b16 %v1221, %v1209
        %v1342 = vpack.c.b16 %v1222, %v1210
        %v1343 = vpack.c.b16 %v1223, %v1211
        %v1344 = vpack.c.b16 %v1224, %v1212
        %v1345 = vpack.c.b16 %v1225, %v1213
        %v1346 = vpack.c.b16 %v1226, %v1214
        %v1347 = vpack.c.b16 %v1227, %v1215
        %v1348 = vpack.c.b16 %v1240, %v1228
        %v1349 = vpack.c.b16 %v1241, %v1229
        %v1350 = vpack.c.b16 %v1242, %v1230
        %v1351 = vpack.c.b16 %v1243, %v1231
        %v1352 = vpack.c.b16 %v1244, %v1232
        %v1353 = vpack.c.b16 %v1245, %v1233
        %v1354 = vpack.c.b16 %v1246, %v1234
        %v1355 = vpack.c.b16 %v1247, %v1235
        %v1356 = vpack.c.b16 %v1248, %v1236
        %v1357 = vpack.c.b16 %v1249, %v1237
        %v1358 = vpack.c.b16 %v1250, %v1238
        %v1359 = vpack.c.b16 %v1251, %v1239
        %v1360 = vpack.c.b16 %v1264, %v1252
        %v1361 = vpack.c.b16 %v1265, %v1253
        %v1362 = vpack.c.b16 %v1266, %v1254
        %v1363 = vpack.c.b16 %v1267, %v1255
        %v1364 = vpack.c.b16 %v1268, %v1256
        %v1365 = vpack.c.b16 %v1269, %v1257
        %v1366 = vpack.c.b16 %v1270, %v1258
        %v1367 = vpack.c.b16 %v1271, %v1259
        %v1368 = vpack.c.b16 %v1272, %v1260
        %v1369 = vpack.c.b16 %v1273, %v1261
        %v1370 = vpack.c.b16 %v1274, %v1262
        %v1371 = vpack.c.b16 %v1275, %v1263
        %1468 = vmatprep.subr.bf16.mxu0 %v1277
        %1469 = vmatpush1.bf16.msra.mxu0 %v1276
        %1470 = vmatprep.subr.bf16.mxu0 %v1289
        %1471 = vmatpush1.bf16.msra.mxu0 %v1288
        %1472 = vmatprep.subr.bf16.mxu0 %v1301
        %1473 = vmatpush1.bf16.msra.mxu0 %v1300
        %1474 = vmatprep.subr.bf16.mxu0 %v1313
        %1475 = vmatpush1.bf16.msra.mxu0 %v1312
        %1476 = vmatprep.subr.bf16.mxu0 %v1325
        %1477 = vmatpush1.bf16.msra.mxu0 %v1324
        %1478 = vmatprep.subr.bf16.mxu0 %v1337
        %1479 = vmatpush1.bf16.msra.mxu0 %v1336
        %1480 = vmatprep.subr.bf16.mxu0 %v1349
        %1481 = vmatpush1.bf16.msra.mxu0 %v1348
        %1482 = vmatprep.subr.bf16.mxu0 %v1361
        %1483 = vmatpush1.bf16.msra.mxu0 %v1360
        %1484 = vmatprep.subr.bf16.mxu0 0
        %1485 = vmatpush1.bf16.msra.mxu0 0
        %1486 = vmatprep.subr.bf16.mxu0 0
        %1487 = vmatpush1.bf16.msra.mxu0 0
        %1488 = vmatprep.subr.bf16.mxu0 0
        %1489 = vmatpush1.bf16.msra.mxu0 0
        %1490 = vmatprep.subr.bf16.mxu0 0
        %1491 = vmatpush1.bf16.msra.mxu0 0
        %1492 = vmatprep.subr.bf16.mxu0 0
        %1493 = vmatpush1.bf16.msra.mxu0 0
        %1494 = vmatprep.subr.bf16.mxu0 0
        %1495 = vmatpush1.bf16.msra.mxu0 0
        %1496 = vmatprep.subr.bf16.mxu0 0
        %1497 = vmatpush1.bf16.msra.mxu0 0
        %1498 = vmatprep.subr.bf16.mxu0 0
        %1499 = vmatpush1.bf16.msra.mxu0 0
        %1500 = vmatprep.mubr.bf16.mxu0 0
        %1501 = vmatmul.mubr.bf16.gmra.mrb[0].mxu0 %v888
        %v1502 = vpop.f32.mrb[0].mxu0
        %v1503 = vadd.f32 0.0, %v1502
        %v1504 = vpop.f32.mrb[0].mxu0
        %v1505 = vadd.f32 0.0, %v1504
        %v1506 = vpop.f32.mrb[0].mxu0
        %v1507 = vadd.f32 0.0, %v1506
        %v1508 = vpop.f32.mrb[0].mxu0
        %v1509 = vadd.f32 0.0, %v1508
        %1510 = vmatprep.mubr.bf16.mxu0 0
        %1511 = vmatmul.mubr.bf16.gmra.mrb[0].mxu0 %v889
        %v1512 = vpop.f32.mrb[0].mxu0
        %v1513 = vadd.f32 0.0, %v1512
        %v1514 = vpop.f32.mrb[0].mxu0
        %v1515 = vadd.f32 0.0, %v1514
        %v1516 = vpop.f32.mrb[0].mxu0
        %v1517 = vadd.f32 0.0, %v1516
        %v1518 = vpop.f32.mrb[0].mxu0
        %v1519 = vadd.f32 0.0, %v1518
        %1520 = vmatprep.mubr.bf16.mxu0 0
        %1521 = vmatmul.mubr.bf16.gmra.mrb[0].mxu0 %v890
        %v1522 = vpop.f32.mrb[0].mxu0
        %v1523 = vadd.f32 0.0, %v1522
        %v1524 = vpop.f32.mrb[0].mxu0
        %v1525 = vadd.f32 0.0, %v1524
        %v1526 = vpop.f32.mrb[0].mxu0
        %v1527 = vadd.f32 0.0, %v1526
        %v1528 = vpop.f32.mrb[0].mxu0
        %v1529 = vadd.f32 0.0, %v1528
        %1530 = vmatprep.mubr.bf16.mxu0 0
        %1531 = vmatmul.mubr.bf16.gmra.mrb[0].mxu0 %v891
        %v1532 = vpop.f32.mrb[0].mxu0
        %v1533 = vadd.f32 0.0, %v1532
        %v1534 = vpop.f32.mrb[0].mxu0
        %v1535 = vadd.f32 0.0, %v1534
        %v1536 = vpop.f32.mrb[0].mxu0
        %v1537 = vadd.f32 0.0, %v1536
        %v1538 = vpop.f32.mrb[0].mxu0
        %v1539 = vadd.f32 0.0, %v1538
        %1540 = vdwg.mxu0
        %1541 = vmatprep.subr.bf16.mxu0 %v1279
        %1542 = vmatpush1.bf16.msra.mxu0 %v1278
        %1543 = vmatprep.subr.bf16.mxu0 %v1291
        %1544 = vmatpush1.bf16.msra.mxu0 %v1290
        %1545 = vmatprep.subr.bf16.mxu0 %v1303
        %1546 = vmatpush1.bf16.msra.mxu0 %v1302
        %1547 = vmatprep.subr.bf16.mxu0 %v1315
        %1548 = vmatpush1.bf16.msra.mxu0 %v1314
        %1549 = vmatprep.subr.bf16.mxu0 %v1327
        %1550 = vmatpush1.bf16.msra.mxu0 %v1326
        %1551 = vmatprep.subr.bf16.mxu0 %v1339
        %1552 = vmatpush1.bf16.msra.mxu0 %v1338
        %1553 = vmatprep.subr.bf16.mxu0 %v1351
        %1554 = vmatpush1.bf16.msra.mxu0 %v1350
        %1555 = vmatprep.subr.bf16.mxu0 %v1363
        %1556 = vmatpush1.bf16.msra.mxu0 %v1362
        %1557 = vmatprep.subr.bf16.mxu0 0
        %1558 = vmatpush1.bf16.msra.mxu0 0
        %1559 = vmatprep.subr.bf16.mxu0 0
        %1560 = vmatpush1.bf16.msra.mxu0 0
        %1561 = vmatprep.subr.bf16.mxu0 0
        %1562 = vmatpush1.bf16.msra.mxu0 0
        %1563 = vmatprep.subr.bf16.mxu0 0
        %1564 = vmatpush1.bf16.msra.mxu0 0
        %1565 = vmatprep.subr.bf16.mxu0 0
        %1566 = vmatpush1.bf16.msra.mxu0 0
        %1567 = vmatprep.subr.bf16.mxu0 0
        %1568 = vmatpush1.bf16.msra.mxu0 0
        %1569 = vmatprep.subr.bf16.mxu0 0
        %1570 = vmatpush1.bf16.msra.mxu0 0
        %1571 = vmatprep.subr.bf16.mxu0 0
        %1572 = vmatpush1.bf16.msra.mxu0 0
        %1573 = vmatprep.mubr.bf16.mxu0 0
        %1574 = vmatmul.mubr.bf16.gmra.mrb[0].mxu0 %v888
        %v1575 = vpop.f32.mrb[0].mxu0
        %v1576 = vadd.f32 0.0, %v1575
        %v1577 = vpop.f32.mrb[0].mxu0
        %v1578 = vadd.f32 0.0, %v1577
        %v1579 = vpop.f32.mrb[0].mxu0
        %v1580 = vadd.f32 0.0, %v1579
        %v1581 = vpop.f32.mrb[0].mxu0
        %v1582 = vadd.f32 0.0, %v1581
        %1583 = vmatprep.mubr.bf16.mxu0 0
        %1584 = vmatmul.mubr.bf16.gmra.mrb[0].mxu0 %v889
        %v1585 = vpop.f32.mrb[0].mxu0
        %v1586 = vadd.f32 0.0, %v1585
        %v1587 = vpop.f32.mrb[0].mxu0
        %v1588 = vadd.f32 0.0, %v1587
        %v1589 = vpop.f32.mrb[0].mxu0
        %v1590 = vadd.f32 0.0, %v1589
        %v1591 = vpop.f32.mrb[0].mxu0
        %v1592 = vadd.f32 0.0, %v1591
        %1593 = vmatprep.mubr.bf16.mxu0 0
        %1594 = vmatmul.mubr.bf16.gmra.mrb[0].mxu0 %v890
        %v1595 = vpop.f32.mrb[0].mxu0
        %v1596 = vadd.f32 0.0, %v1595
        %v1597 = vpop.f32.mrb[0].mxu0
        %v1598 = vadd.f32 0.0, %v1597
        %v1599 = vpop.f32.mrb[0].mxu0
        %v1600 = vadd.f32 0.0, %v1599
        %v1601 = vpop.f32.mrb[0].mxu0
        %v1602 = vadd.f32 0.0, %v1601
        %1603 = vmatprep.mubr.bf16.mxu0 0
        %1604 = vmatmul.mubr.bf16.gmra.mrb[0].mxu0 %v891
        %v1605 = vpop.f32.mrb[0].mxu0
        %v1606 = vadd.f32 0.0, %v1605
        %v1607 = vpop.f32.mrb[0].mxu0
        %v1608 = vadd.f32 0.0, %v1607
        %v1609 = vpop.f32.mrb[0].mxu0
        %v1610 = vadd.f32 0.0, %v1609
        %v1611 = vpop.f32.mrb[0].mxu0
        %v1612 = vadd.f32 0.0, %v1611
        %1613 = vdwg.mxu0
        %1614 = vmatprep.subr.bf16.mxu0 %v1281
        %1615 = vmatpush1.bf16.msra.mxu0 %v1280
        %1616 = vmatprep.subr.bf16.mxu0 %v1293
        %1617 = vmatpush1.bf16.msra.mxu0 %v1292
        %1618 = vmatprep.subr.bf16.mxu0 %v1305
        %1619 = vmatpush1.bf16.msra.mxu0 %v1304
        %1620 = vmatprep.subr.bf16.mxu0 %v1317
        %1621 = vmatpush1.bf16.msra.mxu0 %v1316
        %1622 = vmatprep.subr.bf16.mxu0 %v1329
        %1623 = vmatpush1.bf16.msra.mxu0 %v1328
        %1624 = vmatprep.subr.bf16.mxu0 %v1341
        %1625 = vmatpush1.bf16.msra.mxu0 %v1340
        %1626 = vmatprep.subr.bf16.mxu0 %v1353
        %1627 = vmatpush1.bf16.msra.mxu0 %v1352
        %1628 = vmatprep.subr.bf16.mxu0 %v1365
        %1629 = vmatpush1.bf16.msra.mxu0 %v1364
        %1630 = vmatprep.subr.bf16.mxu0 0
        %1631 = vmatpush1.bf16.msra.mxu0 0
        %1632 = vmatprep.subr.bf16.mxu0 0
        %1633 = vmatpush1.bf16.msra.mxu0 0
        %1634 = vmatprep.subr.bf16.mxu0 0
        %1635 = vmatpush1.bf16.msra.mxu0 0
        %1636 = vmatprep.subr.bf16.mxu0 0
        %1637 = vmatpush1.bf16.msra.mxu0 0
        %1638 = vmatprep.subr.bf16.mxu0 0
        %1639 = vmatpush1.bf16.msra.mxu0 0
        %1640 = vmatprep.subr.bf16.mxu0 0
        %1641 = vmatpush1.bf16.msra.mxu0 0
        %1642 = vmatprep.subr.bf16.mxu0 0
        %1643 = vmatpush1.bf16.msra.mxu0 0
        %1644 = vmatprep.subr.bf16.mxu0 0
        %1645 = vmatpush1.bf16.msra.mxu0 0
        %1646 = vmatprep.mubr.bf16.mxu0 0
        %1647 = vmatmul.mubr.bf16.gmra.mrb[0].mxu0 %v888
        %v1648 = vpop.f32.mrb[0].mxu0
        %v1649 = vadd.f32 0.0, %v1648
        %v1650 = vpop.f32.mrb[0].mxu0
        %v1651 = vadd.f32 0.0, %v1650
        %v1652 = vpop.f32.mrb[0].mxu0
        %v1653 = vadd.f32 0.0, %v1652
        %v1654 = vpop.f32.mrb[0].mxu0
        %v1655 = vadd.f32 0.0, %v1654
        %1656 = vmatprep.mubr.bf16.mxu0 0
        %1657 = vmatmul.mubr.bf16.gmra.mrb[0].mxu0 %v889
        %v1658 = vpop.f32.mrb[0].mxu0
        %v1659 = vadd.f32 0.0, %v1658
        %v1660 = vpop.f32.mrb[0].mxu0
        %v1661 = vadd.f32 0.0, %v1660
        %v1662 = vpop.f32.mrb[0].mxu0
        %v1663 = vadd.f32 0.0, %v1662
        %v1664 = vpop.f32.mrb[0].mxu0
        %v1665 = vadd.f32 0.0, %v1664
        %1666 = vmatprep.mubr.bf16.mxu0 0
        %1667 = vmatmul.mubr.bf16.gmra.mrb[0].mxu0 %v890
        %v1668 = vpop.f32.mrb[0].mxu0
        %v1669 = vadd.f32 0.0, %v1668
        %v1670 = vpop.f32.mrb[0].mxu0
        %v1671 = vadd.f32 0.0, %v1670
        %v1672 = vpop.f32.mrb[0].mxu0
        %v1673 = vadd.f32 0.0, %v1672
        %v1674 = vpop.f32.mrb[0].mxu0
        %v1675 = vadd.f32 0.0, %v1674
        %1676 = vmatprep.mubr.bf16.mxu0 0
        %1677 = vmatmul.mubr.bf16.gmra.mrb[0].mxu0 %v891
        %v1678 = vpop.f32.mrb[0].mxu0
        %v1679 = vadd.f32 0.0, %v1678
        %v1680 = vpop.f32.mrb[0].mxu0
        %v1681 = vadd.f32 0.0, %v1680
        %v1682 = vpop.f32.mrb[0].mxu0
        %v1683 = vadd.f32 0.0, %v1682
        %v1684 = vpop.f32.mrb[0].mxu0
        %v1685 = vadd.f32 0.0, %v1684
        %1686 = vdwg.mxu0
        %1687 = vmatprep.subr.bf16.mxu0 %v1283
        %1688 = vmatpush1.bf16.msra.mxu0 %v1282
        %1689 = vmatprep.subr.bf16.mxu0 %v1295
        %1690 = vmatpush1.bf16.msra.mxu0 %v1294
        %1691 = vmatprep.subr.bf16.mxu0 %v1307
        %1692 = vmatpush1.bf16.msra.mxu0 %v1306
        %1693 = vmatprep.subr.bf16.mxu0 %v1319
        %1694 = vmatpush1.bf16.msra.mxu0 %v1318
        %1695 = vmatprep.subr.bf16.mxu0 %v1331
        %1696 = vmatpush1.bf16.msra.mxu0 %v1330
        %1697 = vmatprep.subr.bf16.mxu0 %v1343
        %1698 = vmatpush1.bf16.msra.mxu0 %v1342
        %1699 = vmatprep.subr.bf16.mxu0 %v1355
        %1700 = vmatpush1.bf16.msra.mxu0 %v1354
        %1701 = vmatprep.subr.bf16.mxu0 %v1367
        %1702 = vmatpush1.bf16.msra.mxu0 %v1366
        %1703 = vmatprep.subr.bf16.mxu0 0
        %1704 = vmatpush1.bf16.msra.mxu0 0
        %1705 = vmatprep.subr.bf16.mxu0 0
        %1706 = vmatpush1.bf16.msra.mxu0 0
        %1707 = vmatprep.subr.bf16.mxu0 0
        %1708 = vmatpush1.bf16.msra.mxu0 0
        %1709 = vmatprep.subr.bf16.mxu0 0
        %1710 = vmatpush1.bf16.msra.mxu0 0
        %1711 = vmatprep.subr.bf16.mxu0 0
        %1712 = vmatpush1.bf16.msra.mxu0 0
        %1713 = vmatprep.subr.bf16.mxu0 0
        %1714 = vmatpush1.bf16.msra.mxu0 0
        %1715 = vmatprep.subr.bf16.mxu0 0
        %1716 = vmatpush1.bf16.msra.mxu0 0
        %1717 = vmatprep.subr.bf16.mxu0 0
        %1718 = vmatpush1.bf16.msra.mxu0 0
        %1719 = vmatprep.mubr.bf16.mxu0 0
        %1720 = vmatmul.mubr.bf16.gmra.mrb[0].mxu0 %v888
        %v1721 = vpop.f32.mrb[0].mxu0
        %v1722 = vadd.f32 0.0, %v1721
        %v1723 = vpop.f32.mrb[0].mxu0
        %v1724 = vadd.f32 0.0, %v1723
        %v1725 = vpop.f32.mrb[0].mxu0
        %v1726 = vadd.f32 0.0, %v1725
        %v1727 = vpop.f32.mrb[0].mxu0
        %v1728 = vadd.f32 0.0, %v1727
        %1729 = vmatprep.mubr.bf16.mxu0 0
        %1730 = vmatmul.mubr.bf16.gmra.mrb[0].mxu0 %v889
        %v1731 = vpop.f32.mrb[0].mxu0
        %v1732 = vadd.f32 0.0, %v1731
        %v1733 = vpop.f32.mrb[0].mxu0
        %v1734 = vadd.f32 0.0, %v1733
        %v1735 = vpop.f32.mrb[0].mxu0
        %v1736 = vadd.f32 0.0, %v1735
        %v1737 = vpop.f32.mrb[0].mxu0
        %v1738 = vadd.f32 0.0, %v1737
        %1739 = vmatprep.mubr.bf16.mxu0 0
        %1740 = vmatmul.mubr.bf16.gmra.mrb[0].mxu0 %v890
        %v1741 = vpop.f32.mrb[0].mxu0
        %v1742 = vadd.f32 0.0, %v1741
        %v1743 = vpop.f32.mrb[0].mxu0
        %v1744 = vadd.f32 0.0, %v1743
        %v1745 = vpop.f32.mrb[0].mxu0
        %v1746 = vadd.f32 0.0, %v1745
        %v1747 = vpop.f32.mrb[0].mxu0
        %v1748 = vadd.f32 0.0, %v1747
        %1749 = vmatprep.mubr.bf16.mxu0 0
        %1750 = vmatmul.mubr.bf16.gmra.mrb[0].mxu0 %v891
        %v1751 = vpop.f32.mrb[0].mxu0
        %v1752 = vadd.f32 0.0, %v1751
        %v1753 = vpop.f32.mrb[0].mxu0
        %v1754 = vadd.f32 0.0, %v1753
        %v1755 = vpop.f32.mrb[0].mxu0
        %v1756 = vadd.f32 0.0, %v1755
        %v1757 = vpop.f32.mrb[0].mxu0
        %v1758 = vadd.f32 0.0, %v1757
        %1759 = vdwg.mxu0
        %1760 = vmatprep.subr.bf16.mxu0 %v1285
        %1761 = vmatpush1.bf16.msra.mxu0 %v1284
        %1762 = vmatprep.subr.bf16.mxu0 %v1297
        %1763 = vmatpush1.bf16.msra.mxu0 %v1296
        %1764 = vmatprep.subr.bf16.mxu0 %v1309
        %1765 = vmatpush1.bf16.msra.mxu0 %v1308
        %1766 = vmatprep.subr.bf16.mxu0 %v1321
        %1767 = vmatpush1.bf16.msra.mxu0 %v1320
        %1768 = vmatprep.subr.bf16.mxu0 %v1333
        %1769 = vmatpush1.bf16.msra.mxu0 %v1332
        %1770 = vmatprep.subr.bf16.mxu0 %v1345
        %1771 = vmatpush1.bf16.msra.mxu0 %v1344
        %1772 = vmatprep.subr.bf16.mxu0 %v1357
        %1773 = vmatpush1.bf16.msra.mxu0 %v1356
        %1774 = vmatprep.subr.bf16.mxu0 %v1369
        %1775 = vmatpush1.bf16.msra.mxu0 %v1368
        %1776 = vmatprep.subr.bf16.mxu0 0
        %1777 = vmatpush1.bf16.msra.mxu0 0
        %1778 = vmatprep.subr.bf16.mxu0 0
        %1779 = vmatpush1.bf16.msra.mxu0 0
        %1780 = vmatprep.subr.bf16.mxu0 0
        %1781 = vmatpush1.bf16.msra.mxu0 0
        %1782 = vmatprep.subr.bf16.mxu0 0
        %1783 = vmatpush1.bf16.msra.mxu0 0
        %1784 = vmatprep.subr.bf16.mxu0 0
        %1785 = vmatpush1.bf16.msra.mxu0 0
        %1786 = vmatprep.subr.bf16.mxu0 0
        %1787 = vmatpush1.bf16.msra.mxu0 0
        %1788 = vmatprep.subr.bf16.mxu0 0
        %1789 = vmatpush1.bf16.msra.mxu0 0
        %1790 = vmatprep.subr.bf16.mxu0 0
        %1791 = vmatpush1.bf16.msra.mxu0 0
        %1792 = vmatprep.mubr.bf16.mxu0 0
        %1793 = vmatmul.mubr.bf16.gmra.mrb[0].mxu0 %v888
        %v1794 = vpop.f32.mrb[0].mxu0
        %v1795 = vadd.f32 0.0, %v1794
        %v1796 = vpop.f32.mrb[0].mxu0
        %v1797 = vadd.f32 0.0, %v1796
        %v1798 = vpop.f32.mrb[0].mxu0
        %v1799 = vadd.f32 0.0, %v1798
        %v1800 = vpop.f32.mrb[0].mxu0
        %v1801 = vadd.f32 0.0, %v1800
        %1802 = vmatprep.mubr.bf16.mxu0 0
        %1803 = vmatmul.mubr.bf16.gmra.mrb[0].mxu0 %v889
        %v1804 = vpop.f32.mrb[0].mxu0
        %v1805 = vadd.f32 0.0, %v1804
        %v1806 = vpop.f32.mrb[0].mxu0
        %v1807 = vadd.f32 0.0, %v1806
        %v1808 = vpop.f32.mrb[0].mxu0
        %v1809 = vadd.f32 0.0, %v1808
        %v1810 = vpop.f32.mrb[0].mxu0
        %v1811 = vadd.f32 0.0, %v1810
        %1812 = vmatprep.mubr.bf16.mxu0 0
        %1813 = vmatmul.mubr.bf16.gmra.mrb[0].mxu0 %v890
        %v1814 = vpop.f32.mrb[0].mxu0
        %v1815 = vadd.f32 0.0, %v1814
        %v1816 = vpop.f32.mrb[0].mxu0
        %v1817 = vadd.f32 0.0, %v1816
        %v1818 = vpop.f32.mrb[0].mxu0
        %v1819 = vadd.f32 0.0, %v1818
        %v1820 = vpop.f32.mrb[0].mxu0
        %v1821 = vadd.f32 0.0, %v1820
        %1822 = vmatprep.mubr.bf16.mxu0 0
        %1823 = vmatmul.mubr.bf16.gmra.mrb[0].mxu0 %v891
        %v1824 = vpop.f32.mrb[0].mxu0
        %v1825 = vadd.f32 0.0, %v1824
        %v1826 = vpop.f32.mrb[0].mxu0
        %v1827 = vadd.f32 0.0, %v1826
        %v1828 = vpop.f32.mrb[0].mxu0
        %v1829 = vadd.f32 0.0, %v1828
        %v1830 = vpop.f32.mrb[0].mxu0
        %v1831 = vadd.f32 0.0, %v1830
        %1832 = vdwg.mxu0
        %1833 = vmatprep.subr.bf16.mxu0 %v1287
        %1834 = vmatpush1.bf16.msra.mxu0 %v1286
        %1835 = vmatprep.subr.bf16.mxu0 %v1299
        %1836 = vmatpush1.bf16.msra.mxu0 %v1298
        %1837 = vmatprep.subr.bf16.mxu0 %v1311
        %1838 = vmatpush1.bf16.msra.mxu0 %v1310
        %1839 = vmatprep.subr.bf16.mxu0 %v1323
        %1840 = vmatpush1.bf16.msra.mxu0 %v1322
        %1841 = vmatprep.subr.bf16.mxu0 %v1335
        %1842 = vmatpush1.bf16.msra.mxu0 %v1334
        %1843 = vmatprep.subr.bf16.mxu0 %v1347
        %1844 = vmatpush1.bf16.msra.mxu0 %v1346
        %1845 = vmatprep.subr.bf16.mxu0 %v1359
        %1846 = vmatpush1.bf16.msra.mxu0 %v1358
        %1847 = vmatprep.subr.bf16.mxu0 %v1371
        %1848 = vmatpush1.bf16.msra.mxu0 %v1370
        %1849 = vmatprep.subr.bf16.mxu0 0
        %1850 = vmatpush1.bf16.msra.mxu0 0
        %1851 = vmatprep.subr.bf16.mxu0 0
        %1852 = vmatpush1.bf16.msra.mxu0 0
        %1853 = vmatprep.subr.bf16.mxu0 0
        %1854 = vmatpush1.bf16.msra.mxu0 0
        %1855 = vmatprep.subr.bf16.mxu0 0
        %1856 = vmatpush1.bf16.msra.mxu0 0
        %1857 = vmatprep.subr.bf16.mxu0 0
        %1858 = vmatpush1.bf16.msra.mxu0 0
        %1859 = vmatprep.subr.bf16.mxu0 0
        %1860 = vmatpush1.bf16.msra.mxu0 0
        %1861 = vmatprep.subr.bf16.mxu0 0
        %1862 = vmatpush1.bf16.msra.mxu0 0
        %1863 = vmatprep.subr.bf16.mxu0 0
        %1864 = vmatpush1.bf16.msra.mxu0 0
        %1865 = vmatprep.mubr.bf16.mxu0 0
        %1866 = vmatmul.mubr.bf16.gmra.mrb[0].mxu0 %v888
        %v1867 = vpop.f32.mrb[0].mxu0
        %v1868 = vadd.f32 0.0, %v1867
        %v1869 = vpop.f32.mrb[0].mxu0
        %v1870 = vadd.f32 0.0, %v1869
        %v1871 = vpop.f32.mrb[0].mxu0
        %v1872 = vadd.f32 0.0, %v1871
        %v1873 = vpop.f32.mrb[0].mxu0
        %v1874 = vadd.f32 0.0, %v1873
        %1875 = vmatprep.mubr.bf16.mxu0 0
        %1876 = vmatmul.mubr.bf16.gmra.mrb[0].mxu0 %v889
        %v1877 = vpop.f32.mrb[0].mxu0
        %v1878 = vadd.f32 0.0, %v1877
        %v1879 = vpop.f32.mrb[0].mxu0
        %v1880 = vadd.f32 0.0, %v1879
        %v1881 = vpop.f32.mrb[0].mxu0
        %v1882 = vadd.f32 0.0, %v1881
        %v1883 = vpop.f32.mrb[0].mxu0
        %v1884 = vadd.f32 0.0, %v1883
        %1885 = vmatprep.mubr.bf16.mxu0 0
        %1886 = vmatmul.mubr.bf16.gmra.mrb[0].mxu0 %v890
        %v1887 = vpop.f32.mrb[0].mxu0
        %v1888 = vadd.f32 0.0, %v1887
        %v1889 = vpop.f32.mrb[0].mxu0
        %v1890 = vadd.f32 0.0, %v1889
        %v1891 = vpop.f32.mrb[0].mxu0
        %v1892 = vadd.f32 0.0, %v1891
        %v1893 = vpop.f32.mrb[0].mxu0
        %v1894 = vadd.f32 0.0, %v1893
        %1895 = vmatprep.mubr.bf16.mxu0 0
        %1896 = vmatmul.mubr.bf16.gmra.mrb[0].mxu0 %v891
        %v1897 = vpop.f32.mrb[0].mxu0
        %v1898 = vadd.f32 0.0, %v1897
        %v1899 = vpop.f32.mrb[0].mxu0
        %v1900 = vadd.f32 0.0, %v1899
        %v1901 = vpop.f32.mrb[0].mxu0
        %v1902 = vadd.f32 0.0, %v1901
        %v1903 = vpop.f32.mrb[0].mxu0
        %v1904 = vadd.f32 0.0, %v1903
        %1905 = vdwg.mxu0
        %v1906 = vpack.c.bf16 %v1507, %v1503
        %v1907 = vpack.c.bf16 %v1509, %v1505
        %v1908 = vpack.c.bf16 %v1580, %v1576
        %v1909 = vpack.c.bf16 %v1582, %v1578
        %v1910 = vpack.c.bf16 %v1653, %v1649
        %v1911 = vpack.c.bf16 %v1655, %v1651
        %v1912 = vpack.c.bf16 %v1726, %v1722
        %v1913 = vpack.c.bf16 %v1728, %v1724
        %v1914 = vpack.c.bf16 %v1799, %v1795
        %v1915 = vpack.c.bf16 %v1801, %v1797
        %v1916 = vpack.c.bf16 %v1872, %v1868
        %v1917 = vpack.c.bf16 %v1874, %v1870
        %v1918 = vpack.c.bf16 %v1517, %v1513
        %v1919 = vpack.c.bf16 %v1519, %v1515
        %v1920 = vpack.c.bf16 %v1590, %v1586
        %v1921 = vpack.c.bf16 %v1592, %v1588
        %v1922 = vpack.c.bf16 %v1663, %v1659
        %v1923 = vpack.c.bf16 %v1665, %v1661
        %v1924 = vpack.c.bf16 %v1736, %v1732
        %v1925 = vpack.c.bf16 %v1738, %v1734
        %v1926 = vpack.c.bf16 %v1809, %v1805
        %v1927 = vpack.c.bf16 %v1811, %v1807
        %v1928 = vpack.c.bf16 %v1882, %v1878
        %v1929 = vpack.c.bf16 %v1884, %v1880
        %v1930 = vpack.c.bf16 %v1527, %v1523
        %v1931 = vpack.c.bf16 %v1529, %v1525
        %v1932 = vpack.c.bf16 %v1600, %v1596
        %v1933 = vpack.c.bf16 %v1602, %v1598
        %v1934 = vpack.c.bf16 %v1673, %v1669
        %v1935 = vpack.c.bf16 %v1675, %v1671
        %v1936 = vpack.c.bf16 %v1746, %v1742
        %v1937 = vpack.c.bf16 %v1748, %v1744
        %v1938 = vpack.c.bf16 %v1819, %v1815
        %v1939 = vpack.c.bf16 %v1821, %v1817
        %v1940 = vpack.c.bf16 %v1892, %v1888
        %v1941 = vpack.c.bf16 %v1894, %v1890
        %v1942 = vpack.c.bf16 %v1537, %v1533
        %v1943 = vpack.c.bf16 %v1539, %v1535
        %v1944 = vpack.c.bf16 %v1610, %v1606
        %v1945 = vpack.c.bf16 %v1612, %v1608
        %v1946 = vpack.c.bf16 %v1683, %v1679
        %v1947 = vpack.c.bf16 %v1685, %v1681
        %v1948 = vpack.c.bf16 %v1756, %v1752
        %v1949 = vpack.c.bf16 %v1758, %v1754
        %v1950 = vpack.c.bf16 %v1829, %v1825
        %v1951 = vpack.c.bf16 %v1831, %v1827
        %v1952 = vpack.c.bf16 %v1902, %v1898
        %v1953 = vpack.c.bf16 %v1904, %v1900
        %1954 = vmatprep.subr.bf16.mxu0 0
        %1955 = vmatpush1.bf16.xpose.msra.mxu0 %v1910
        %1956 = vmatprep.subr.bf16.mxu0 0
        %1957 = vmatpush1.bf16.xpose.msra.mxu0 0
        %1958 = vmatprep.subr.bf16.mxu0 0
        %1959 = vmatpush1.bf16.xpose.msra.mxu0 0
        %1960 = vmatprep.subr.bf16.mxu0 0
        %1961 = vmatpush1.bf16.xpose.msra.mxu0 0
        %1962 = vmatprep.subr.bf16.mxu0 0
        %1963 = vmatpush1.bf16.xpose.msra.mxu0 0
        %1964 = vmatprep.subr.bf16.mxu0 0
        %1965 = vmatpush1.bf16.xpose.msra.mxu0 0
        %1966 = vmatprep.subr.bf16.mxu0 0
        %1967 = vmatpush1.bf16.xpose.msra.mxu0 0
        %1968 = vmatprep.subr.bf16.mxu0 0
        %1969 = vmatpush1.bf16.xpose.msra.mxu0 0
        %1970 = vmatprep.subr.bf16.mxu0 0
        %1971 = vmatpush1.bf16.xpose.msra.mxu0 0
        %1972 = vmatprep.subr.bf16.mxu0 0
        %1973 = vmatpush1.bf16.xpose.msra.mxu0 0
        %1974 = vmatprep.subr.bf16.mxu0 0
        %1975 = vmatpush1.bf16.xpose.msra.mxu0 0
        %1976 = vmatprep.subr.bf16.mxu0 0
        %1977 = vmatpush1.bf16.xpose.msra.mxu0 0
        %1978 = vmatprep.subr.bf16.mxu0 0
        %1979 = vmatpush1.bf16.xpose.msra.mxu0 0
        %1980 = vmatprep.subr.bf16.mxu0 0
        %1981 = vmatpush1.bf16.xpose.msra.mxu0 0
        %1982 = vmatprep.subr.bf16.mxu0 0
        %1983 = vmatpush1.bf16.xpose.msra.mxu0 0
        %1984 = vmatprep.subr.bf16.mxu0 0
        %1985 = vmatpush1.bf16.xpose.msra.mxu0 0
        %1986 = vmatprep.mubr.bf16.mxu0 0
        %1987 = vmatmul.mubr.bf16.gmra.mrb[0].mxu0 %v1906
        %v1988 = vpop.f32.mrb[0].mxu0
        %v1989 = vadd.f32 0.0, %v1988
        %v1990 = vpop.f32.mrb[0].mxu0
        %v1991 = vpop.f32.mrb[0].mxu0
        %v1992 = vadd.f32 0.0, %v1991
        %v1993 = vpop.f32.mrb[0].mxu0
        %1994 = vdwg.mxu0
        %1995 = vmatprep.subr.bf16.mxu0 0
        %1996 = vmatpush1.bf16.xpose.msra.mxu0 %v1922
        %1997 = vmatprep.subr.bf16.mxu0 0
        %1998 = vmatpush1.bf16.xpose.msra.mxu0 0
        %1999 = vmatprep.subr.bf16.mxu0 0
        %2000 = vmatpush1.bf16.xpose.msra.mxu0 0
        %2001 = vmatprep.subr.bf16.mxu0 0
        %2002 = vmatpush1.bf16.xpose.msra.mxu0 0
        %2003 = vmatprep.subr.bf16.mxu0 0
        %2004 = vmatpush1.bf16.xpose.msra.mxu0 0
        %2005 = vmatprep.subr.bf16.mxu0 0
        %2006 = vmatpush1.bf16.xpose.msra.mxu0 0
        %2007 = vmatprep.subr.bf16.mxu0 0
        %2008 = vmatpush1.bf16.xpose.msra.mxu0 0
        %2009 = vmatprep.subr.bf16.mxu0 0
        %2010 = vmatpush1.bf16.xpose.msra.mxu0 0
        %2011 = vmatprep.subr.bf16.mxu0 0
        %2012 = vmatpush1.bf16.xpose.msra.mxu0 0
        %2013 = vmatprep.subr.bf16.mxu0 0
        %2014 = vmatpush1.bf16.xpose.msra.mxu0 0
        %2015 = vmatprep.subr.bf16.mxu0 0
        %2016 = vmatpush1.bf16.xpose.msra.mxu0 0
        %2017 = vmatprep.subr.bf16.mxu0 0
        %2018 = vmatpush1.bf16.xpose.msra.mxu0 0
        %2019 = vmatprep.subr.bf16.mxu0 0
        %2020 = vmatpush1.bf16.xpose.msra.mxu0 0
        %2021 = vmatprep.subr.bf16.mxu0 0
        %2022 = vmatpush1.bf16.xpose.msra.mxu0 0
        %2023 = vmatprep.subr.bf16.mxu0 0
        %2024 = vmatpush1.bf16.xpose.msra.mxu0 0
        %2025 = vmatprep.subr.bf16.mxu0 0
        %2026 = vmatpush1.bf16.xpose.msra.mxu0 0
        %2027 = vmatprep.mubr.bf16.mxu0 0
        %2028 = vmatmul.mubr.bf16.gmra.mrb[0].mxu0 %v1918
        %v2029 = vpop.f32.mrb[0].mxu0
        %v2030 = vadd.f32 0.0, %v2029
        %v2031 = vpop.f32.mrb[0].mxu0
        %v2032 = vpop.f32.mrb[0].mxu0
        %v2033 = vadd.f32 0.0, %v2032
        %v2034 = vpop.f32.mrb[0].mxu0
        %2035 = vdwg.mxu0
        %2036 = vmatprep.subr.bf16.mxu0 0
        %2037 = vmatpush1.bf16.xpose.msra.mxu0 %v1934
        %2038 = vmatprep.subr.bf16.mxu0 0
        %2039 = vmatpush1.bf16.xpose.msra.mxu0 0
        %2040 = vmatprep.subr.bf16.mxu0 0
        %2041 = vmatpush1.bf16.xpose.msra.mxu0 0
        %2042 = vmatprep.subr.bf16.mxu0 0
        %2043 = vmatpush1.bf16.xpose.msra.mxu0 0
        %2044 = vmatprep.subr.bf16.mxu0 0
        %2045 = vmatpush1.bf16.xpose.msra.mxu0 0
        %2046 = vmatprep.subr.bf16.mxu0 0
        %2047 = vmatpush1.bf16.xpose.msra.mxu0 0
        %2048 = vmatprep.subr.bf16.mxu0 0
        %2049 = vmatpush1.bf16.xpose.msra.mxu0 0
        %2050 = vmatprep.subr.bf16.mxu0 0
        %2051 = vmatpush1.bf16.xpose.msra.mxu0 0
        %2052 = vmatprep.subr.bf16.mxu0 0
        %2053 = vmatpush1.bf16.xpose.msra.mxu0 0
        %2054 = vmatprep.subr.bf16.mxu0 0
        %2055 = vmatpush1.bf16.xpose.msra.mxu0 0
        %2056 = vmatprep.subr.bf16.mxu0 0
        %2057 = vmatpush1.bf16.xpose.msra.mxu0 0
        %2058 = vmatprep.subr.bf16.mxu0 0
        %2059 = vmatpush1.bf16.xpose.msra.mxu0 0
        %2060 = vmatprep.subr.bf16.mxu0 0
        %2061 = vmatpush1.bf16.xpose.msra.mxu0 0
        %2062 = vmatprep.subr.bf16.mxu0 0
        %2063 = vmatpush1.bf16.xpose.msra.mxu0 0
        %2064 = vmatprep.subr.bf16.mxu0 0
        %2065 = vmatpush1.bf16.xpose.msra.mxu0 0
        %2066 = vmatprep.subr.bf16.mxu0 0
        %2067 = vmatpush1.bf16.xpose.msra.mxu0 0
        %2068 = vmatprep.mubr.bf16.mxu0 0
        %2069 = vmatmul.mubr.bf16.gmra.mrb[0].mxu0 %v1930
        %v2070 = vpop.f32.mrb[0].mxu0
        %v2071 = vadd.f32 0.0, %v2070
        %v2072 = vpop.f32.mrb[0].mxu0
        %v2073 = vpop.f32.mrb[0].mxu0
        %v2074 = vadd.f32 0.0, %v2073
        %v2075 = vpop.f32.mrb[0].mxu0
        %2076 = vdwg.mxu0
        %2077 = vmatprep.subr.bf16.mxu0 0
        %2078 = vmatpush1.bf16.xpose.msra.mxu0 %v1946
        %2079 = vmatprep.subr.bf16.mxu0 0
        %2080 = vmatpush1.bf16.xpose.msra.mxu0 0
        %2081 = vmatprep.subr.bf16.mxu0 0
        %2082 = vmatpush1.bf16.xpose.msra.mxu0 0
        %2083 = vmatprep.subr.bf16.mxu0 0
        %2084 = vmatpush1.bf16.xpose.msra.mxu0 0
        %2085 = vmatprep.subr.bf16.mxu0 0
        %2086 = vmatpush1.bf16.xpose.msra.mxu0 0
        %2087 = vmatprep.subr.bf16.mxu0 0
        %2088 = vmatpush1.bf16.xpose.msra.mxu0 0
        %2089 = vmatprep.subr.bf16.mxu0 0
        %2090 = vmatpush1.bf16.xpose.msra.mxu0 0
        %2091 = vmatprep.subr.bf16.mxu0 0
        %2092 = vmatpush1.bf16.xpose.msra.mxu0 0
        %2093 = vmatprep.subr.bf16.mxu0 0
        %2094 = vmatpush1.bf16.xpose.msra.mxu0 0
        %2095 = vmatprep.subr.bf16.mxu0 0
        %2096 = vmatpush1.bf16.xpose.msra.mxu0 0
        %2097 = vmatprep.subr.bf16.mxu0 0
        %2098 = vmatpush1.bf16.xpose.msra.mxu0 0
        %2099 = vmatprep.subr.bf16.mxu0 0
        %2100 = vmatpush1.bf16.xpose.msra.mxu0 0
        %2101 = vmatprep.subr.bf16.mxu0 0
        %2102 = vmatpush1.bf16.xpose.msra.mxu0 0
        %2103 = vmatprep.subr.bf16.mxu0 0
        %2104 = vmatpush1.bf16.xpose.msra.mxu0 0
        %2105 = vmatprep.subr.bf16.mxu0 0
        %2106 = vmatpush1.bf16.xpose.msra.mxu0 0
        %2107 = vmatprep.subr.bf16.mxu0 0
        %2108 = vmatpush1.bf16.xpose.msra.mxu0 0
        %2109 = vmatprep.mubr.bf16.mxu0 0
        %2110 = vmatmul.mubr.bf16.gmra.mrb[0].mxu0 %v1942
        %v2111 = vpop.f32.mrb[0].mxu0
        %v2112 = vadd.f32 0.0, %v2111
        %v2113 = vpop.f32.mrb[0].mxu0
        %v2114 = vpop.f32.mrb[0].mxu0
        %v2115 = vadd.f32 0.0, %v2114
        %v2116 = vpop.f32.mrb[0].mxu0
        %2117 = vdwg.mxu0
        %v2118 = vmul.f32 %v1989, 0.088388346
        %v2119 = vmul.f32 %v1992, 0.088388346
        %v2120 = vmul.f32 %v2030, 0.088388346
        %v2121 = vmul.f32 %v2033, 0.088388346
        %v2122 = vmul.f32 %v2071, 0.088388346
        %v2123 = vmul.f32 %v2074, 0.088388346
        %v2124 = vmul.f32 %v2112, 0.088388346
        %v2125 = vmul.f32 %v2115, 0.088388346
        %vm2126 = vcmask 130048
        %v2127 = vsel %vm2126, %v2118, -inf
        %2128 = vmax.xlane.f32.xlu0 %v2127
        %v2129 = vpop.xlane.xlu0 %2128
        %v2130 = vsel %vm2126, %v2119, -inf
        %2131 = vmax.xlane.f32.xlu0 %v2130
        %v2132 = vpop.xlane.xlu0 %2131
        %v2133 = vsel %vm2126, %v2120, -inf
        %2134 = vmax.xlane.f32.xlu0 %v2133
        %v2135 = vpop.xlane.xlu0 %2134
        %v2136 = vsel %vm2126, %v2121, -inf
        %2137 = vmax.xlane.f32.xlu0 %v2136
        %v2138 = vpop.xlane.xlu0 %2137
        %v2139 = vsel %vm2126, %v2122, -inf
        %2140 = vmax.xlane.f32.xlu0 %v2139
        %v2141 = vpop.xlane.xlu0 %2140
        %v2142 = vsel %vm2126, %v2123, -inf
        %2143 = vmax.xlane.f32.xlu0 %v2142
        %v2144 = vpop.xlane.xlu0 %2143
        %v2145 = vsel %vm2126, %v2124, -inf
        %2146 = vmax.xlane.f32.xlu0 %v2145
        %v2147 = vpop.xlane.xlu0 %2146
        %v2148 = vsel %vm2126, %v2125, -inf
        %2149 = vmax.xlane.f32.xlu0 %v2148
        %v2150 = vpop.xlane.xlu0 %2149
        %v2151 = vsub.f32 %v2118, %v2129
        %v2152 = vsub.f32 %v2119, %v2132
        %v2153 = vsub.f32 %v2120, %v2135
        %v2154 = vsub.f32 %v2121, %v2138
        %v2155 = vsub.f32 %v2122, %v2141
        %v2156 = vsub.f32 %v2123, %v2144
        %v2157 = vsub.f32 %v2124, %v2147
        %v2158 = vsub.f32 %v2125, %v2150
        %v2159 = vmul.f32 %v2151, 1.442695
        %v2160 = vpow.pop %v2159
        %v2161 = vmul.f32 %v2152, 1.442695
        %v2162 = vpow.pop %v2161
        %v2163 = vmul.f32 %v2153, 1.442695
        %v2164 = vpow.pop %v2163
        %v2165 = vmul.f32 %v2154, 1.442695
        %v2166 = vpow.pop %v2165
        %v2167 = vmul.f32 %v2155, 1.442695
        %v2168 = vpow.pop %v2167
        %v2169 = vmul.f32 %v2156, 1.442695
        %v2170 = vpow.pop %v2169
        %v2171 = vmul.f32 %v2157, 1.442695
        %v2172 = vpow.pop %v2171
        %v2173 = vmul.f32 %v2158, 1.442695
        %v2174 = vpow.pop %v2173
        %v2175 = vsel %vm2126, %v2160, 0.0
        %2176 = vadd.xlane.f32.xlu0 %v2175
        %v2177 = vpop.xlane.xlu0 %2176
        %v2178 = vsel %vm2126, %v2162, 0.0
        %2179 = vadd.xlane.f32.xlu0 %v2178
        %v2180 = vpop.xlane.xlu0 %2179
        %v2181 = vsel %vm2126, %v2164, 0.0
        %2182 = vadd.xlane.f32.xlu0 %v2181
        %v2183 = vpop.xlane.xlu0 %2182
        %v2184 = vsel %vm2126, %v2166, 0.0
        %2185 = vadd.xlane.f32.xlu0 %v2184
        %v2186 = vpop.xlane.xlu0 %2185
        %v2187 = vsel %vm2126, %v2168, 0.0
        %2188 = vadd.xlane.f32.xlu0 %v2187
        %v2189 = vpop.xlane.xlu0 %2188
        %v2190 = vsel %vm2126, %v2170, 0.0
        %2191 = vadd.xlane.f32.xlu0 %v2190
        %v2192 = vpop.xlane.xlu0 %2191
        %v2193 = vsel %vm2126, %v2172, 0.0
        %2194 = vadd.xlane.f32.xlu0 %v2193
        %v2195 = vpop.xlane.xlu0 %2194
        %v2196 = vsel %vm2126, %v2174, 0.0
        %2197 = vadd.xlane.f32.xlu0 %v2196
        %v2198 = vpop.xlane.xlu0 %2197
        %v2199 = vrcp.pop %v2177
        %v2200 = vrcp.pop %v2180
        %v2201 = vrcp.pop %v2183
        %v2202 = vrcp.pop %v2186
        %v2203 = vrcp.pop %v2189
        %v2204 = vrcp.pop %v2192
        %v2205 = vrcp.pop %v2195
        %v2206 = vrcp.pop %v2198
        %v2207 = vmul.f32 %v2160, %v2199
        %v2208 = vmul.f32 %v2162, %v2200
        %v2209 = vmul.f32 %v2164, %v2201
        %v2210 = vmul.f32 %v2166, %v2202
        %v2211 = vmul.f32 %v2168, %v2203
        %v2212 = vmul.f32 %v2170, %v2204
        %v2213 = vmul.f32 %v2172, %v2205
        %v2214 = vmul.f32 %v2174, %v2206
        %v2215 = vpack.c.bf16 %v2208, %v2207
        %v2216 = vpack.c.bf16 %v2210, %v2209
        %v2217 = vpack.c.bf16 %v2212, %v2211
        %v2218 = vpack.c.bf16 %v2214, %v2213
        %v2220 = vsel %vm2126, %v2215, 0
        %2222 = vmatprep.subr.bf16.mxu0 0
        %2223 = vmatpush1.bf16.msra.mxu0 %v1914
        %2224 = vmatprep.subr.bf16.mxu0 0
        %2225 = vmatpush1.bf16.msra.mxu0 0
        %2226 = vmatprep.subr.bf16.mxu0 0
        %2227 = vmatpush1.bf16.msra.mxu0 0
        %2228 = vmatprep.subr.bf16.mxu0 0
        %2229 = vmatpush1.bf16.msra.mxu0 0
        %2230 = vmatprep.subr.bf16.mxu0 0
        %2231 = vmatpush1.bf16.msra.mxu0 0
        %2232 = vmatprep.subr.bf16.mxu0 0
        %2233 = vmatpush1.bf16.msra.mxu0 0
        %2234 = vmatprep.subr.bf16.mxu0 0
        %2235 = vmatpush1.bf16.msra.mxu0 0
        %2236 = vmatprep.subr.bf16.mxu0 0
        %2237 = vmatpush1.bf16.msra.mxu0 0
        %2238 = vmatprep.subr.bf16.mxu0 0
        %2239 = vmatpush1.bf16.msra.mxu0 0
        %2240 = vmatprep.subr.bf16.mxu0 0
        %2241 = vmatpush1.bf16.msra.mxu0 0
        %2242 = vmatprep.subr.bf16.mxu0 0
        %2243 = vmatpush1.bf16.msra.mxu0 0
        %2244 = vmatprep.subr.bf16.mxu0 0
        %2245 = vmatpush1.bf16.msra.mxu0 0
        %2246 = vmatprep.subr.bf16.mxu0 0
        %2247 = vmatpush1.bf16.msra.mxu0 0
        %2248 = vmatprep.subr.bf16.mxu0 0
        %2249 = vmatpush1.bf16.msra.mxu0 0
        %2250 = vmatprep.subr.bf16.mxu0 0
        %2251 = vmatpush1.bf16.msra.mxu0 0
        %2252 = vmatprep.subr.bf16.mxu0 0
        %2253 = vmatpush1.bf16.msra.mxu0 0
        %2254 = vmatprep.mubr.bf16.mxu0 0
        %2255 = vmatmul.mubr.bf16.gmra.mrb[0].mxu0 %v2220
        %v2256 = vpop.f32.mrb[0].mxu0
        %v2257 = vadd.f32 0.0, %v2256
        %v2258 = vpop.f32.mrb[0].mxu0
        %v2259 = vpop.f32.mrb[0].mxu0
        %v2260 = vadd.f32 0.0, %v2259
        %v2261 = vpop.f32.mrb[0].mxu0
        %2262 = vdwg.mxu0
        %v2264 = vsel %vm2126, %v2216, 0
        %2266 = vmatprep.subr.bf16.mxu0 0
        %2267 = vmatpush1.bf16.msra.mxu0 %v1926
        %2268 = vmatprep.subr.bf16.mxu0 0
        %2269 = vmatpush1.bf16.msra.mxu0 0
        %2270 = vmatprep.subr.bf16.mxu0 0
        %2271 = vmatpush1.bf16.msra.mxu0 0
        %2272 = vmatprep.subr.bf16.mxu0 0
        %2273 = vmatpush1.bf16.msra.mxu0 0
        %2274 = vmatprep.subr.bf16.mxu0 0
        %2275 = vmatpush1.bf16.msra.mxu0 0
        %2276 = vmatprep.subr.bf16.mxu0 0
        %2277 = vmatpush1.bf16.msra.mxu0 0
        %2278 = vmatprep.subr.bf16.mxu0 0
        %2279 = vmatpush1.bf16.msra.mxu0 0
        %2280 = vmatprep.subr.bf16.mxu0 0
        %2281 = vmatpush1.bf16.msra.mxu0 0
        %2282 = vmatprep.subr.bf16.mxu0 0
        %2283 = vmatpush1.bf16.msra.mxu0 0
        %2284 = vmatprep.subr.bf16.mxu0 0
        %2285 = vmatpush1.bf16.msra.mxu0 0
        %2286 = vmatprep.subr.bf16.mxu0 0
        %2287 = vmatpush1.bf16.msra.mxu0 0
        %2288 = vmatprep.subr.bf16.mxu0 0
        %2289 = vmatpush1.bf16.msra.mxu0 0
        %2290 = vmatprep.subr.bf16.mxu0 0
        %2291 = vmatpush1.bf16.msra.mxu0 0
        %2292 = vmatprep.subr.bf16.mxu0 0
        %2293 = vmatpush1.bf16.msra.mxu0 0
        %2294 = vmatprep.subr.bf16.mxu0 0
        %2295 = vmatpush1.bf16.msra.mxu0 0
        %2296 = vmatprep.subr.bf16.mxu0 0
        %2297 = vmatpush1.bf16.msra.mxu0 0
        %2298 = vmatprep.mubr.bf16.mxu0 0
        %2299 = vmatmul.mubr.bf16.gmra.mrb[0].mxu0 %v2264
        %v2300 = vpop.f32.mrb[0].mxu0
        %v2301 = vadd.f32 0.0, %v2300
        %v2302 = vpop.f32.mrb[0].mxu0
        %v2303 = vpop.f32.mrb[0].mxu0
        %v2304 = vadd.f32 0.0, %v2303
        %v2305 = vpop.f32.mrb[0].mxu0
        %2306 = vdwg.mxu0
        %v2308 = vsel %vm2126, %v2217, 0
        %2310 = vmatprep.subr.bf16.mxu0 0
        %2311 = vmatpush1.bf16.msra.mxu0 %v1938
        %2312 = vmatprep.subr.bf16.mxu0 0
        %2313 = vmatpush1.bf16.msra.mxu0 0
        %2314 = vmatprep.subr.bf16.mxu0 0
        %2315 = vmatpush1.bf16.msra.mxu0 0
        %2316 = vmatprep.subr.bf16.mxu0 0
        %2317 = vmatpush1.bf16.msra.mxu0 0
        %2318 = vmatprep.subr.bf16.mxu0 0
        %2319 = vmatpush1.bf16.msra.mxu0 0
        %2320 = vmatprep.subr.bf16.mxu0 0
        %2321 = vmatpush1.bf16.msra.mxu0 0
        %2322 = vmatprep.subr.bf16.mxu0 0
        %2323 = vmatpush1.bf16.msra.mxu0 0
        %2324 = vmatprep.subr.bf16.mxu0 0
        %2325 = vmatpush1.bf16.msra.mxu0 0
        %2326 = vmatprep.subr.bf16.mxu0 0
        %2327 = vmatpush1.bf16.msra.mxu0 0
        %2328 = vmatprep.subr.bf16.mxu0 0
        %2329 = vmatpush1.bf16.msra.mxu0 0
        %2330 = vmatprep.subr.bf16.mxu0 0
        %2331 = vmatpush1.bf16.msra.mxu0 0
        %2332 = vmatprep.subr.bf16.mxu0 0
        %2333 = vmatpush1.bf16.msra.mxu0 0
        %2334 = vmatprep.subr.bf16.mxu0 0
        %2335 = vmatpush1.bf16.msra.mxu0 0
        %2336 = vmatprep.subr.bf16.mxu0 0
        %2337 = vmatpush1.bf16.msra.mxu0 0
        %2338 = vmatprep.subr.bf16.mxu0 0
        %2339 = vmatpush1.bf16.msra.mxu0 0
        %2340 = vmatprep.subr.bf16.mxu0 0
        %2341 = vmatpush1.bf16.msra.mxu0 0
        %2342 = vmatprep.mubr.bf16.mxu0 0
        %2343 = vmatmul.mubr.bf16.gmra.mrb[0].mxu0 %v2308
        %v2344 = vpop.f32.mrb[0].mxu0
        %v2345 = vadd.f32 0.0, %v2344
        %v2346 = vpop.f32.mrb[0].mxu0
        %v2347 = vpop.f32.mrb[0].mxu0
        %v2348 = vadd.f32 0.0, %v2347
        %v2349 = vpop.f32.mrb[0].mxu0
        %2350 = vdwg.mxu0
        %v2352 = vsel %vm2126, %v2218, 0
        %2354 = vmatprep.subr.bf16.mxu0 0
        %2355 = vmatpush1.bf16.msra.mxu0 %v1950
        %2356 = vmatprep.subr.bf16.mxu0 0
        %2357 = vmatpush1.bf16.msra.mxu0 0
        %2358 = vmatprep.subr.bf16.mxu0 0
        %2359 = vmatpush1.bf16.msra.mxu0 0
        %2360 = vmatprep.subr.bf16.mxu0 0
        %2361 = vmatpush1.bf16.msra.mxu0 0
        %2362 = vmatprep.subr.bf16.mxu0 0
        %2363 = vmatpush1.bf16.msra.mxu0 0
        %2364 = vmatprep.subr.bf16.mxu0 0
        %2365 = vmatpush1.bf16.msra.mxu0 0
        %2366 = vmatprep.subr.bf16.mxu0 0
        %2367 = vmatpush1.bf16.msra.mxu0 0
        %2368 = vmatprep.subr.bf16.mxu0 0
        %2369 = vmatpush1.bf16.msra.mxu0 0
        %2370 = vmatprep.subr.bf16.mxu0 0
        %2371 = vmatpush1.bf16.msra.mxu0 0
        %2372 = vmatprep.subr.bf16.mxu0 0
        %2373 = vmatpush1.bf16.msra.mxu0 0
        %2374 = vmatprep.subr.bf16.mxu0 0
        %2375 = vmatpush1.bf16.msra.mxu0 0
        %2376 = vmatprep.subr.bf16.mxu0 0
        %2377 = vmatpush1.bf16.msra.mxu0 0
        %2378 = vmatprep.subr.bf16.mxu0 0
        %2379 = vmatpush1.bf16.msra.mxu0 0
        %2380 = vmatprep.subr.bf16.mxu0 0
        %2381 = vmatpush1.bf16.msra.mxu0 0
        %2382 = vmatprep.subr.bf16.mxu0 0
        %2383 = vmatpush1.bf16.msra.mxu0 0
        %2384 = vmatprep.subr.bf16.mxu0 0
        %2385 = vmatpush1.bf16.msra.mxu0 0
        %2386 = vmatprep.mubr.bf16.mxu0 0
        %2387 = vmatmul.mubr.bf16.gmra.mrb[0].mxu0 %v2352
        %v2388 = vpop.f32.mrb[0].mxu0
        %v2389 = vadd.f32 0.0, %v2388
        %v2390 = vpop.f32.mrb[0].mxu0
        %v2391 = vpop.f32.mrb[0].mxu0
        %v2392 = vadd.f32 0.0, %v2391
        %v2393 = vpop.f32.mrb[0].mxu0
        %2394 = vdwg.mxu0
        %2395 = vmatprep.subr.bf16.mxu0 0
        %2396 = vmatpush1.bf16.xpose.msra.mxu0 %v1911
        %2397 = vmatprep.subr.bf16.mxu0 0
        %2398 = vmatpush1.bf16.xpose.msra.mxu0 0
        %2399 = vmatprep.subr.bf16.mxu0 0
        %2400 = vmatpush1.bf16.xpose.msra.mxu0 0
        %2401 = vmatprep.subr.bf16.mxu0 0
        %2402 = vmatpush1.bf16.xpose.msra.mxu0 0
        %2403 = vmatprep.subr.bf16.mxu0 0
        %2404 = vmatpush1.bf16.xpose.msra.mxu0 0
        %2405 = vmatprep.subr.bf16.mxu0 0
        %2406 = vmatpush1.bf16.xpose.msra.mxu0 0
        %2407 = vmatprep.subr.bf16.mxu0 0
        %2408 = vmatpush1.bf16.xpose.msra.mxu0 0
        %2409 = vmatprep.subr.bf16.mxu0 0
        %2410 = vmatpush1.bf16.xpose.msra.mxu0 0
        %2411 = vmatprep.subr.bf16.mxu0 0
        %2412 = vmatpush1.bf16.xpose.msra.mxu0 0
        %2413 = vmatprep.subr.bf16.mxu0 0
        %2414 = vmatpush1.bf16.xpose.msra.mxu0 0
        %2415 = vmatprep.subr.bf16.mxu0 0
        %2416 = vmatpush1.bf16.xpose.msra.mxu0 0
        %2417 = vmatprep.subr.bf16.mxu0 0
        %2418 = vmatpush1.bf16.xpose.msra.mxu0 0
        %2419 = vmatprep.subr.bf16.mxu0 0
        %2420 = vmatpush1.bf16.xpose.msra.mxu0 0
        %2421 = vmatprep.subr.bf16.mxu0 0
        %2422 = vmatpush1.bf16.xpose.msra.mxu0 0
        %2423 = vmatprep.subr.bf16.mxu0 0
        %2424 = vmatpush1.bf16.xpose.msra.mxu0 0
        %2425 = vmatprep.subr.bf16.mxu0 0
        %2426 = vmatpush1.bf16.xpose.msra.mxu0 0
        %2427 = vmatprep.mubr.bf16.mxu0 0
        %2428 = vmatmul.mubr.bf16.gmra.mrb[0].mxu0 %v1907
        %v2429 = vpop.f32.mrb[0].mxu0
        %v2430 = vadd.f32 0.0, %v2429
        %v2431 = vpop.f32.mrb[0].mxu0
        %v2432 = vpop.f32.mrb[0].mxu0
        %v2433 = vadd.f32 0.0, %v2432
        %v2434 = vpop.f32.mrb[0].mxu0
        %2435 = vdwg.mxu0
        %2436 = vmatprep.subr.bf16.mxu0 0
        %2437 = vmatpush1.bf16.xpose.msra.mxu0 %v1923
        %2438 = vmatprep.subr.bf16.mxu0 0
        %2439 = vmatpush1.bf16.xpose.msra.mxu0 0
        %2440 = vmatprep.subr.bf16.mxu0 0
        %2441 = vmatpush1.bf16.xpose.msra.mxu0 0
        %2442 = vmatprep.subr.bf16.mxu0 0
        %2443 = vmatpush1.bf16.xpose.msra.mxu0 0
        %2444 = vmatprep.subr.bf16.mxu0 0
        %2445 = vmatpush1.bf16.xpose.msra.mxu0 0
        %2446 = vmatprep.subr.bf16.mxu0 0
        %2447 = vmatpush1.bf16.xpose.msra.mxu0 0
        %2448 = vmatprep.subr.bf16.mxu0 0
        %2449 = vmatpush1.bf16.xpose.msra.mxu0 0
        %2450 = vmatprep.subr.bf16.mxu0 0
        %2451 = vmatpush1.bf16.xpose.msra.mxu0 0
        %2452 = vmatprep.subr.bf16.mxu0 0
        %2453 = vmatpush1.bf16.xpose.msra.mxu0 0
        %2454 = vmatprep.subr.bf16.mxu0 0
        %2455 = vmatpush1.bf16.xpose.msra.mxu0 0
        %2456 = vmatprep.subr.bf16.mxu0 0
        %2457 = vmatpush1.bf16.xpose.msra.mxu0 0
        %2458 = vmatprep.subr.bf16.mxu0 0
        %2459 = vmatpush1.bf16.xpose.msra.mxu0 0
        %2460 = vmatprep.subr.bf16.mxu0 0
        %2461 = vmatpush1.bf16.xpose.msra.mxu0 0
        %2462 = vmatprep.subr.bf16.mxu0 0
        %2463 = vmatpush1.bf16.xpose.msra.mxu0 0
        %2464 = vmatprep.subr.bf16.mxu0 0
        %2465 = vmatpush1.bf16.xpose.msra.mxu0 0
        %2466 = vmatprep.subr.bf16.mxu0 0
        %2467 = vmatpush1.bf16.xpose.msra.mxu0 0
        %2468 = vmatprep.mubr.bf16.mxu0 0
        %2469 = vmatmul.mubr.bf16.gmra.mrb[0].mxu0 %v1919
        %v2470 = vpop.f32.mrb[0].mxu0
        %v2471 = vadd.f32 0.0, %v2470
        %v2472 = vpop.f32.mrb[0].mxu0
        %v2473 = vpop.f32.mrb[0].mxu0
        %v2474 = vadd.f32 0.0, %v2473
        %v2475 = vpop.f32.mrb[0].mxu0
        %2476 = vdwg.mxu0
        %2477 = vmatprep.subr.bf16.mxu0 0
        %2478 = vmatpush1.bf16.xpose.msra.mxu0 %v1935
        %2479 = vmatprep.subr.bf16.mxu0 0
        %2480 = vmatpush1.bf16.xpose.msra.mxu0 0
        %2481 = vmatprep.subr.bf16.mxu0 0
        %2482 = vmatpush1.bf16.xpose.msra.mxu0 0
        %2483 = vmatprep.subr.bf16.mxu0 0
        %2484 = vmatpush1.bf16.xpose.msra.mxu0 0
        %2485 = vmatprep.subr.bf16.mxu0 0
        %2486 = vmatpush1.bf16.xpose.msra.mxu0 0
        %2487 = vmatprep.subr.bf16.mxu0 0
        %2488 = vmatpush1.bf16.xpose.msra.mxu0 0
        %2489 = vmatprep.subr.bf16.mxu0 0
        %2490 = vmatpush1.bf16.xpose.msra.mxu0 0
        %2491 = vmatprep.subr.bf16.mxu0 0
        %2492 = vmatpush1.bf16.xpose.msra.mxu0 0
        %2493 = vmatprep.subr.bf16.mxu0 0
        %2494 = vmatpush1.bf16.xpose.msra.mxu0 0
        %2495 = vmatprep.subr.bf16.mxu0 0
        %2496 = vmatpush1.bf16.xpose.msra.mxu0 0
        %2497 = vmatprep.subr.bf16.mxu0 0
        %2498 = vmatpush1.bf16.xpose.msra.mxu0 0
        %2499 = vmatprep.subr.bf16.mxu0 0
        %2500 = vmatpush1.bf16.xpose.msra.mxu0 0
        %2501 = vmatprep.subr.bf16.mxu0 0
        %2502 = vmatpush1.bf16.xpose.msra.mxu0 0
        %2503 = vmatprep.subr.bf16.mxu0 0
        %2504 = vmatpush1.bf16.xpose.msra.mxu0 0
        %2505 = vmatprep.subr.bf16.mxu0 0
        %2506 = vmatpush1.bf16.xpose.msra.mxu0 0
        %2507 = vmatprep.subr.bf16.mxu0 0
        %2508 = vmatpush1.bf16.xpose.msra.mxu0 0
        %2509 = vmatprep.mubr.bf16.mxu0 0
        %2510 = vmatmul.mubr.bf16.gmra.mrb[0].mxu0 %v1931
        %v2511 = vpop.f32.mrb[0].mxu0
        %v2512 = vadd.f32 0.0, %v2511
        %v2513 = vpop.f32.mrb[0].mxu0
        %v2514 = vpop.f32.mrb[0].mxu0
        %v2515 = vadd.f32 0.0, %v2514
        %v2516 = vpop.f32.mrb[0].mxu0
        %2517 = vdwg.mxu0
        %2518 = vmatprep.subr.bf16.mxu0 0
        %2519 = vmatpush1.bf16.xpose.msra.mxu0 %v1947
        %2520 = vmatprep.subr.bf16.mxu0 0
        %2521 = vmatpush1.bf16.xpose.msra.mxu0 0
        %2522 = vmatprep.subr.bf16.mxu0 0
        %2523 = vmatpush1.bf16.xpose.msra.mxu0 0
        %2524 = vmatprep.subr.bf16.mxu0 0
        %2525 = vmatpush1.bf16.xpose.msra.mxu0 0
        %2526 = vmatprep.subr.bf16.mxu0 0
        %2527 = vmatpush1.bf16.xpose.msra.mxu0 0
        %2528 = vmatprep.subr.bf16.mxu0 0
        %2529 = vmatpush1.bf16.xpose.msra.mxu0 0
        %2530 = vmatprep.subr.bf16.mxu0 0
        %2531 = vmatpush1.bf16.xpose.msra.mxu0 0
        %2532 = vmatprep.subr.bf16.mxu0 0
        %2533 = vmatpush1.bf16.xpose.msra.mxu0 0
        %2534 = vmatprep.subr.bf16.mxu0 0
        %2535 = vmatpush1.bf16.xpose.msra.mxu0 0
        %2536 = vmatprep.subr.bf16.mxu0 0
        %2537 = vmatpush1.bf16.xpose.msra.mxu0 0
        %2538 = vmatprep.subr.bf16.mxu0 0
        %2539 = vmatpush1.bf16.xpose.msra.mxu0 0
        %2540 = vmatprep.subr.bf16.mxu0 0
        %2541 = vmatpush1.bf16.xpose.msra.mxu0 0
        %2542 = vmatprep.subr.bf16.mxu0 0
        %2543 = vmatpush1.bf16.xpose.msra.mxu0 0
        %2544 = vmatprep.subr.bf16.mxu0 0
        %2545 = vmatpush1.bf16.xpose.msra.mxu0 0
        %2546 = vmatprep.subr.bf16.mxu0 0
        %2547 = vmatpush1.bf16.xpose.msra.mxu0 0
        %2548 = vmatprep.subr.bf16.mxu0 0
        %2549 = vmatpush1.bf16.xpose.msra.mxu0 0
        %2550 = vmatprep.mubr.bf16.mxu0 0
        %2551 = vmatmul.mubr.bf16.gmra.mrb[0].mxu0 %v1943
        %v2552 = vpop.f32.mrb[0].mxu0
        %v2553 = vadd.f32 0.0, %v2552
        %v2554 = vpop.f32.mrb[0].mxu0
        %v2555 = vpop.f32.mrb[0].mxu0
        %v2556 = vadd.f32 0.0, %v2555
        %v2557 = vpop.f32.mrb[0].mxu0
        %2558 = vdwg.mxu0
        %v2559 = vmul.f32 %v2430, 0.088388346
        %v2560 = vmul.f32 %v2433, 0.088388346
        %v2561 = vmul.f32 %v2471, 0.088388346
        %v2562 = vmul.f32 %v2474, 0.088388346
        %v2563 = vmul.f32 %v2512, 0.088388346
        %v2564 = vmul.f32 %v2515, 0.088388346
        %v2565 = vmul.f32 %v2553, 0.088388346
        %v2566 = vmul.f32 %v2556, 0.088388346
        %v2567 = vsel %vm2126, %v2559, -inf
        %2568 = vmax.xlane.f32.xlu0 %v2567
        %v2569 = vpop.xlane.xlu0 %2568
        %v2570 = vsel %vm2126, %v2560, -inf
        %2571 = vmax.xlane.f32.xlu0 %v2570
        %v2572 = vpop.xlane.xlu0 %2571
        %v2573 = vsel %vm2126, %v2561, -inf
        %2574 = vmax.xlane.f32.xlu0 %v2573
        %v2575 = vpop.xlane.xlu0 %2574
        %v2576 = vsel %vm2126, %v2562, -inf
        %2577 = vmax.xlane.f32.xlu0 %v2576
        %v2578 = vpop.xlane.xlu0 %2577
        %v2579 = vsel %vm2126, %v2563, -inf
        %2580 = vmax.xlane.f32.xlu0 %v2579
        %v2581 = vpop.xlane.xlu0 %2580
        %v2582 = vsel %vm2126, %v2564, -inf
        %2583 = vmax.xlane.f32.xlu0 %v2582
        %v2584 = vpop.xlane.xlu0 %2583
        %v2585 = vsel %vm2126, %v2565, -inf
        %2586 = vmax.xlane.f32.xlu0 %v2585
        %v2587 = vpop.xlane.xlu0 %2586
        %v2588 = vsel %vm2126, %v2566, -inf
        %2589 = vmax.xlane.f32.xlu0 %v2588
        %v2590 = vpop.xlane.xlu0 %2589
        %v2591 = vsub.f32 %v2559, %v2569
        %v2592 = vsub.f32 %v2560, %v2572
        %v2593 = vsub.f32 %v2561, %v2575
        %v2594 = vsub.f32 %v2562, %v2578
        %v2595 = vsub.f32 %v2563, %v2581
        %v2596 = vsub.f32 %v2564, %v2584
        %v2597 = vsub.f32 %v2565, %v2587
        %v2598 = vsub.f32 %v2566, %v2590
        %v2599 = vmul.f32 %v2591, 1.442695
        %v2600 = vpow.pop %v2599
        %v2601 = vmul.f32 %v2592, 1.442695
        %v2602 = vpow.pop %v2601
        %v2603 = vmul.f32 %v2593, 1.442695
        %v2604 = vpow.pop %v2603
        %v2605 = vmul.f32 %v2594, 1.442695
        %v2606 = vpow.pop %v2605
        %v2607 = vmul.f32 %v2595, 1.442695
        %v2608 = vpow.pop %v2607
        %v2609 = vmul.f32 %v2596, 1.442695
        %v2610 = vpow.pop %v2609
        %v2611 = vmul.f32 %v2597, 1.442695
        %v2612 = vpow.pop %v2611
        %v2613 = vmul.f32 %v2598, 1.442695
        %v2614 = vpow.pop %v2613
        %v2615 = vsel %vm2126, %v2600, 0.0
        %2616 = vadd.xlane.f32.xlu0 %v2615
        %v2617 = vpop.xlane.xlu0 %2616
        %v2618 = vsel %vm2126, %v2602, 0.0
        %2619 = vadd.xlane.f32.xlu0 %v2618
        %v2620 = vpop.xlane.xlu0 %2619
        %v2621 = vsel %vm2126, %v2604, 0.0
        %2622 = vadd.xlane.f32.xlu0 %v2621
        %v2623 = vpop.xlane.xlu0 %2622
        %v2624 = vsel %vm2126, %v2606, 0.0
        %2625 = vadd.xlane.f32.xlu0 %v2624
        %v2626 = vpop.xlane.xlu0 %2625
        %v2627 = vsel %vm2126, %v2608, 0.0
        %2628 = vadd.xlane.f32.xlu0 %v2627
        %v2629 = vpop.xlane.xlu0 %2628
        %v2630 = vsel %vm2126, %v2610, 0.0
        %2631 = vadd.xlane.f32.xlu0 %v2630
        %v2632 = vpop.xlane.xlu0 %2631
        %v2633 = vsel %vm2126, %v2612, 0.0
        %2634 = vadd.xlane.f32.xlu0 %v2633
        %v2635 = vpop.xlane.xlu0 %2634
        %v2636 = vsel %vm2126, %v2614, 0.0
        %2637 = vadd.xlane.f32.xlu0 %v2636
        %v2638 = vpop.xlane.xlu0 %2637
        %v2639 = vrcp.pop %v2617
        %v2640 = vrcp.pop %v2620
        %v2641 = vrcp.pop %v2623
        %v2642 = vrcp.pop %v2626
        %v2643 = vrcp.pop %v2629
        %v2644 = vrcp.pop %v2632
        %v2645 = vrcp.pop %v2635
        %v2646 = vrcp.pop %v2638
        %v2647 = vmul.f32 %v2600, %v2639
        %v2648 = vmul.f32 %v2602, %v2640
        %v2649 = vmul.f32 %v2604, %v2641
        %v2650 = vmul.f32 %v2606, %v2642
        %v2651 = vmul.f32 %v2608, %v2643
        %v2652 = vmul.f32 %v2610, %v2644
        %v2653 = vmul.f32 %v2612, %v2645
        %v2654 = vmul.f32 %v2614, %v2646
        %v2655 = vpack.c.bf16 %v2648, %v2647
        %v2656 = vpack.c.bf16 %v2650, %v2649
        %v2657 = vpack.c.bf16 %v2652, %v2651
        %v2658 = vpack.c.bf16 %v2654, %v2653
        %v2660 = vsel %vm2126, %v2655, 0
        %2662 = vmatprep.subr.bf16.mxu0 0
        %2663 = vmatpush1.bf16.msra.mxu0 %v1915
        %2664 = vmatprep.subr.bf16.mxu0 0
        %2665 = vmatpush1.bf16.msra.mxu0 0
        %2666 = vmatprep.subr.bf16.mxu0 0
        %2667 = vmatpush1.bf16.msra.mxu0 0
        %2668 = vmatprep.subr.bf16.mxu0 0
        %2669 = vmatpush1.bf16.msra.mxu0 0
        %2670 = vmatprep.subr.bf16.mxu0 0
        %2671 = vmatpush1.bf16.msra.mxu0 0
        %2672 = vmatprep.subr.bf16.mxu0 0
        %2673 = vmatpush1.bf16.msra.mxu0 0
        %2674 = vmatprep.subr.bf16.mxu0 0
        %2675 = vmatpush1.bf16.msra.mxu0 0
        %2676 = vmatprep.subr.bf16.mxu0 0
        %2677 = vmatpush1.bf16.msra.mxu0 0
        %2678 = vmatprep.subr.bf16.mxu0 0
        %2679 = vmatpush1.bf16.msra.mxu0 0
        %2680 = vmatprep.subr.bf16.mxu0 0
        %2681 = vmatpush1.bf16.msra.mxu0 0
        %2682 = vmatprep.subr.bf16.mxu0 0
        %2683 = vmatpush1.bf16.msra.mxu0 0
        %2684 = vmatprep.subr.bf16.mxu0 0
        %2685 = vmatpush1.bf16.msra.mxu0 0
        %2686 = vmatprep.subr.bf16.mxu0 0
        %2687 = vmatpush1.bf16.msra.mxu0 0
        %2688 = vmatprep.subr.bf16.mxu0 0
        %2689 = vmatpush1.bf16.msra.mxu0 0
        %2690 = vmatprep.subr.bf16.mxu0 0
        %2691 = vmatpush1.bf16.msra.mxu0 0
        %2692 = vmatprep.subr.bf16.mxu0 0
        %2693 = vmatpush1.bf16.msra.mxu0 0
        %2694 = vmatprep.mubr.bf16.mxu0 0
        %2695 = vmatmul.mubr.bf16.gmra.mrb[0].mxu0 %v2660
        %v2696 = vpop.f32.mrb[0].mxu0
        %v2697 = vadd.f32 0.0, %v2696
        %v2698 = vpop.f32.mrb[0].mxu0
        %v2699 = vpop.f32.mrb[0].mxu0
        %v2700 = vadd.f32 0.0, %v2699
        %v2701 = vpop.f32.mrb[0].mxu0
        %2702 = vdwg.mxu0
        %v2704 = vsel %vm2126, %v2656, 0
        %2706 = vmatprep.subr.bf16.mxu0 0
        %2707 = vmatpush1.bf16.msra.mxu0 %v1927
        %2708 = vmatprep.subr.bf16.mxu0 0
        %2709 = vmatpush1.bf16.msra.mxu0 0
        %2710 = vmatprep.subr.bf16.mxu0 0
        %2711 = vmatpush1.bf16.msra.mxu0 0
        %2712 = vmatprep.subr.bf16.mxu0 0
        %2713 = vmatpush1.bf16.msra.mxu0 0
        %2714 = vmatprep.subr.bf16.mxu0 0
        %2715 = vmatpush1.bf16.msra.mxu0 0
        %2716 = vmatprep.subr.bf16.mxu0 0
        %2717 = vmatpush1.bf16.msra.mxu0 0
        %2718 = vmatprep.subr.bf16.mxu0 0
        %2719 = vmatpush1.bf16.msra.mxu0 0
        %2720 = vmatprep.subr.bf16.mxu0 0
        %2721 = vmatpush1.bf16.msra.mxu0 0
        %2722 = vmatprep.subr.bf16.mxu0 0
        %2723 = vmatpush1.bf16.msra.mxu0 0
        %2724 = vmatprep.subr.bf16.mxu0 0
        %2725 = vmatpush1.bf16.msra.mxu0 0
        %2726 = vmatprep.subr.bf16.mxu0 0
        %2727 = vmatpush1.bf16.msra.mxu0 0
        %2728 = vmatprep.subr.bf16.mxu0 0
        %2729 = vmatpush1.bf16.msra.mxu0 0
        %2730 = vmatprep.subr.bf16.mxu0 0
        %2731 = vmatpush1.bf16.msra.mxu0 0
        %2732 = vmatprep.subr.bf16.mxu0 0
        %2733 = vmatpush1.bf16.msra.mxu0 0
        %2734 = vmatprep.subr.bf16.mxu0 0
        %2735 = vmatpush1.bf16.msra.mxu0 0
        %2736 = vmatprep.subr.bf16.mxu0 0
        %2737 = vmatpush1.bf16.msra.mxu0 0
        %2738 = vmatprep.mubr.bf16.mxu0 0
        %2739 = vmatmul.mubr.bf16.gmra.mrb[0].mxu0 %v2704
        %v2740 = vpop.f32.mrb[0].mxu0
        %v2741 = vadd.f32 0.0, %v2740
        %v2742 = vpop.f32.mrb[0].mxu0
        %v2743 = vpop.f32.mrb[0].mxu0
        %v2744 = vadd.f32 0.0, %v2743
        %v2745 = vpop.f32.mrb[0].mxu0
        %2746 = vdwg.mxu0
        %v2748 = vsel %vm2126, %v2657, 0
        %2750 = vmatprep.subr.bf16.mxu0 0
        %2751 = vmatpush1.bf16.msra.mxu0 %v1939
        %2752 = vmatprep.subr.bf16.mxu0 0
        %2753 = vmatpush1.bf16.msra.mxu0 0
        %2754 = vmatprep.subr.bf16.mxu0 0
        %2755 = vmatpush1.bf16.msra.mxu0 0
        %2756 = vmatprep.subr.bf16.mxu0 0
        %2757 = vmatpush1.bf16.msra.mxu0 0
        %2758 = vmatprep.subr.bf16.mxu0 0
        %2759 = vmatpush1.bf16.msra.mxu0 0
        %2760 = vmatprep.subr.bf16.mxu0 0
        %2761 = vmatpush1.bf16.msra.mxu0 0
        %2762 = vmatprep.subr.bf16.mxu0 0
        %2763 = vmatpush1.bf16.msra.mxu0 0
        %2764 = vmatprep.subr.bf16.mxu0 0
        %2765 = vmatpush1.bf16.msra.mxu0 0
        %2766 = vmatprep.subr.bf16.mxu0 0
        %2767 = vmatpush1.bf16.msra.mxu0 0
        %2768 = vmatprep.subr.bf16.mxu0 0
        %2769 = vmatpush1.bf16.msra.mxu0 0
        %2770 = vmatprep.subr.bf16.mxu0 0
        %2771 = vmatpush1.bf16.msra.mxu0 0
        %2772 = vmatprep.subr.bf16.mxu0 0
        %2773 = vmatpush1.bf16.msra.mxu0 0
        %2774 = vmatprep.subr.bf16.mxu0 0
        %2775 = vmatpush1.bf16.msra.mxu0 0
        %2776 = vmatprep.subr.bf16.mxu0 0
        %2777 = vmatpush1.bf16.msra.mxu0 0
        %2778 = vmatprep.subr.bf16.mxu0 0
        %2779 = vmatpush1.bf16.msra.mxu0 0
        %2780 = vmatprep.subr.bf16.mxu0 0
        %2781 = vmatpush1.bf16.msra.mxu0 0
        %2782 = vmatprep.mubr.bf16.mxu0 0
        %2783 = vmatmul.mubr.bf16.gmra.mrb[0].mxu0 %v2748
        %v2784 = vpop.f32.mrb[0].mxu0
        %v2785 = vadd.f32 0.0, %v2784
        %v2786 = vpop.f32.mrb[0].mxu0
        %v2787 = vpop.f32.mrb[0].mxu0
        %v2788 = vadd.f32 0.0, %v2787
        %v2789 = vpop.f32.mrb[0].mxu0
        %2790 = vdwg.mxu0
        %v2792 = vsel %vm2126, %v2658, 0
        %2794 = vmatprep.subr.bf16.mxu0 0
        %2795 = vmatpush1.bf16.msra.mxu0 %v1951
        %2796 = vmatprep.subr.bf16.mxu0 0
        %2797 = vmatpush1.bf16.msra.mxu0 0
        %2798 = vmatprep.subr.bf16.mxu0 0
        %2799 = vmatpush1.bf16.msra.mxu0 0
        %2800 = vmatprep.subr.bf16.mxu0 0
        %2801 = vmatpush1.bf16.msra.mxu0 0
        %2802 = vmatprep.subr.bf16.mxu0 0
        %2803 = vmatpush1.bf16.msra.mxu0 0
        %2804 = vmatprep.subr.bf16.mxu0 0
        %2805 = vmatpush1.bf16.msra.mxu0 0
        %2806 = vmatprep.subr.bf16.mxu0 0
        %2807 = vmatpush1.bf16.msra.mxu0 0
        %2808 = vmatprep.subr.bf16.mxu0 0
        %2809 = vmatpush1.bf16.msra.mxu0 0
        %2810 = vmatprep.subr.bf16.mxu0 0
        %2811 = vmatpush1.bf16.msra.mxu0 0
        %2812 = vmatprep.subr.bf16.mxu0 0
        %2813 = vmatpush1.bf16.msra.mxu0 0
        %2814 = vmatprep.subr.bf16.mxu0 0
        %2815 = vmatpush1.bf16.msra.mxu0 0
        %2816 = vmatprep.subr.bf16.mxu0 0
        %2817 = vmatpush1.bf16.msra.mxu0 0
        %2818 = vmatprep.subr.bf16.mxu0 0
        %2819 = vmatpush1.bf16.msra.mxu0 0
        %2820 = vmatprep.subr.bf16.mxu0 0
        %2821 = vmatpush1.bf16.msra.mxu0 0
        %2822 = vmatprep.subr.bf16.mxu0 0
        %2823 = vmatpush1.bf16.msra.mxu0 0
        %2824 = vmatprep.subr.bf16.mxu0 0
        %2825 = vmatpush1.bf16.msra.mxu0 0
        %2826 = vmatprep.mubr.bf16.mxu0 0
        %2827 = vmatmul.mubr.bf16.gmra.mrb[0].mxu0 %v2792
        %v2828 = vpop.f32.mrb[0].mxu0
        %v2829 = vadd.f32 0.0, %v2828
        %v2830 = vpop.f32.mrb[0].mxu0
        %v2831 = vpop.f32.mrb[0].mxu0
        %v2832 = vadd.f32 0.0, %v2831
        %v2833 = vpop.f32.mrb[0].mxu0
        %2834 = vdwg.mxu0
        %2835 = vmatprep.subr.bf16.mxu0 0
        %2836 = vmatpush1.bf16.xpose.msra.mxu0 %v1912
        %2837 = vmatprep.subr.bf16.mxu0 0
        %2838 = vmatpush1.bf16.xpose.msra.mxu0 0
        %2839 = vmatprep.subr.bf16.mxu0 0
        %2840 = vmatpush1.bf16.xpose.msra.mxu0 0
        %2841 = vmatprep.subr.bf16.mxu0 0
        %2842 = vmatpush1.bf16.xpose.msra.mxu0 0
        %2843 = vmatprep.subr.bf16.mxu0 0
        %2844 = vmatpush1.bf16.xpose.msra.mxu0 0
        %2845 = vmatprep.subr.bf16.mxu0 0
        %2846 = vmatpush1.bf16.xpose.msra.mxu0 0
        %2847 = vmatprep.subr.bf16.mxu0 0
        %2848 = vmatpush1.bf16.xpose.msra.mxu0 0
        %2849 = vmatprep.subr.bf16.mxu0 0
        %2850 = vmatpush1.bf16.xpose.msra.mxu0 0
        %2851 = vmatprep.subr.bf16.mxu0 0
        %2852 = vmatpush1.bf16.xpose.msra.mxu0 0
        %2853 = vmatprep.subr.bf16.mxu0 0
        %2854 = vmatpush1.bf16.xpose.msra.mxu0 0
        %2855 = vmatprep.subr.bf16.mxu0 0
        %2856 = vmatpush1.bf16.xpose.msra.mxu0 0
        %2857 = vmatprep.subr.bf16.mxu0 0
        %2858 = vmatpush1.bf16.xpose.msra.mxu0 0
        %2859 = vmatprep.subr.bf16.mxu0 0
        %2860 = vmatpush1.bf16.xpose.msra.mxu0 0
        %2861 = vmatprep.subr.bf16.mxu0 0
        %2862 = vmatpush1.bf16.xpose.msra.mxu0 0
        %2863 = vmatprep.subr.bf16.mxu0 0
        %2864 = vmatpush1.bf16.xpose.msra.mxu0 0
        %2865 = vmatprep.subr.bf16.mxu0 0
        %2866 = vmatpush1.bf16.xpose.msra.mxu0 0
        %2867 = vmatprep.mubr.bf16.mxu0 0
        %2868 = vmatmul.mubr.bf16.gmra.mrb[0].mxu0 %v1908
        %v2869 = vpop.f32.mrb[0].mxu0
        %v2870 = vadd.f32 0.0, %v2869
        %v2871 = vpop.f32.mrb[0].mxu0
        %v2872 = vpop.f32.mrb[0].mxu0
        %v2873 = vadd.f32 0.0, %v2872
        %v2874 = vpop.f32.mrb[0].mxu0
        %2875 = vdwg.mxu0
        %2876 = vmatprep.subr.bf16.mxu0 0
        %2877 = vmatpush1.bf16.xpose.msra.mxu0 %v1924
        %2878 = vmatprep.subr.bf16.mxu0 0
        %2879 = vmatpush1.bf16.xpose.msra.mxu0 0
        %2880 = vmatprep.subr.bf16.mxu0 0
        %2881 = vmatpush1.bf16.xpose.msra.mxu0 0
        %2882 = vmatprep.subr.bf16.mxu0 0
        %2883 = vmatpush1.bf16.xpose.msra.mxu0 0
        %2884 = vmatprep.subr.bf16.mxu0 0
        %2885 = vmatpush1.bf16.xpose.msra.mxu0 0
        %2886 = vmatprep.subr.bf16.mxu0 0
        %2887 = vmatpush1.bf16.xpose.msra.mxu0 0
        %2888 = vmatprep.subr.bf16.mxu0 0
        %2889 = vmatpush1.bf16.xpose.msra.mxu0 0
        %2890 = vmatprep.subr.bf16.mxu0 0
        %2891 = vmatpush1.bf16.xpose.msra.mxu0 0
        %2892 = vmatprep.subr.bf16.mxu0 0
        %2893 = vmatpush1.bf16.xpose.msra.mxu0 0
        %2894 = vmatprep.subr.bf16.mxu0 0
        %2895 = vmatpush1.bf16.xpose.msra.mxu0 0
        %2896 = vmatprep.subr.bf16.mxu0 0
        %2897 = vmatpush1.bf16.xpose.msra.mxu0 0
        %2898 = vmatprep.subr.bf16.mxu0 0
        %2899 = vmatpush1.bf16.xpose.msra.mxu0 0
        %2900 = vmatprep.subr.bf16.mxu0 0
        %2901 = vmatpush1.bf16.xpose.msra.mxu0 0
        %2902 = vmatprep.subr.bf16.mxu0 0
        %2903 = vmatpush1.bf16.xpose.msra.mxu0 0
        %2904 = vmatprep.subr.bf16.mxu0 0
        %2905 = vmatpush1.bf16.xpose.msra.mxu0 0
        %2906 = vmatprep.subr.bf16.mxu0 0
        %2907 = vmatpush1.bf16.xpose.msra.mxu0 0
        %2908 = vmatprep.mubr.bf16.mxu0 0
        %2909 = vmatmul.mubr.bf16.gmra.mrb[0].mxu0 %v1920
        %v2910 = vpop.f32.mrb[0].mxu0
        %v2911 = vadd.f32 0.0, %v2910
        %v2912 = vpop.f32.mrb[0].mxu0
        %v2913 = vpop.f32.mrb[0].mxu0
        %v2914 = vadd.f32 0.0, %v2913
        %v2915 = vpop.f32.mrb[0].mxu0
        %2916 = vdwg.mxu0
        %2917 = vmatprep.subr.bf16.mxu0 0
        %2918 = vmatpush1.bf16.xpose.msra.mxu0 %v1936
        %2919 = vmatprep.subr.bf16.mxu0 0
        %2920 = vmatpush1.bf16.xpose.msra.mxu0 0
        %2921 = vmatprep.subr.bf16.mxu0 0
        %2922 = vmatpush1.bf16.xpose.msra.mxu0 0
        %2923 = vmatprep.subr.bf16.mxu0 0
        %2924 = vmatpush1.bf16.xpose.msra.mxu0 0
        %2925 = vmatprep.subr.bf16.mxu0 0
        %2926 = vmatpush1.bf16.xpose.msra.mxu0 0
        %2927 = vmatprep.subr.bf16.mxu0 0
        %2928 = vmatpush1.bf16.xpose.msra.mxu0 0
        %2929 = vmatprep.subr.bf16.mxu0 0
        %2930 = vmatpush1.bf16.xpose.msra.mxu0 0
        %2931 = vmatprep.subr.bf16.mxu0 0
        %2932 = vmatpush1.bf16.xpose.msra.mxu0 0
        %2933 = vmatprep.subr.bf16.mxu0 0
        %2934 = vmatpush1.bf16.xpose.msra.mxu0 0
        %2935 = vmatprep.subr.bf16.mxu0 0
        %2936 = vmatpush1.bf16.xpose.msra.mxu0 0
        %2937 = vmatprep.subr.bf16.mxu0 0
        %2938 = vmatpush1.bf16.xpose.msra.mxu0 0
        %2939 = vmatprep.subr.bf16.mxu0 0
        %2940 = vmatpush1.bf16.xpose.msra.mxu0 0
        %2941 = vmatprep.subr.bf16.mxu0 0
        %2942 = vmatpush1.bf16.xpose.msra.mxu0 0
        %2943 = vmatprep.subr.bf16.mxu0 0
        %2944 = vmatpush1.bf16.xpose.msra.mxu0 0
        %2945 = vmatprep.subr.bf16.mxu0 0
        %2946 = vmatpush1.bf16.xpose.msra.mxu0 0
        %2947 = vmatprep.subr.bf16.mxu0 0
        %2948 = vmatpush1.bf16.xpose.msra.mxu0 0
        %2949 = vmatprep.mubr.bf16.mxu0 0
        %2950 = vmatmul.mubr.bf16.gmra.mrb[0].mxu0 %v1932
        %v2951 = vpop.f32.mrb[0].mxu0
        %v2952 = vadd.f32 0.0, %v2951
        %v2953 = vpop.f32.mrb[0].mxu0
        %v2954 = vpop.f32.mrb[0].mxu0
        %v2955 = vadd.f32 0.0, %v2954
        %v2956 = vpop.f32.mrb[0].mxu0
        %2957 = vdwg.mxu0
        %2958 = vmatprep.subr.bf16.mxu0 0
        %2959 = vmatpush1.bf16.xpose.msra.mxu0 %v1948
        %2960 = vmatprep.subr.bf16.mxu0 0
        %2961 = vmatpush1.bf16.xpose.msra.mxu0 0
        %2962 = vmatprep.subr.bf16.mxu0 0
        %2963 = vmatpush1.bf16.xpose.msra.mxu0 0
        %2964 = vmatprep.subr.bf16.mxu0 0
        %2965 = vmatpush1.bf16.xpose.msra.mxu0 0
        %2966 = vmatprep.subr.bf16.mxu0 0
        %2967 = vmatpush1.bf16.xpose.msra.mxu0 0
        %2968 = vmatprep.subr.bf16.mxu0 0
        %2969 = vmatpush1.bf16.xpose.msra.mxu0 0
        %2970 = vmatprep.subr.bf16.mxu0 0
        %2971 = vmatpush1.bf16.xpose.msra.mxu0 0
        %2972 = vmatprep.subr.bf16.mxu0 0
        %2973 = vmatpush1.bf16.xpose.msra.mxu0 0
        %2974 = vmatprep.subr.bf16.mxu0 0
        %2975 = vmatpush1.bf16.xpose.msra.mxu0 0
        %2976 = vmatprep.subr.bf16.mxu0 0
        %2977 = vmatpush1.bf16.xpose.msra.mxu0 0
        %2978 = vmatprep.subr.bf16.mxu0 0
        %2979 = vmatpush1.bf16.xpose.msra.mxu0 0
        %2980 = vmatprep.subr.bf16.mxu0 0
        %2981 = vmatpush1.bf16.xpose.msra.mxu0 0
        %2982 = vmatprep.subr.bf16.mxu0 0
        %2983 = vmatpush1.bf16.xpose.msra.mxu0 0
        %2984 = vmatprep.subr.bf16.mxu0 0
        %2985 = vmatpush1.bf16.xpose.msra.mxu0 0
        %2986 = vmatprep.subr.bf16.mxu0 0
        %2987 = vmatpush1.bf16.xpose.msra.mxu0 0
        %2988 = vmatprep.subr.bf16.mxu0 0
        %2989 = vmatpush1.bf16.xpose.msra.mxu0 0
        %2990 = vmatprep.mubr.bf16.mxu0 0
        %2991 = vmatmul.mubr.bf16.gmra.mrb[0].mxu0 %v1944
        %v2992 = vpop.f32.mrb[0].mxu0
        %v2993 = vadd.f32 0.0, %v2992
        %v2994 = vpop.f32.mrb[0].mxu0
        %v2995 = vpop.f32.mrb[0].mxu0
        %v2996 = vadd.f32 0.0, %v2995
        %v2997 = vpop.f32.mrb[0].mxu0
        %2998 = vdwg.mxu0
        %v2999 = vmul.f32 %v2870, 0.088388346
        %v3000 = vmul.f32 %v2873, 0.088388346
        %v3001 = vmul.f32 %v2911, 0.088388346
        %v3002 = vmul.f32 %v2914, 0.088388346
        %v3003 = vmul.f32 %v2952, 0.088388346
        %v3004 = vmul.f32 %v2955, 0.088388346
        %v3005 = vmul.f32 %v2993, 0.088388346
        %v3006 = vmul.f32 %v2996, 0.088388346
        %v3007 = vsel %vm2126, %v2999, -inf
        %3008 = vmax.xlane.f32.xlu0 %v3007
        %v3009 = vpop.xlane.xlu0 %3008
        %v3010 = vsel %vm2126, %v3000, -inf
        %3011 = vmax.xlane.f32.xlu0 %v3010
        %v3012 = vpop.xlane.xlu0 %3011
        %v3013 = vsel %vm2126, %v3001, -inf
        %3014 = vmax.xlane.f32.xlu0 %v3013
        %v3015 = vpop.xlane.xlu0 %3014
        %v3016 = vsel %vm2126, %v3002, -inf
        %3017 = vmax.xlane.f32.xlu0 %v3016
        %v3018 = vpop.xlane.xlu0 %3017
        %v3019 = vsel %vm2126, %v3003, -inf
        %3020 = vmax.xlane.f32.xlu0 %v3019
        %v3021 = vpop.xlane.xlu0 %3020
        %v3022 = vsel %vm2126, %v3004, -inf
        %3023 = vmax.xlane.f32.xlu0 %v3022
        %v3024 = vpop.xlane.xlu0 %3023
        %v3025 = vsel %vm2126, %v3005, -inf
        %3026 = vmax.xlane.f32.xlu0 %v3025
        %v3027 = vpop.xlane.xlu0 %3026
        %v3028 = vsel %vm2126, %v3006, -inf
        %3029 = vmax.xlane.f32.xlu0 %v3028
        %v3030 = vpop.xlane.xlu0 %3029
        %v3031 = vsub.f32 %v2999, %v3009
        %v3032 = vsub.f32 %v3000, %v3012
        %v3033 = vsub.f32 %v3001, %v3015
        %v3034 = vsub.f32 %v3002, %v3018
        %v3035 = vsub.f32 %v3003, %v3021
        %v3036 = vsub.f32 %v3004, %v3024
        %v3037 = vsub.f32 %v3005, %v3027
        %v3038 = vsub.f32 %v3006, %v3030
        %v3039 = vmul.f32 %v3031, 1.442695
        %v3040 = vpow.pop %v3039
        %v3041 = vmul.f32 %v3032, 1.442695
        %v3042 = vpow.pop %v3041
        %v3043 = vmul.f32 %v3033, 1.442695
        %v3044 = vpow.pop %v3043
        %v3045 = vmul.f32 %v3034, 1.442695
        %v3046 = vpow.pop %v3045
        %v3047 = vmul.f32 %v3035, 1.442695
        %v3048 = vpow.pop %v3047
        %v3049 = vmul.f32 %v3036, 1.442695
        %v3050 = vpow.pop %v3049
        %v3051 = vmul.f32 %v3037, 1.442695
        %v3052 = vpow.pop %v3051
        %v3053 = vmul.f32 %v3038, 1.442695
        %v3054 = vpow.pop %v3053
        %v3055 = vsel %vm2126, %v3040, 0.0
        %3056 = vadd.xlane.f32.xlu0 %v3055
        %v3057 = vpop.xlane.xlu0 %3056
        %v3058 = vsel %vm2126, %v3042, 0.0
        %3059 = vadd.xlane.f32.xlu0 %v3058
        %v3060 = vpop.xlane.xlu0 %3059
        %v3061 = vsel %vm2126, %v3044, 0.0
        %3062 = vadd.xlane.f32.xlu0 %v3061
        %v3063 = vpop.xlane.xlu0 %3062
        %v3064 = vsel %vm2126, %v3046, 0.0
        %3065 = vadd.xlane.f32.xlu0 %v3064
        %v3066 = vpop.xlane.xlu0 %3065
        %v3067 = vsel %vm2126, %v3048, 0.0
        %3068 = vadd.xlane.f32.xlu0 %v3067
        %v3069 = vpop.xlane.xlu0 %3068
        %v3070 = vsel %vm2126, %v3050, 0.0
        %3071 = vadd.xlane.f32.xlu0 %v3070
        %v3072 = vpop.xlane.xlu0 %3071
        %v3073 = vsel %vm2126, %v3052, 0.0
        %3074 = vadd.xlane.f32.xlu0 %v3073
        %v3075 = vpop.xlane.xlu0 %3074
        %v3076 = vsel %vm2126, %v3054, 0.0
        %3077 = vadd.xlane.f32.xlu0 %v3076
        %v3078 = vpop.xlane.xlu0 %3077
        %v3079 = vrcp.pop %v3057
        %v3080 = vrcp.pop %v3060
        %v3081 = vrcp.pop %v3063
        %v3082 = vrcp.pop %v3066
        %v3083 = vrcp.pop %v3069
        %v3084 = vrcp.pop %v3072
        %v3085 = vrcp.pop %v3075
        %v3086 = vrcp.pop %v3078
        %v3087 = vmul.f32 %v3040, %v3079
        %v3088 = vmul.f32 %v3042, %v3080
        %v3089 = vmul.f32 %v3044, %v3081
        %v3090 = vmul.f32 %v3046, %v3082
        %v3091 = vmul.f32 %v3048, %v3083
        %v3092 = vmul.f32 %v3050, %v3084
        %v3093 = vmul.f32 %v3052, %v3085
        %v3094 = vmul.f32 %v3054, %v3086
        %v3095 = vpack.c.bf16 %v3088, %v3087
        %v3096 = vpack.c.bf16 %v3090, %v3089
        %v3097 = vpack.c.bf16 %v3092, %v3091
        %v3098 = vpack.c.bf16 %v3094, %v3093
        %v3100 = vsel %vm2126, %v3095, 0
        %3102 = vmatprep.subr.bf16.mxu0 0
        %3103 = vmatpush1.bf16.msra.mxu0 %v1916
        %3104 = vmatprep.subr.bf16.mxu0 0
        %3105 = vmatpush1.bf16.msra.mxu0 0
        %3106 = vmatprep.subr.bf16.mxu0 0
        %3107 = vmatpush1.bf16.msra.mxu0 0
        %3108 = vmatprep.subr.bf16.mxu0 0
        %3109 = vmatpush1.bf16.msra.mxu0 0
        %3110 = vmatprep.subr.bf16.mxu0 0
        %3111 = vmatpush1.bf16.msra.mxu0 0
        %3112 = vmatprep.subr.bf16.mxu0 0
        %3113 = vmatpush1.bf16.msra.mxu0 0
        %3114 = vmatprep.subr.bf16.mxu0 0
        %3115 = vmatpush1.bf16.msra.mxu0 0
        %3116 = vmatprep.subr.bf16.mxu0 0
        %3117 = vmatpush1.bf16.msra.mxu0 0
        %3118 = vmatprep.subr.bf16.mxu0 0
        %3119 = vmatpush1.bf16.msra.mxu0 0
        %3120 = vmatprep.subr.bf16.mxu0 0
        %3121 = vmatpush1.bf16.msra.mxu0 0
        %3122 = vmatprep.subr.bf16.mxu0 0
        %3123 = vmatpush1.bf16.msra.mxu0 0
        %3124 = vmatprep.subr.bf16.mxu0 0
        %3125 = vmatpush1.bf16.msra.mxu0 0
        %3126 = vmatprep.subr.bf16.mxu0 0
        %3127 = vmatpush1.bf16.msra.mxu0 0
        %3128 = vmatprep.subr.bf16.mxu0 0
        %3129 = vmatpush1.bf16.msra.mxu0 0
        %3130 = vmatprep.subr.bf16.mxu0 0
        %3131 = vmatpush1.bf16.msra.mxu0 0
        %3132 = vmatprep.subr.bf16.mxu0 0
        %3133 = vmatpush1.bf16.msra.mxu0 0
        %3134 = vmatprep.mubr.bf16.mxu0 0
        %3135 = vmatmul.mubr.bf16.gmra.mrb[0].mxu0 %v3100
        %v3136 = vpop.f32.mrb[0].mxu0
        %v3137 = vadd.f32 0.0, %v3136
        %v3138 = vpop.f32.mrb[0].mxu0
        %v3139 = vpop.f32.mrb[0].mxu0
        %v3140 = vadd.f32 0.0, %v3139
        %v3141 = vpop.f32.mrb[0].mxu0
        %3142 = vdwg.mxu0
        %v3144 = vsel %vm2126, %v3096, 0
        %3146 = vmatprep.subr.bf16.mxu0 0
        %3147 = vmatpush1.bf16.msra.mxu0 %v1928
        %3148 = vmatprep.subr.bf16.mxu0 0
        %3149 = vmatpush1.bf16.msra.mxu0 0
        %3150 = vmatprep.subr.bf16.mxu0 0
        %3151 = vmatpush1.bf16.msra.mxu0 0
        %3152 = vmatprep.subr.bf16.mxu0 0
        %3153 = vmatpush1.bf16.msra.mxu0 0
        %3154 = vmatprep.subr.bf16.mxu0 0
        %3155 = vmatpush1.bf16.msra.mxu0 0
        %3156 = vmatprep.subr.bf16.mxu0 0
        %3157 = vmatpush1.bf16.msra.mxu0 0
        %3158 = vmatprep.subr.bf16.mxu0 0
        %3159 = vmatpush1.bf16.msra.mxu0 0
        %3160 = vmatprep.subr.bf16.mxu0 0
        %3161 = vmatpush1.bf16.msra.mxu0 0
        %3162 = vmatprep.subr.bf16.mxu0 0
        %3163 = vmatpush1.bf16.msra.mxu0 0
        %3164 = vmatprep.subr.bf16.mxu0 0
        %3165 = vmatpush1.bf16.msra.mxu0 0
        %3166 = vmatprep.subr.bf16.mxu0 0
        %3167 = vmatpush1.bf16.msra.mxu0 0
        %3168 = vmatprep.subr.bf16.mxu0 0
        %3169 = vmatpush1.bf16.msra.mxu0 0
        %3170 = vmatprep.subr.bf16.mxu0 0
        %3171 = vmatpush1.bf16.msra.mxu0 0
        %3172 = vmatprep.subr.bf16.mxu0 0
        %3173 = vmatpush1.bf16.msra.mxu0 0
        %3174 = vmatprep.subr.bf16.mxu0 0
        %3175 = vmatpush1.bf16.msra.mxu0 0
        %3176 = vmatprep.subr.bf16.mxu0 0
        %3177 = vmatpush1.bf16.msra.mxu0 0
        %3178 = vmatprep.mubr.bf16.mxu0 0
        %3179 = vmatmul.mubr.bf16.gmra.mrb[0].mxu0 %v3144
        %v3180 = vpop.f32.mrb[0].mxu0
        %v3181 = vadd.f32 0.0, %v3180
        %v3182 = vpop.f32.mrb[0].mxu0
        %v3183 = vpop.f32.mrb[0].mxu0
        %v3184 = vadd.f32 0.0, %v3183
        %v3185 = vpop.f32.mrb[0].mxu0
        %3186 = vdwg.mxu0
        %v3188 = vsel %vm2126, %v3097, 0
        %3190 = vmatprep.subr.bf16.mxu0 0
        %3191 = vmatpush1.bf16.msra.mxu0 %v1940
        %3192 = vmatprep.subr.bf16.mxu0 0
        %3193 = vmatpush1.bf16.msra.mxu0 0
        %3194 = vmatprep.subr.bf16.mxu0 0
        %3195 = vmatpush1.bf16.msra.mxu0 0
        %3196 = vmatprep.subr.bf16.mxu0 0
        %3197 = vmatpush1.bf16.msra.mxu0 0
        %3198 = vmatprep.subr.bf16.mxu0 0
        %3199 = vmatpush1.bf16.msra.mxu0 0
        %3200 = vmatprep.subr.bf16.mxu0 0
        %3201 = vmatpush1.bf16.msra.mxu0 0
        %3202 = vmatprep.subr.bf16.mxu0 0
        %3203 = vmatpush1.bf16.msra.mxu0 0
        %3204 = vmatprep.subr.bf16.mxu0 0
        %3205 = vmatpush1.bf16.msra.mxu0 0
        %3206 = vmatprep.subr.bf16.mxu0 0
        %3207 = vmatpush1.bf16.msra.mxu0 0
        %3208 = vmatprep.subr.bf16.mxu0 0
        %3209 = vmatpush1.bf16.msra.mxu0 0
        %3210 = vmatprep.subr.bf16.mxu0 0
        %3211 = vmatpush1.bf16.msra.mxu0 0
        %3212 = vmatprep.subr.bf16.mxu0 0
        %3213 = vmatpush1.bf16.msra.mxu0 0
        %3214 = vmatprep.subr.bf16.mxu0 0
        %3215 = vmatpush1.bf16.msra.mxu0 0
        %3216 = vmatprep.subr.bf16.mxu0 0
        %3217 = vmatpush1.bf16.msra.mxu0 0
        %3218 = vmatprep.subr.bf16.mxu0 0
        %3219 = vmatpush1.bf16.msra.mxu0 0
        %3220 = vmatprep.subr.bf16.mxu0 0
        %3221 = vmatpush1.bf16.msra.mxu0 0
        %3222 = vmatprep.mubr.bf16.mxu0 0
        %3223 = vmatmul.mubr.bf16.gmra.mrb[0].mxu0 %v3188
        %v3224 = vpop.f32.mrb[0].mxu0
        %v3225 = vadd.f32 0.0, %v3224
        %v3226 = vpop.f32.mrb[0].mxu0
        %v3227 = vpop.f32.mrb[0].mxu0
        %v3228 = vadd.f32 0.0, %v3227
        %v3229 = vpop.f32.mrb[0].mxu0
        %3230 = vdwg.mxu0
        %v3232 = vsel %vm2126, %v3098, 0
        %3234 = vmatprep.subr.bf16.mxu0 0
        %3235 = vmatpush1.bf16.msra.mxu0 %v1952
        %3236 = vmatprep.subr.bf16.mxu0 0
        %3237 = vmatpush1.bf16.msra.mxu0 0
        %3238 = vmatprep.subr.bf16.mxu0 0
        %3239 = vmatpush1.bf16.msra.mxu0 0
        %3240 = vmatprep.subr.bf16.mxu0 0
        %3241 = vmatpush1.bf16.msra.mxu0 0
        %3242 = vmatprep.subr.bf16.mxu0 0
        %3243 = vmatpush1.bf16.msra.mxu0 0
        %3244 = vmatprep.subr.bf16.mxu0 0
        %3245 = vmatpush1.bf16.msra.mxu0 0
        %3246 = vmatprep.subr.bf16.mxu0 0
        %3247 = vmatpush1.bf16.msra.mxu0 0
        %3248 = vmatprep.subr.bf16.mxu0 0
        %3249 = vmatpush1.bf16.msra.mxu0 0
        %3250 = vmatprep.subr.bf16.mxu0 0
        %3251 = vmatpush1.bf16.msra.mxu0 0
        %3252 = vmatprep.subr.bf16.mxu0 0
        %3253 = vmatpush1.bf16.msra.mxu0 0
        %3254 = vmatprep.subr.bf16.mxu0 0
        %3255 = vmatpush1.bf16.msra.mxu0 0
        %3256 = vmatprep.subr.bf16.mxu0 0
        %3257 = vmatpush1.bf16.msra.mxu0 0
        %3258 = vmatprep.subr.bf16.mxu0 0
        %3259 = vmatpush1.bf16.msra.mxu0 0
        %3260 = vmatprep.subr.bf16.mxu0 0
        %3261 = vmatpush1.bf16.msra.mxu0 0
        %3262 = vmatprep.subr.bf16.mxu0 0
        %3263 = vmatpush1.bf16.msra.mxu0 0
        %3264 = vmatprep.subr.bf16.mxu0 0
        %3265 = vmatpush1.bf16.msra.mxu0 0
        %3266 = vmatprep.mubr.bf16.mxu0 0
        %3267 = vmatmul.mubr.bf16.gmra.mrb[0].mxu0 %v3232
        %v3268 = vpop.f32.mrb[0].mxu0
        %v3269 = vadd.f32 0.0, %v3268
        %v3270 = vpop.f32.mrb[0].mxu0
        %v3271 = vpop.f32.mrb[0].mxu0
        %v3272 = vadd.f32 0.0, %v3271
        %v3273 = vpop.f32.mrb[0].mxu0
        %3274 = vdwg.mxu0
        %3275 = vmatprep.subr.bf16.mxu0 0
        %3276 = vmatpush1.bf16.xpose.msra.mxu0 %v1913
        %3277 = vmatprep.subr.bf16.mxu0 0
        %3278 = vmatpush1.bf16.xpose.msra.mxu0 0
        %3279 = vmatprep.subr.bf16.mxu0 0
        %3280 = vmatpush1.bf16.xpose.msra.mxu0 0
        %3281 = vmatprep.subr.bf16.mxu0 0
        %3282 = vmatpush1.bf16.xpose.msra.mxu0 0
        %3283 = vmatprep.subr.bf16.mxu0 0
        %3284 = vmatpush1.bf16.xpose.msra.mxu0 0
        %3285 = vmatprep.subr.bf16.mxu0 0
        %3286 = vmatpush1.bf16.xpose.msra.mxu0 0
        %3287 = vmatprep.subr.bf16.mxu0 0
        %3288 = vmatpush1.bf16.xpose.msra.mxu0 0
        %3289 = vmatprep.subr.bf16.mxu0 0
        %3290 = vmatpush1.bf16.xpose.msra.mxu0 0
        %3291 = vmatprep.subr.bf16.mxu0 0
        %3292 = vmatpush1.bf16.xpose.msra.mxu0 0
        %3293 = vmatprep.subr.bf16.mxu0 0
        %3294 = vmatpush1.bf16.xpose.msra.mxu0 0
        %3295 = vmatprep.subr.bf16.mxu0 0
        %3296 = vmatpush1.bf16.xpose.msra.mxu0 0
        %3297 = vmatprep.subr.bf16.mxu0 0
        %3298 = vmatpush1.bf16.xpose.msra.mxu0 0
        %3299 = vmatprep.subr.bf16.mxu0 0
        %3300 = vmatpush1.bf16.xpose.msra.mxu0 0
        %3301 = vmatprep.subr.bf16.mxu0 0
        %3302 = vmatpush1.bf16.xpose.msra.mxu0 0
        %3303 = vmatprep.subr.bf16.mxu0 0
        %3304 = vmatpush1.bf16.xpose.msra.mxu0 0
        %3305 = vmatprep.subr.bf16.mxu0 0
        %3306 = vmatpush1.bf16.xpose.msra.mxu0 0
        %3307 = vmatprep.mubr.bf16.mxu0 0
        %3308 = vmatmul.mubr.bf16.gmra.mrb[0].mxu0 %v1909
        %v3309 = vpop.f32.mrb[0].mxu0
        %v3310 = vadd.f32 0.0, %v3309
        %v3311 = vpop.f32.mrb[0].mxu0
        %v3312 = vpop.f32.mrb[0].mxu0
        %v3313 = vadd.f32 0.0, %v3312
        %v3314 = vpop.f32.mrb[0].mxu0
        %3315 = vdwg.mxu0
        %3316 = vmatprep.subr.bf16.mxu0 0
        %3317 = vmatpush1.bf16.xpose.msra.mxu0 %v1925
        %3318 = vmatprep.subr.bf16.mxu0 0
        %3319 = vmatpush1.bf16.xpose.msra.mxu0 0
        %3320 = vmatprep.subr.bf16.mxu0 0
        %3321 = vmatpush1.bf16.xpose.msra.mxu0 0
        %3322 = vmatprep.subr.bf16.mxu0 0
        %3323 = vmatpush1.bf16.xpose.msra.mxu0 0
        %3324 = vmatprep.subr.bf16.mxu0 0
        %3325 = vmatpush1.bf16.xpose.msra.mxu0 0
        %3326 = vmatprep.subr.bf16.mxu0 0
        %3327 = vmatpush1.bf16.xpose.msra.mxu0 0
        %3328 = vmatprep.subr.bf16.mxu0 0
        %3329 = vmatpush1.bf16.xpose.msra.mxu0 0
        %3330 = vmatprep.subr.bf16.mxu0 0
        %3331 = vmatpush1.bf16.xpose.msra.mxu0 0
        %3332 = vmatprep.subr.bf16.mxu0 0
        %3333 = vmatpush1.bf16.xpose.msra.mxu0 0
        %3334 = vmatprep.subr.bf16.mxu0 0
        %3335 = vmatpush1.bf16.xpose.msra.mxu0 0
        %3336 = vmatprep.subr.bf16.mxu0 0
        %3337 = vmatpush1.bf16.xpose.msra.mxu0 0
        %3338 = vmatprep.subr.bf16.mxu0 0
        %3339 = vmatpush1.bf16.xpose.msra.mxu0 0
        %3340 = vmatprep.subr.bf16.mxu0 0
        %3341 = vmatpush1.bf16.xpose.msra.mxu0 0
        %3342 = vmatprep.subr.bf16.mxu0 0
        %3343 = vmatpush1.bf16.xpose.msra.mxu0 0
        %3344 = vmatprep.subr.bf16.mxu0 0
        %3345 = vmatpush1.bf16.xpose.msra.mxu0 0
        %3346 = vmatprep.subr.bf16.mxu0 0
        %3347 = vmatpush1.bf16.xpose.msra.mxu0 0
        %3348 = vmatprep.mubr.bf16.mxu0 0
        %3349 = vmatmul.mubr.bf16.gmra.mrb[0].mxu0 %v1921
        %v3350 = vpop.f32.mrb[0].mxu0
        %v3351 = vadd.f32 0.0, %v3350
        %v3352 = vpop.f32.mrb[0].mxu0
        %v3353 = vpop.f32.mrb[0].mxu0
        %v3354 = vadd.f32 0.0, %v3353
        %v3355 = vpop.f32.mrb[0].mxu0
        %3356 = vdwg.mxu0
        %3357 = vmatprep.subr.bf16.mxu0 0
        %3358 = vmatpush1.bf16.xpose.msra.mxu0 %v1937
        %3359 = vmatprep.subr.bf16.mxu0 0
        %3360 = vmatpush1.bf16.xpose.msra.mxu0 0
        %3361 = vmatprep.subr.bf16.mxu0 0
        %3362 = vmatpush1.bf16.xpose.msra.mxu0 0
        %3363 = vmatprep.subr.bf16.mxu0 0
        %3364 = vmatpush1.bf16.xpose.msra.mxu0 0
        %3365 = vmatprep.subr.bf16.mxu0 0
        %3366 = vmatpush1.bf16.xpose.msra.mxu0 0
        %3367 = vmatprep.subr.bf16.mxu0 0
        %3368 = vmatpush1.bf16.xpose.msra.mxu0 0
        %3369 = vmatprep.subr.bf16.mxu0 0
        %3370 = vmatpush1.bf16.xpose.msra.mxu0 0
        %3371 = vmatprep.subr.bf16.mxu0 0
        %3372 = vmatpush1.bf16.xpose.msra.mxu0 0
        %3373 = vmatprep.subr.bf16.mxu0 0
        %3374 = vmatpush1.bf16.xpose.msra.mxu0 0
        %3375 = vmatprep.subr.bf16.mxu0 0
        %3376 = vmatpush1.bf16.xpose.msra.mxu0 0
        %3377 = vmatprep.subr.bf16.mxu0 0
        %3378 = vmatpush1.bf16.xpose.msra.mxu0 0
        %3379 = vmatprep.subr.bf16.mxu0 0
        %3380 = vmatpush1.bf16.xpose.msra.mxu0 0
        %3381 = vmatprep.subr.bf16.mxu0 0
        %3382 = vmatpush1.bf16.xpose.msra.mxu0 0
        %3383 = vmatprep.subr.bf16.mxu0 0
        %3384 = vmatpush1.bf16.xpose.msra.mxu0 0
        %3385 = vmatprep.subr.bf16.mxu0 0
        %3386 = vmatpush1.bf16.xpose.msra.mxu0 0
        %3387 = vmatprep.subr.bf16.mxu0 0
        %3388 = vmatpush1.bf16.xpose.msra.mxu0 0
        %3389 = vmatprep.mubr.bf16.mxu0 0
        %3390 = vmatmul.mubr.bf16.gmra.mrb[0].mxu0 %v1933
        %v3391 = vpop.f32.mrb[0].mxu0
        %v3392 = vadd.f32 0.0, %v3391
        %v3393 = vpop.f32.mrb[0].mxu0
        %v3394 = vpop.f32.mrb[0].mxu0
        %v3395 = vadd.f32 0.0, %v3394
        %v3396 = vpop.f32.mrb[0].mxu0
        %3397 = vdwg.mxu0
        %3398 = vmatprep.subr.bf16.mxu0 0
        %3399 = vmatpush1.bf16.xpose.msra.mxu0 %v1949
        %3400 = vmatprep.subr.bf16.mxu0 0
        %3401 = vmatpush1.bf16.xpose.msra.mxu0 0
        %3402 = vmatprep.subr.bf16.mxu0 0
        %3403 = vmatpush1.bf16.xpose.msra.mxu0 0
        %3404 = vmatprep.subr.bf16.mxu0 0
        %3405 = vmatpush1.bf16.xpose.msra.mxu0 0
        %3406 = vmatprep.subr.bf16.mxu0 0
        %3407 = vmatpush1.bf16.xpose.msra.mxu0 0
        %3408 = vmatprep.subr.bf16.mxu0 0
        %3409 = vmatpush1.bf16.xpose.msra.mxu0 0
        %3410 = vmatprep.subr.bf16.mxu0 0
        %3411 = vmatpush1.bf16.xpose.msra.mxu0 0
        %3412 = vmatprep.subr.bf16.mxu0 0
        %3413 = vmatpush1.bf16.xpose.msra.mxu0 0
        %3414 = vmatprep.subr.bf16.mxu0 0
        %3415 = vmatpush1.bf16.xpose.msra.mxu0 0
        %3416 = vmatprep.subr.bf16.mxu0 0
        %3417 = vmatpush1.bf16.xpose.msra.mxu0 0
        %3418 = vmatprep.subr.bf16.mxu0 0
        %3419 = vmatpush1.bf16.xpose.msra.mxu0 0
        %3420 = vmatprep.subr.bf16.mxu0 0
        %3421 = vmatpush1.bf16.xpose.msra.mxu0 0
        %3422 = vmatprep.subr.bf16.mxu0 0
        %3423 = vmatpush1.bf16.xpose.msra.mxu0 0
        %3424 = vmatprep.subr.bf16.mxu0 0
        %3425 = vmatpush1.bf16.xpose.msra.mxu0 0
        %3426 = vmatprep.subr.bf16.mxu0 0
        %3427 = vmatpush1.bf16.xpose.msra.mxu0 0
        %3428 = vmatprep.subr.bf16.mxu0 0
        %3429 = vmatpush1.bf16.xpose.msra.mxu0 0
        %3430 = vmatprep.mubr.bf16.mxu0 0
        %3431 = vmatmul.mubr.bf16.gmra.mrb[0].mxu0 %v1945
        %v3432 = vpop.f32.mrb[0].mxu0
        %v3433 = vadd.f32 0.0, %v3432
        %v3434 = vpop.f32.mrb[0].mxu0
        %v3435 = vpop.f32.mrb[0].mxu0
        %v3436 = vadd.f32 0.0, %v3435
        %v3437 = vpop.f32.mrb[0].mxu0
        %3438 = vdwg.mxu0
        %v3439 = vmul.f32 %v3310, 0.088388346
        %v3440 = vmul.f32 %v3313, 0.088388346
        %v3441 = vmul.f32 %v3351, 0.088388346
        %v3442 = vmul.f32 %v3354, 0.088388346
        %v3443 = vmul.f32 %v3392, 0.088388346
        %v3444 = vmul.f32 %v3395, 0.088388346
        %v3445 = vmul.f32 %v3433, 0.088388346
        %v3446 = vmul.f32 %v3436, 0.088388346
        %v3447 = vsel %vm2126, %v3439, -inf
        %3448 = vmax.xlane.f32.xlu0 %v3447
        %v3449 = vpop.xlane.xlu0 %3448
        %v3450 = vsel %vm2126, %v3440, -inf
        %3451 = vmax.xlane.f32.xlu0 %v3450
        %v3452 = vpop.xlane.xlu0 %3451
        %v3453 = vsel %vm2126, %v3441, -inf
        %3454 = vmax.xlane.f32.xlu0 %v3453
        %v3455 = vpop.xlane.xlu0 %3454
        %v3456 = vsel %vm2126, %v3442, -inf
        %3457 = vmax.xlane.f32.xlu0 %v3456
        %v3458 = vpop.xlane.xlu0 %3457
        %v3459 = vsel %vm2126, %v3443, -inf
        %3460 = vmax.xlane.f32.xlu0 %v3459
        %v3461 = vpop.xlane.xlu0 %3460
        %v3462 = vsel %vm2126, %v3444, -inf
        %3463 = vmax.xlane.f32.xlu0 %v3462
        %v3464 = vpop.xlane.xlu0 %3463
        %v3465 = vsel %vm2126, %v3445, -inf
        %3466 = vmax.xlane.f32.xlu0 %v3465
        %v3467 = vpop.xlane.xlu0 %3466
        %v3468 = vsel %vm2126, %v3446, -inf
        %3469 = vmax.xlane.f32.xlu0 %v3468
        %v3470 = vpop.xlane.xlu0 %3469
        %v3471 = vsub.f32 %v3439, %v3449
        %v3472 = vsub.f32 %v3440, %v3452
        %v3473 = vsub.f32 %v3441, %v3455
        %v3474 = vsub.f32 %v3442, %v3458
        %v3475 = vsub.f32 %v3443, %v3461
        %v3476 = vsub.f32 %v3444, %v3464
        %v3477 = vsub.f32 %v3445, %v3467
        %v3478 = vsub.f32 %v3446, %v3470
        %v3479 = vmul.f32 %v3471, 1.442695
        %v3480 = vpow.pop %v3479
        %v3481 = vmul.f32 %v3472, 1.442695
        %v3482 = vpow.pop %v3481
        %v3483 = vmul.f32 %v3473, 1.442695
        %v3484 = vpow.pop %v3483
        %v3485 = vmul.f32 %v3474, 1.442695
        %v3486 = vpow.pop %v3485
        %v3487 = vmul.f32 %v3475, 1.442695
        %v3488 = vpow.pop %v3487
        %v3489 = vmul.f32 %v3476, 1.442695
        %v3490 = vpow.pop %v3489
        %v3491 = vmul.f32 %v3477, 1.442695
        %v3492 = vpow.pop %v3491
        %v3493 = vmul.f32 %v3478, 1.442695
        %v3494 = vpow.pop %v3493
        %v3495 = vsel %vm2126, %v3480, 0.0
        %3496 = vadd.xlane.f32.xlu0 %v3495
        %v3497 = vpop.xlane.xlu0 %3496
        %v3498 = vsel %vm2126, %v3482, 0.0
        %3499 = vadd.xlane.f32.xlu0 %v3498
        %v3500 = vpop.xlane.xlu0 %3499
        %v3501 = vsel %vm2126, %v3484, 0.0
        %3502 = vadd.xlane.f32.xlu0 %v3501
        %v3503 = vpop.xlane.xlu0 %3502
        %v3504 = vsel %vm2126, %v3486, 0.0
        %3505 = vadd.xlane.f32.xlu0 %v3504
        %v3506 = vpop.xlane.xlu0 %3505
        %v3507 = vsel %vm2126, %v3488, 0.0
        %3508 = vadd.xlane.f32.xlu0 %v3507
        %v3509 = vpop.xlane.xlu0 %3508
        %v3510 = vsel %vm2126, %v3490, 0.0
        %3511 = vadd.xlane.f32.xlu0 %v3510
        %v3512 = vpop.xlane.xlu0 %3511
        %v3513 = vsel %vm2126, %v3492, 0.0
        %3514 = vadd.xlane.f32.xlu0 %v3513
        %v3515 = vpop.xlane.xlu0 %3514
        %v3516 = vsel %vm2126, %v3494, 0.0
        %3517 = vadd.xlane.f32.xlu0 %v3516
        %v3518 = vpop.xlane.xlu0 %3517
        %v3519 = vrcp.pop %v3497
        %v3520 = vrcp.pop %v3500
        %v3521 = vrcp.pop %v3503
        %v3522 = vrcp.pop %v3506
        %v3523 = vrcp.pop %v3509
        %v3524 = vrcp.pop %v3512
        %v3525 = vrcp.pop %v3515
        %v3526 = vrcp.pop %v3518
        %v3527 = vmul.f32 %v3480, %v3519
        %v3528 = vmul.f32 %v3482, %v3520
        %v3529 = vmul.f32 %v3484, %v3521
        %v3530 = vmul.f32 %v3486, %v3522
        %v3531 = vmul.f32 %v3488, %v3523
        %v3532 = vmul.f32 %v3490, %v3524
        %v3533 = vmul.f32 %v3492, %v3525
        %v3534 = vmul.f32 %v3494, %v3526
        %v3535 = vpack.c.bf16 %v3528, %v3527
        %v3536 = vpack.c.bf16 %v3530, %v3529
        %v3537 = vpack.c.bf16 %v3532, %v3531
        %v3538 = vpack.c.bf16 %v3534, %v3533
        %v3540 = vsel %vm2126, %v3535, 0
        %3542 = vmatprep.subr.bf16.mxu0 0
        %3543 = vmatpush1.bf16.msra.mxu0 %v1917
        %3544 = vmatprep.subr.bf16.mxu0 0
        %3545 = vmatpush1.bf16.msra.mxu0 0
        %3546 = vmatprep.subr.bf16.mxu0 0
        %3547 = vmatpush1.bf16.msra.mxu0 0
        %3548 = vmatprep.subr.bf16.mxu0 0
        %3549 = vmatpush1.bf16.msra.mxu0 0
        %3550 = vmatprep.subr.bf16.mxu0 0
        %3551 = vmatpush1.bf16.msra.mxu0 0
        %3552 = vmatprep.subr.bf16.mxu0 0
        %3553 = vmatpush1.bf16.msra.mxu0 0
        %3554 = vmatprep.subr.bf16.mxu0 0
        %3555 = vmatpush1.bf16.msra.mxu0 0
        %3556 = vmatprep.subr.bf16.mxu0 0
        %3557 = vmatpush1.bf16.msra.mxu0 0
        %3558 = vmatprep.subr.bf16.mxu0 0
        %3559 = vmatpush1.bf16.msra.mxu0 0
        %3560 = vmatprep.subr.bf16.mxu0 0
        %3561 = vmatpush1.bf16.msra.mxu0 0
        %3562 = vmatprep.subr.bf16.mxu0 0
        %3563 = vmatpush1.bf16.msra.mxu0 0
        %3564 = vmatprep.subr.bf16.mxu0 0
        %3565 = vmatpush1.bf16.msra.mxu0 0
        %3566 = vmatprep.subr.bf16.mxu0 0
        %3567 = vmatpush1.bf16.msra.mxu0 0
        %3568 = vmatprep.subr.bf16.mxu0 0
        %3569 = vmatpush1.bf16.msra.mxu0 0
        %3570 = vmatprep.subr.bf16.mxu0 0
        %3571 = vmatpush1.bf16.msra.mxu0 0
        %3572 = vmatprep.subr.bf16.mxu0 0
        %3573 = vmatpush1.bf16.msra.mxu0 0
        %3574 = vmatprep.mubr.bf16.mxu0 0
        %3575 = vmatmul.mubr.bf16.gmra.mrb[0].mxu0 %v3540
        %v3576 = vpop.f32.mrb[0].mxu0
        %v3577 = vadd.f32 0.0, %v3576
        %v3578 = vpop.f32.mrb[0].mxu0
        %v3579 = vpop.f32.mrb[0].mxu0
        %v3580 = vadd.f32 0.0, %v3579
        %v3581 = vpop.f32.mrb[0].mxu0
        %3582 = vdwg.mxu0
        %v3584 = vsel %vm2126, %v3536, 0
        %3586 = vmatprep.subr.bf16.mxu0 0
        %3587 = vmatpush1.bf16.msra.mxu0 %v1929
        %3588 = vmatprep.subr.bf16.mxu0 0
        %3589 = vmatpush1.bf16.msra.mxu0 0
        %3590 = vmatprep.subr.bf16.mxu0 0
        %3591 = vmatpush1.bf16.msra.mxu0 0
        %3592 = vmatprep.subr.bf16.mxu0 0
        %3593 = vmatpush1.bf16.msra.mxu0 0
        %3594 = vmatprep.subr.bf16.mxu0 0
        %3595 = vmatpush1.bf16.msra.mxu0 0
        %3596 = vmatprep.subr.bf16.mxu0 0
        %3597 = vmatpush1.bf16.msra.mxu0 0
        %3598 = vmatprep.subr.bf16.mxu0 0
        %3599 = vmatpush1.bf16.msra.mxu0 0
        %3600 = vmatprep.subr.bf16.mxu0 0
        %3601 = vmatpush1.bf16.msra.mxu0 0
        %3602 = vmatprep.subr.bf16.mxu0 0
        %3603 = vmatpush1.bf16.msra.mxu0 0
        %3604 = vmatprep.subr.bf16.mxu0 0
        %3605 = vmatpush1.bf16.msra.mxu0 0
        %3606 = vmatprep.subr.bf16.mxu0 0
        %3607 = vmatpush1.bf16.msra.mxu0 0
        %3608 = vmatprep.subr.bf16.mxu0 0
        %3609 = vmatpush1.bf16.msra.mxu0 0
        %3610 = vmatprep.subr.bf16.mxu0 0
        %3611 = vmatpush1.bf16.msra.mxu0 0
        %3612 = vmatprep.subr.bf16.mxu0 0
        %3613 = vmatpush1.bf16.msra.mxu0 0
        %3614 = vmatprep.subr.bf16.mxu0 0
        %3615 = vmatpush1.bf16.msra.mxu0 0
        %3616 = vmatprep.subr.bf16.mxu0 0
        %3617 = vmatpush1.bf16.msra.mxu0 0
        %3618 = vmatprep.mubr.bf16.mxu0 0
        %3619 = vmatmul.mubr.bf16.gmra.mrb[0].mxu0 %v3584
        %v3620 = vpop.f32.mrb[0].mxu0
        %v3621 = vadd.f32 0.0, %v3620
        %v3622 = vpop.f32.mrb[0].mxu0
        %v3623 = vpop.f32.mrb[0].mxu0
        %v3624 = vadd.f32 0.0, %v3623
        %v3625 = vpop.f32.mrb[0].mxu0
        %3626 = vdwg.mxu0
        %v3628 = vsel %vm2126, %v3537, 0
        %3630 = vmatprep.subr.bf16.mxu0 0
        %3631 = vmatpush1.bf16.msra.mxu0 %v1941
        %3632 = vmatprep.subr.bf16.mxu0 0
        %3633 = vmatpush1.bf16.msra.mxu0 0
        %3634 = vmatprep.subr.bf16.mxu0 0
        %3635 = vmatpush1.bf16.msra.mxu0 0
        %3636 = vmatprep.subr.bf16.mxu0 0
        %3637 = vmatpush1.bf16.msra.mxu0 0
        %3638 = vmatprep.subr.bf16.mxu0 0
        %3639 = vmatpush1.bf16.msra.mxu0 0
        %3640 = vmatprep.subr.bf16.mxu0 0
        %3641 = vmatpush1.bf16.msra.mxu0 0
        %3642 = vmatprep.subr.bf16.mxu0 0
        %3643 = vmatpush1.bf16.msra.mxu0 0
        %3644 = vmatprep.subr.bf16.mxu0 0
        %3645 = vmatpush1.bf16.msra.mxu0 0
        %3646 = vmatprep.subr.bf16.mxu0 0
        %3647 = vmatpush1.bf16.msra.mxu0 0
        %3648 = vmatprep.subr.bf16.mxu0 0
        %3649 = vmatpush1.bf16.msra.mxu0 0
        %3650 = vmatprep.subr.bf16.mxu0 0
        %3651 = vmatpush1.bf16.msra.mxu0 0
        %3652 = vmatprep.subr.bf16.mxu0 0
        %3653 = vmatpush1.bf16.msra.mxu0 0
        %3654 = vmatprep.subr.bf16.mxu0 0
        %3655 = vmatpush1.bf16.msra.mxu0 0
        %3656 = vmatprep.subr.bf16.mxu0 0
        %3657 = vmatpush1.bf16.msra.mxu0 0
        %3658 = vmatprep.subr.bf16.mxu0 0
        %3659 = vmatpush1.bf16.msra.mxu0 0
        %3660 = vmatprep.subr.bf16.mxu0 0
        %3661 = vmatpush1.bf16.msra.mxu0 0
        %3662 = vmatprep.mubr.bf16.mxu0 0
        %3663 = vmatmul.mubr.bf16.gmra.mrb[0].mxu0 %v3628
        %v3664 = vpop.f32.mrb[0].mxu0
        %v3665 = vadd.f32 0.0, %v3664
        %v3666 = vpop.f32.mrb[0].mxu0
        %v3667 = vpop.f32.mrb[0].mxu0
        %v3668 = vadd.f32 0.0, %v3667
        %v3669 = vpop.f32.mrb[0].mxu0
        %3670 = vdwg.mxu0
        %v3672 = vsel %vm2126, %v3538, 0
        %3674 = vmatprep.subr.bf16.mxu0 0
        %3675 = vmatpush1.bf16.msra.mxu0 %v1953
        %3676 = vmatprep.subr.bf16.mxu0 0
        %3677 = vmatpush1.bf16.msra.mxu0 0
        %3678 = vmatprep.subr.bf16.mxu0 0
        %3679 = vmatpush1.bf16.msra.mxu0 0
        %3680 = vmatprep.subr.bf16.mxu0 0
        %3681 = vmatpush1.bf16.msra.mxu0 0
        %3682 = vmatprep.subr.bf16.mxu0 0
        %3683 = vmatpush1.bf16.msra.mxu0 0
        %3684 = vmatprep.subr.bf16.mxu0 0
        %3685 = vmatpush1.bf16.msra.mxu0 0
        %3686 = vmatprep.subr.bf16.mxu0 0
        %3687 = vmatpush1.bf16.msra.mxu0 0
        %3688 = vmatprep.subr.bf16.mxu0 0
        %3689 = vmatpush1.bf16.msra.mxu0 0
        %3690 = vmatprep.subr.bf16.mxu0 0
        %3691 = vmatpush1.bf16.msra.mxu0 0
        %3692 = vmatprep.subr.bf16.mxu0 0
        %3693 = vmatpush1.bf16.msra.mxu0 0
        %3694 = vmatprep.subr.bf16.mxu0 0
        %3695 = vmatpush1.bf16.msra.mxu0 0
        %3696 = vmatprep.subr.bf16.mxu0 0
        %3697 = vmatpush1.bf16.msra.mxu0 0
        %3698 = vmatprep.subr.bf16.mxu0 0
        %3699 = vmatpush1.bf16.msra.mxu0 0
        %3700 = vmatprep.subr.bf16.mxu0 0
        %3701 = vmatpush1.bf16.msra.mxu0 0
        %3702 = vmatprep.subr.bf16.mxu0 0
        %3703 = vmatpush1.bf16.msra.mxu0 0
        %3704 = vmatprep.subr.bf16.mxu0 0
        %3705 = vmatpush1.bf16.msra.mxu0 0
        %3706 = vmatprep.mubr.bf16.mxu0 0
        %3707 = vmatmul.mubr.bf16.gmra.mrb[0].mxu0 %v3672
        %v3708 = vpop.f32.mrb[0].mxu0
        %v3709 = vadd.f32 0.0, %v3708
        %v3710 = vpop.f32.mrb[0].mxu0
        %v3711 = vpop.f32.mrb[0].mxu0
        %v3712 = vadd.f32 0.0, %v3711
        %v3713 = vpop.f32.mrb[0].mxu0
        %3714 = vdwg.mxu0
        %v3715 = vpack.c.bf16 %v2260, %v2257
        %v3716 = vpack.c.bf16 %v2700, %v2697
        %v3717 = vpack.c.bf16 %v3140, %v3137
        %v3718 = vpack.c.bf16 %v3580, %v3577
        %v3719 = vpack.c.bf16 %v2304, %v2301
        %v3720 = vpack.c.bf16 %v2744, %v2741
        %v3721 = vpack.c.bf16 %v3184, %v3181
        %v3722 = vpack.c.bf16 %v3624, %v3621
        %v3723 = vpack.c.bf16 %v2348, %v2345
        %v3724 = vpack.c.bf16 %v2788, %v2785
        %v3725 = vpack.c.bf16 %v3228, %v3225
        %v3726 = vpack.c.bf16 %v3668, %v3665
        %v3727 = vpack.c.bf16 %v2392, %v2389
        %v3728 = vpack.c.bf16 %v2832, %v2829
        %v3729 = vpack.c.bf16 %v3272, %v3269
        %v3730 = vpack.c.bf16 %v3712, %v3709
        %v3731 = vld [vmem:[%s603] sm:$0xf]
        %v3732 = vld [vmem:[%s603 + $0x4] sm:$0xf]
        %v3733 = vld [vmem:[%s603 + $0x8] sm:$0xf]
        %v3734 = vld [vmem:[%s603 + $0xc] sm:$0xf]
        %v3735 = vld [vmem:[%s603 + $0x10] sm:$0xf]
        %v3736 = vld [vmem:[%s603 + $0x14] sm:$0xf]
        %v3737 = vld [vmem:[%s603 + $0x18] sm:$0xf]
        %v3738 = vld [vmem:[%s603 + $0x1c] sm:$0xf]
        %v3739 = vld [vmem:[%s603 + $0x20] sm:$0xf]
        %v3740 = vld [vmem:[%s603 + $0x24] sm:$0xf]
        %v3741 = vld [vmem:[%s603 + $0x28] sm:$0xf]
        %v3742 = vld [vmem:[%s603 + $0x2c] sm:$0xf]
        %v3743 = vld [vmem:[%s603 + $0x30] sm:$0xf]
        %v3744 = vld [vmem:[%s603 + $0x34] sm:$0xf]
        %v3745 = vld [vmem:[%s603 + $0x38] sm:$0xf]
        %v3746 = vld [vmem:[%s603 + $0x3c] sm:$0xf]
        %v3747 = vld [vmem:[%s603 + $0x40] sm:$0xf]
        %v3748 = vld [vmem:[%s603 + $0x44] sm:$0xf]
        %v3749 = vld [vmem:[%s603 + $0x48] sm:$0xf]
        %v3750 = vld [vmem:[%s603 + $0x4c] sm:$0xf]
        %v3751 = vld [vmem:[%s603 + $0x50] sm:$0xf]
        %v3752 = vld [vmem:[%s603 + $0x54] sm:$0xf]
        %v3753 = vld [vmem:[%s603 + $0x58] sm:$0xf]
        %v3754 = vld [vmem:[%s603 + $0x5c] sm:$0xf]
        %v3755 = vld [vmem:[%s603 + $0x60] sm:$0xf]
        %v3756 = vld [vmem:[%s603 + $0x64] sm:$0xf]
        %v3757 = vld [vmem:[%s603 + $0x68] sm:$0xf]
        %v3758 = vld [vmem:[%s603 + $0x6c] sm:$0xf]
        %v3759 = vld [vmem:[%s603 + $0x70] sm:$0xf]
        %v3760 = vld [vmem:[%s603 + $0x74] sm:$0xf]
        %v3761 = vld [vmem:[%s603 + $0x78] sm:$0xf]
        %v3762 = vld [vmem:[%s603 + $0x7c] sm:$0xf]
        %v3763 = vld [vmem:[%s603 + $0x80] sm:$0xf]
        %v3764 = vld [vmem:[%s603 + $0x84] sm:$0xf]
        %v3765 = vld [vmem:[%s603 + $0x88] sm:$0xf]
        %v3766 = vld [vmem:[%s603 + $0x8c] sm:$0xf]
        %v3767 = vld [vmem:[%s603 + $0x90] sm:$0xf]
        %v3768 = vld [vmem:[%s603 + $0x94] sm:$0xf]
        %v3769 = vld [vmem:[%s603 + $0x98] sm:$0xf]
        %v3770 = vld [vmem:[%s603 + $0x9c] sm:$0xf]
        %v3771 = vld [vmem:[%s603 + $0xa0] sm:$0xf]
        %v3772 = vld [vmem:[%s603 + $0xa4] sm:$0xf]
        %v3773 = vld [vmem:[%s603 + $0xa8] sm:$0xf]
        %v3774 = vld [vmem:[%s603 + $0xac] sm:$0xf]
        %v3775 = vld [vmem:[%s603 + $0xb0] sm:$0xf]
        %v3776 = vld [vmem:[%s603 + $0xb4] sm:$0xf]
        %v3777 = vld [vmem:[%s603 + $0xb8] sm:$0xf]
        %v3778 = vld [vmem:[%s603 + $0xbc] sm:$0xf]
        %v3779 = vld [vmem:[%s603 + $0xc0] sm:$0xf]
        %v3780 = vld [vmem:[%s603 + $0xc4] sm:$0xf]
        %v3781 = vld [vmem:[%s603 + $0xc8] sm:$0xf]
        %v3782 = vld [vmem:[%s603 + $0xcc] sm:$0xf]
        %v3783 = vld [vmem:[%s603 + $0xd0] sm:$0xf]
        %v3784 = vld [vmem:[%s603 + $0xd4] sm:$0xf]
        %v3785 = vld [vmem:[%s603 + $0xd8] sm:$0xf]
        %v3786 = vld [vmem:[%s603 + $0xdc] sm:$0xf]
        %v3787 = vld [vmem:[%s603 + $0xe0] sm:$0xf]
        %v3788 = vld [vmem:[%s603 + $0xe4] sm:$0xf]
        %v3789 = vld [vmem:[%s603 + $0xe8] sm:$0xf]
        %v3790 = vld [vmem:[%s603 + $0xec] sm:$0xf]
        %v3791 = vld [vmem:[%s603 + $0xf0] sm:$0xf]
        %v3792 = vld [vmem:[%s603 + $0xf4] sm:$0xf]
        %v3793 = vld [vmem:[%s603 + $0xf8] sm:$0xf]
        %v3794 = vld [vmem:[%s603 + $0xfc] sm:$0xf]
        %v3859 = vunpack.c.l.b16 %v3731
        %v3860 = vunpack.c.l.b16 %v3732
        %v3861 = vunpack.c.l.b16 %v3733
        %v3862 = vunpack.c.l.b16 %v3734
        %v3863 = vunpack.c.l.b16 %v3735
        %v3864 = vunpack.c.l.b16 %v3736
        %v3865 = vunpack.c.l.b16 %v3737
        %v3866 = vunpack.c.l.b16 %v3738
        %v3867 = vunpack.c.l.b16 %v3739
        %v3868 = vunpack.c.l.b16 %v3740
        %v3869 = vunpack.c.l.b16 %v3741
        %v3870 = vunpack.c.l.b16 %v3742
        %v3871 = vunpack.c.l.b16 %v3743
        %v3872 = vunpack.c.l.b16 %v3744
        %v3873 = vunpack.c.l.b16 %v3745
        %v3874 = vunpack.c.l.b16 %v3746
        %v3875 = vunpack.c.l.b16 %v3747
        %v3876 = vunpack.c.l.b16 %v3748
        %v3877 = vunpack.c.l.b16 %v3749
        %v3878 = vunpack.c.l.b16 %v3750
        %v3879 = vunpack.c.l.b16 %v3751
        %v3880 = vunpack.c.l.b16 %v3752
        %v3881 = vunpack.c.l.b16 %v3753
        %v3882 = vunpack.c.l.b16 %v3754
        %v3883 = vunpack.c.l.b16 %v3755
        %v3884 = vunpack.c.l.b16 %v3756
        %v3885 = vunpack.c.l.b16 %v3757
        %v3886 = vunpack.c.l.b16 %v3758
        %v3887 = vunpack.c.l.b16 %v3759
        %v3888 = vunpack.c.l.b16 %v3760
        %v3889 = vunpack.c.l.b16 %v3761
        %v3890 = vunpack.c.l.b16 %v3762
        %v3891 = vunpack.c.l.b16 %v3763
        %v3892 = vunpack.c.l.b16 %v3764
        %v3893 = vunpack.c.l.b16 %v3765
        %v3894 = vunpack.c.l.b16 %v3766
        %v3895 = vunpack.c.l.b16 %v3767
        %v3896 = vunpack.c.l.b16 %v3768
        %v3897 = vunpack.c.l.b16 %v3769
        %v3898 = vunpack.c.l.b16 %v3770
        %v3899 = vunpack.c.l.b16 %v3771
        %v3900 = vunpack.c.l.b16 %v3772
        %v3901 = vunpack.c.l.b16 %v3773
        %v3902 = vunpack.c.l.b16 %v3774
        %v3903 = vunpack.c.l.b16 %v3775
        %v3904 = vunpack.c.l.b16 %v3776
        %v3905 = vunpack.c.l.b16 %v3777
        %v3906 = vunpack.c.l.b16 %v3778
        %v3907 = vunpack.c.l.b16 %v3779
        %v3908 = vunpack.c.l.b16 %v3780
        %v3909 = vunpack.c.l.b16 %v3781
        %v3910 = vunpack.c.l.b16 %v3782
        %v3911 = vunpack.c.l.b16 %v3783
        %v3912 = vunpack.c.l.b16 %v3784
        %v3913 = vunpack.c.l.b16 %v3785
        %v3914 = vunpack.c.l.b16 %v3786
        %v3915 = vunpack.c.l.b16 %v3787
        %v3916 = vunpack.c.l.b16 %v3788
        %v3917 = vunpack.c.l.b16 %v3789
        %v3918 = vunpack.c.l.b16 %v3790
        %v3919 = vunpack.c.l.b16 %v3791
        %v3920 = vunpack.c.l.b16 %v3792
        %v3921 = vunpack.c.l.b16 %v3793
        %v3922 = vunpack.c.l.b16 %v3794
        %v3923 = vpack.c.b16 %v3860, %v3859
        %v3924 = vpack.c.b16 %v3862, %v3861
        %v3925 = vpack.c.b16 %v3864, %v3863
        %v3926 = vpack.c.b16 %v3866, %v3865
        %v3927 = vpack.c.b16 %v3868, %v3867
        %v3928 = vpack.c.b16 %v3870, %v3869
        %v3929 = vpack.c.b16 %v3872, %v3871
        %v3930 = vpack.c.b16 %v3874, %v3873
        %v3931 = vpack.c.b16 %v3876, %v3875
        %v3932 = vpack.c.b16 %v3878, %v3877
        %v3933 = vpack.c.b16 %v3880, %v3879
        %v3934 = vpack.c.b16 %v3882, %v3881
        %v3935 = vpack.c.b16 %v3884, %v3883
        %v3936 = vpack.c.b16 %v3886, %v3885
        %v3937 = vpack.c.b16 %v3888, %v3887
        %v3938 = vpack.c.b16 %v3890, %v3889
        %v3939 = vpack.c.b16 %v3892, %v3891
        %v3940 = vpack.c.b16 %v3894, %v3893
        %v3941 = vpack.c.b16 %v3896, %v3895
        %v3942 = vpack.c.b16 %v3898, %v3897
        %v3943 = vpack.c.b16 %v3900, %v3899
        %v3944 = vpack.c.b16 %v3902, %v3901
        %v3945 = vpack.c.b16 %v3904, %v3903
        %v3946 = vpack.c.b16 %v3906, %v3905
        %v3947 = vpack.c.b16 %v3908, %v3907
        %v3948 = vpack.c.b16 %v3910, %v3909
        %v3949 = vpack.c.b16 %v3912, %v3911
        %v3950 = vpack.c.b16 %v3914, %v3913
        %v3951 = vpack.c.b16 %v3916, %v3915
        %v3952 = vpack.c.b16 %v3918, %v3917
        %v3953 = vpack.c.b16 %v3920, %v3919
        %v3954 = vpack.c.b16 %v3922, %v3921
        %3987 = vmatprep.subr.bf16.mxu0 0
        %3988 = vmatpush1.bf16.msra.mxu0 %v3923
        %3989 = vmatprep.subr.bf16.mxu0 0
        %3990 = vmatpush1.bf16.msra.mxu0 %v3924
        %3991 = vmatprep.subr.bf16.mxu0 0
        %3992 = vmatpush1.bf16.msra.mxu0 %v3925
        %3993 = vmatprep.subr.bf16.mxu0 0
        %3994 = vmatpush1.bf16.msra.mxu0 %v3926
        %3995 = vmatprep.subr.bf16.mxu0 0
        %3996 = vmatpush1.bf16.msra.mxu0 %v3927
        %3997 = vmatprep.subr.bf16.mxu0 0
        %3998 = vmatpush1.bf16.msra.mxu0 %v3928
        %3999 = vmatprep.subr.bf16.mxu0 0
        %4000 = vmatpush1.bf16.msra.mxu0 %v3929
        %4001 = vmatprep.subr.bf16.mxu0 0
        %4002 = vmatpush1.bf16.msra.mxu0 %v3930
        %4003 = vmatprep.subr.bf16.mxu0 0
        %4004 = vmatpush1.bf16.msra.mxu0 %v3931
        %4005 = vmatprep.subr.bf16.mxu0 0
        %4006 = vmatpush1.bf16.msra.mxu0 %v3932
        %4007 = vmatprep.subr.bf16.mxu0 0
        %4008 = vmatpush1.bf16.msra.mxu0 %v3933
        %4009 = vmatprep.subr.bf16.mxu0 0
        %4010 = vmatpush1.bf16.msra.mxu0 %v3934
        %4011 = vmatprep.subr.bf16.mxu0 0
        %4012 = vmatpush1.bf16.msra.mxu0 %v3935
        %4013 = vmatprep.subr.bf16.mxu0 0
        %4014 = vmatpush1.bf16.msra.mxu0 %v3936
        %4015 = vmatprep.subr.bf16.mxu0 0
        %4016 = vmatpush1.bf16.msra.mxu0 %v3937
        %4017 = vmatprep.subr.bf16.mxu0 0
        %4018 = vmatpush1.bf16.msra.mxu0 %v3938
        %4019 = vmatprep.mubr.bf16.mxu0 %v3716
        %4020 = vmatmul.mubr.bf16.gmra.mrb[0].mxu0 %v3715
        %v4021 = vpop.f32.mrb[0].mxu0
        %v4022 = vadd.f32 0.0, %v4021
        %v4023 = vpop.f32.mrb[0].mxu0
        %v4024 = vpop.f32.mrb[0].mxu0
        %v4025 = vadd.f32 0.0, %v4024
        %v4026 = vpop.f32.mrb[0].mxu0
        %4027 = vmatprep.mubr.bf16.mxu0 %v3720
        %4028 = vmatmul.mubr.bf16.gmra.mrb[0].mxu0 %v3719
        %v4029 = vpop.f32.mrb[0].mxu0
        %v4030 = vadd.f32 0.0, %v4029
        %v4031 = vpop.f32.mrb[0].mxu0
        %v4032 = vpop.f32.mrb[0].mxu0
        %v4033 = vadd.f32 0.0, %v4032
        %v4034 = vpop.f32.mrb[0].mxu0
        %4035 = vmatprep.mubr.bf16.mxu0 %v3724
        %4036 = vmatmul.mubr.bf16.gmra.mrb[0].mxu0 %v3723
        %v4037 = vpop.f32.mrb[0].mxu0
        %v4038 = vadd.f32 0.0, %v4037
        %v4039 = vpop.f32.mrb[0].mxu0
        %v4040 = vpop.f32.mrb[0].mxu0
        %v4041 = vadd.f32 0.0, %v4040
        %v4042 = vpop.f32.mrb[0].mxu0
        %4043 = vmatprep.mubr.bf16.mxu0 %v3728
        %4044 = vmatmul.mubr.bf16.gmra.mrb[0].mxu0 %v3727
        %v4045 = vpop.f32.mrb[0].mxu0
        %v4046 = vadd.f32 0.0, %v4045
        %v4047 = vpop.f32.mrb[0].mxu0
        %v4048 = vpop.f32.mrb[0].mxu0
        %v4049 = vadd.f32 0.0, %v4048
        %v4050 = vpop.f32.mrb[0].mxu0
        %4051 = vdwg.mxu0
        %4052 = vmatprep.subr.bf16.mxu0 0
        %4053 = vmatpush1.bf16.msra.mxu0 %v3939
        %4054 = vmatprep.subr.bf16.mxu0 0
        %4055 = vmatpush1.bf16.msra.mxu0 %v3940
        %4056 = vmatprep.subr.bf16.mxu0 0
        %4057 = vmatpush1.bf16.msra.mxu0 %v3941
        %4058 = vmatprep.subr.bf16.mxu0 0
        %4059 = vmatpush1.bf16.msra.mxu0 %v3942
        %4060 = vmatprep.subr.bf16.mxu0 0
        %4061 = vmatpush1.bf16.msra.mxu0 %v3943
        %4062 = vmatprep.subr.bf16.mxu0 0
        %4063 = vmatpush1.bf16.msra.mxu0 %v3944
        %4064 = vmatprep.subr.bf16.mxu0 0
        %4065 = vmatpush1.bf16.msra.mxu0 %v3945
        %4066 = vmatprep.subr.bf16.mxu0 0
        %4067 = vmatpush1.bf16.msra.mxu0 %v3946
        %4068 = vmatprep.subr.bf16.mxu0 0
        %4069 = vmatpush1.bf16.msra.mxu0 %v3947
        %4070 = vmatprep.subr.bf16.mxu0 0
        %4071 = vmatpush1.bf16.msra.mxu0 %v3948
        %4072 = vmatprep.subr.bf16.mxu0 0
        %4073 = vmatpush1.bf16.msra.mxu0 %v3949
        %4074 = vmatprep.subr.bf16.mxu0 0
        %4075 = vmatpush1.bf16.msra.mxu0 %v3950
        %4076 = vmatprep.subr.bf16.mxu0 0
        %4077 = vmatpush1.bf16.msra.mxu0 %v3951
        %4078 = vmatprep.subr.bf16.mxu0 0
        %4079 = vmatpush1.bf16.msra.mxu0 %v3952
        %4080 = vmatprep.subr.bf16.mxu0 0
        %4081 = vmatpush1.bf16.msra.mxu0 %v3953
        %4082 = vmatprep.subr.bf16.mxu0 0
        %4083 = vmatpush1.bf16.msra.mxu0 %v3954
        %4084 = vmatprep.mubr.bf16.mxu0 %v3718
        %4085 = vmatmul.mubr.bf16.gmra.mrb[0].mxu0 %v3717
        %v4086 = vpop.f32.mrb[0].mxu0
        %v4087 = vadd.f32 %v4022, %v4086
        %v4088 = vpop.f32.mrb[0].mxu0
        %v4089 = vpop.f32.mrb[0].mxu0
        %v4090 = vadd.f32 %v4025, %v4089
        %v4091 = vpop.f32.mrb[0].mxu0
        %4092 = vmatprep.mubr.bf16.mxu0 %v3722
        %4093 = vmatmul.mubr.bf16.gmra.mrb[0].mxu0 %v3721
        %v4094 = vpop.f32.mrb[0].mxu0
        %v4095 = vadd.f32 %v4030, %v4094
        %v4096 = vpop.f32.mrb[0].mxu0
        %v4097 = vpop.f32.mrb[0].mxu0
        %v4098 = vadd.f32 %v4033, %v4097
        %v4099 = vpop.f32.mrb[0].mxu0
        %4100 = vmatprep.mubr.bf16.mxu0 %v3726
        %4101 = vmatmul.mubr.bf16.gmra.mrb[0].mxu0 %v3725
        %v4102 = vpop.f32.mrb[0].mxu0
        %v4103 = vadd.f32 %v4038, %v4102
        %v4104 = vpop.f32.mrb[0].mxu0
        %v4105 = vpop.f32.mrb[0].mxu0
        %v4106 = vadd.f32 %v4041, %v4105
        %v4107 = vpop.f32.mrb[0].mxu0
        %4108 = vmatprep.mubr.bf16.mxu0 %v3730
        %4109 = vmatmul.mubr.bf16.gmra.mrb[0].mxu0 %v3729
        %v4110 = vpop.f32.mrb[0].mxu0
        %v4111 = vadd.f32 %v4046, %v4110
        %v4112 = vpop.f32.mrb[0].mxu0
        %v4113 = vpop.f32.mrb[0].mxu0
        %v4114 = vadd.f32 %v4049, %v4113
        %v4115 = vpop.f32.mrb[0].mxu0
        %4116 = vdwg.mxu0
        %v4117 = vadd.f32 %v761, %v4087
        %v4118 = vadd.f32 %v762, %v4090
        %v4119 = vadd.f32 %v763, %v4095
        %v4120 = vadd.f32 %v764, %v4098
        %v4121 = vadd.f32 %v765, %v4103
        %v4122 = vadd.f32 %v766, %v4106
        %v4123 = vadd.f32 %v767, %v4111
        %v4124 = vadd.f32 %v768, %v4114
        %v4125 = vld [vmem:[%s732] sm:$0x1]
        %v4127 = vlaneseq
        %v4128 = vshrl.u32 %v4127, 7
        %v4129 = vsub.s32 0, %v4128
        %v4130 = vrot.slane %v4125, %v4129
        %v4132 = vadd.f32 %v4117, %v4130
        %v4133 = vadd.f32 %v4118, %v4130
        %v4134 = vadd.f32 %v4119, %v4130
        %v4135 = vadd.f32 %v4120, %v4130
        %v4136 = vadd.f32 %v4121, %v4130
        %v4137 = vadd.f32 %v4122, %v4130
        %v4138 = vadd.f32 %v4123, %v4130
        %v4139 = vadd.f32 %v4124, %v4130
        %4140 = vadd.xlane.f32.xlu0 %v4132
        %v4141 = vpop.xlane.xlu0 %4140
        %4142 = vadd.xlane.f32.xlu0 %v4133
        %v4143 = vpop.xlane.xlu0 %4142
        %4144 = vadd.xlane.f32.xlu0 %v4134
        %v4145 = vpop.xlane.xlu0 %4144
        %4146 = vadd.xlane.f32.xlu0 %v4135
        %v4147 = vpop.xlane.xlu0 %4146
        %4148 = vadd.xlane.f32.xlu0 %v4136
        %v4149 = vpop.xlane.xlu0 %4148
        %4150 = vadd.xlane.f32.xlu0 %v4137
        %v4151 = vpop.xlane.xlu0 %4150
        %4152 = vadd.xlane.f32.xlu0 %v4138
        %v4153 = vpop.xlane.xlu0 %4152
        %4154 = vadd.xlane.f32.xlu0 %v4139
        %v4155 = vpop.xlane.xlu0 %4154
        %v4156 = vmul.f32 %v4141, %v785
        %v4157 = vmul.f32 %v4143, %v785
        %v4158 = vmul.f32 %v4145, %v785
        %v4159 = vmul.f32 %v4147, %v785
        %v4160 = vmul.f32 %v4149, %v785
        %v4161 = vmul.f32 %v4151, %v785
        %v4162 = vmul.f32 %v4153, %v785
        %v4163 = vmul.f32 %v4155, %v785
        %v4164 = vsub.f32 %v4132, %v4156
        %v4165 = vsub.f32 %v4133, %v4157
        %v4166 = vsub.f32 %v4134, %v4158
        %v4167 = vsub.f32 %v4135, %v4159
        %v4168 = vsub.f32 %v4136, %v4160
        %v4169 = vsub.f32 %v4137, %v4161
        %v4170 = vsub.f32 %v4138, %v4162
        %v4171 = vsub.f32 %v4139, %v4163
        %v4172 = vmul.f32 %v4164, %v4164
        %v4173 = vmul.f32 %v4165, %v4165
        %v4174 = vmul.f32 %v4166, %v4166
        %v4175 = vmul.f32 %v4167, %v4167
        %v4176 = vmul.f32 %v4168, %v4168
        %v4177 = vmul.f32 %v4169, %v4169
        %v4178 = vmul.f32 %v4170, %v4170
        %v4179 = vmul.f32 %v4171, %v4171
        %4180 = vadd.xlane.f32.xlu0 %v4172
        %v4181 = vpop.xlane.xlu0 %4180
        %4182 = vadd.xlane.f32.xlu0 %v4173
        %v4183 = vpop.xlane.xlu0 %4182
        %4184 = vadd.xlane.f32.xlu0 %v4174
        %v4185 = vpop.xlane.xlu0 %4184
        %4186 = vadd.xlane.f32.xlu0 %v4175
        %v4187 = vpop.xlane.xlu0 %4186
        %4188 = vadd.xlane.f32.xlu0 %v4176
        %v4189 = vpop.xlane.xlu0 %4188
        %4190 = vadd.xlane.f32.xlu0 %v4177
        %v4191 = vpop.xlane.xlu0 %4190
        %4192 = vadd.xlane.f32.xlu0 %v4178
        %v4193 = vpop.xlane.xlu0 %4192
        %4194 = vadd.xlane.f32.xlu0 %v4179
        %v4195 = vpop.xlane.xlu0 %4194
        %v4196 = vmul.f32 %v4181, %v785
        %v4197 = vmul.f32 %v4183, %v785
        %v4198 = vmul.f32 %v4185, %v785
        %v4199 = vmul.f32 %v4187, %v785
        %v4200 = vmul.f32 %v4189, %v785
        %v4201 = vmul.f32 %v4191, %v785
        %v4202 = vmul.f32 %v4193, %v785
        %v4203 = vmul.f32 %v4195, %v785
        %v4204 = vadd.f32 %v4196, 1e-05
        %v4205 = vadd.f32 %v4197, 1e-05
        %v4206 = vadd.f32 %v4198, 1e-05
        %v4207 = vadd.f32 %v4199, 1e-05
        %v4208 = vadd.f32 %v4200, 1e-05
        %v4209 = vadd.f32 %v4201, 1e-05
        %v4210 = vadd.f32 %v4202, 1e-05
        %v4211 = vadd.f32 %v4203, 1e-05
        %v4212 = vrsqrt.pop %v4204
        %v4213 = vrsqrt.pop %v4205
        %v4214 = vrsqrt.pop %v4206
        %v4215 = vrsqrt.pop %v4207
        %v4216 = vrsqrt.pop %v4208
        %v4217 = vrsqrt.pop %v4209
        %v4218 = vrsqrt.pop %v4210
        %v4219 = vrsqrt.pop %v4211
        %v4220 = vmul.f32 %v4164, %v4212
        %v4221 = vmul.f32 %v4165, %v4213
        %v4222 = vmul.f32 %v4166, %v4214
        %v4223 = vmul.f32 %v4167, %v4215
        %v4224 = vmul.f32 %v4168, %v4216
        %v4225 = vmul.f32 %v4169, %v4217
        %v4226 = vmul.f32 %v4170, %v4218
        %v4227 = vmul.f32 %v4171, %v4219
        %v4228 = vld [vmem:[%s735] sm:$0x1]
        %v4230 = vlaneseq
        %v4231 = vshrl.u32 %v4230, 7
        %v4232 = vsub.s32 0, %v4231
        %v4233 = vrot.slane %v4228, %v4232
        %v4235 = vmul.f32 %v4220, %v4233
        %v4236 = vmul.f32 %v4221, %v4233
        %v4237 = vmul.f32 %v4222, %v4233
        %v4238 = vmul.f32 %v4223, %v4233
        %v4239 = vmul.f32 %v4224, %v4233
        %v4240 = vmul.f32 %v4225, %v4233
        %v4241 = vmul.f32 %v4226, %v4233
        %v4242 = vmul.f32 %v4227, %v4233
        %v4243 = vld [vmem:[%s738] sm:$0x1]
        %v4245 = vlaneseq
        %v4246 = vshrl.u32 %v4245, 7
        %v4247 = vsub.s32 0, %v4246
        %v4248 = vrot.slane %v4243, %v4247
        %v4250 = vadd.f32 %v4235, %v4248
        %v4251 = vadd.f32 %v4236, %v4248
        %v4252 = vadd.f32 %v4237, %v4248
        %v4253 = vadd.f32 %v4238, %v4248
        %v4254 = vadd.f32 %v4239, %v4248
        %v4255 = vadd.f32 %v4240, %v4248
        %v4256 = vadd.f32 %v4241, %v4248
        %v4257 = vadd.f32 %v4242, %v4248
        %v4258 = vpack.c.bf16 %v4251, %v4250
        %v4259 = vpack.c.bf16 %v4253, %v4252
        %v4260 = vpack.c.bf16 %v4255, %v4254
        %v4261 = vpack.c.bf16 %v4257, %v4256
        %v4262 = vld [vmem:[%s612] sm:$0xff]
        %v4263 = vld [vmem:[%s612 + $0x8] sm:$0xff]
        %v4264 = vld [vmem:[%s612 + $0x10] sm:$0xff]
        %v4265 = vld [vmem:[%s612 + $0x18] sm:$0xff]
        %v4266 = vld [vmem:[%s612 + $0x20] sm:$0xff]
        %v4267 = vld [vmem:[%s612 + $0x28] sm:$0xff]
        %v4268 = vld [vmem:[%s612 + $0x30] sm:$0xff]
        %v4269 = vld [vmem:[%s612 + $0x38] sm:$0xff]
        %v4270 = vld [vmem:[%s612 + $0x40] sm:$0xff]
        %v4271 = vld [vmem:[%s612 + $0x48] sm:$0xff]
        %v4272 = vld [vmem:[%s612 + $0x50] sm:$0xff]
        %v4273 = vld [vmem:[%s612 + $0x58] sm:$0xff]
        %v4274 = vld [vmem:[%s612 + $0x60] sm:$0xff]
        %v4275 = vld [vmem:[%s612 + $0x68] sm:$0xff]
        %v4276 = vld [vmem:[%s612 + $0x70] sm:$0xff]
        %v4277 = vld [vmem:[%s612 + $0x78] sm:$0xff]
        %v4278 = vld [vmem:[%s621] sm:$0x3]
        %v4280 = vlaneseq
        %v4281 = vshrl.u32 %v4280, 7
        %v4282 = vsub.s32 0, %v4281
        %v4283 = vrot.slane %v4278, %v4282
        %v4284 = vlaneseq
        %v4285 = vshrl.u32 %v4284, 7
        %v4286 = vsub.s32 1, %v4285
        %v4287 = vrot.slane %v4278, %v4286
        %v4306 = vunpack.c.l.b16 %v4262
        %v4307 = vunpack.c.h.b16 %v4262
        %v4308 = vunpack.c.l.b16 %v4263
        %v4309 = vunpack.c.h.b16 %v4263
        %v4310 = vunpack.c.l.b16 %v4264
        %v4311 = vunpack.c.h.b16 %v4264
        %v4312 = vunpack.c.l.b16 %v4265
        %v4313 = vunpack.c.h.b16 %v4265
        %v4314 = vunpack.c.l.b16 %v4266
        %v4315 = vunpack.c.h.b16 %v4266
        %v4316 = vunpack.c.l.b16 %v4267
        %v4317 = vunpack.c.h.b16 %v4267
        %v4318 = vunpack.c.l.b16 %v4268
        %v4319 = vunpack.c.h.b16 %v4268
        %v4320 = vunpack.c.l.b16 %v4269
        %v4321 = vunpack.c.h.b16 %v4269
        %v4322 = vunpack.c.l.b16 %v4270
        %v4323 = vunpack.c.h.b16 %v4270
        %v4324 = vunpack.c.l.b16 %v4271
        %v4325 = vunpack.c.h.b16 %v4271
        %v4326 = vunpack.c.l.b16 %v4272
        %v4327 = vunpack.c.h.b16 %v4272
        %v4328 = vunpack.c.l.b16 %v4273
        %v4329 = vunpack.c.h.b16 %v4273
        %v4330 = vunpack.c.l.b16 %v4274
        %v4331 = vunpack.c.h.b16 %v4274
        %v4332 = vunpack.c.l.b16 %v4275
        %v4333 = vunpack.c.h.b16 %v4275
        %v4334 = vunpack.c.l.b16 %v4276
        %v4335 = vunpack.c.h.b16 %v4276
        %v4336 = vunpack.c.l.b16 %v4277
        %v4337 = vunpack.c.h.b16 %v4277
        %v4338 = vpack.c.b16 %v4308, %v4306
        %v4339 = vpack.c.b16 %v4309, %v4307
        %v4340 = vpack.c.b16 %v4312, %v4310
        %v4341 = vpack.c.b16 %v4313, %v4311
        %v4342 = vpack.c.b16 %v4316, %v4314
        %v4343 = vpack.c.b16 %v4317, %v4315
        %v4344 = vpack.c.b16 %v4320, %v4318
        %v4345 = vpack.c.b16 %v4321, %v4319
        %v4346 = vpack.c.b16 %v4324, %v4322
        %v4347 = vpack.c.b16 %v4325, %v4323
        %v4348 = vpack.c.b16 %v4328, %v4326
        %v4349 = vpack.c.b16 %v4329, %v4327
        %v4350 = vpack.c.b16 %v4332, %v4330
        %v4351 = vpack.c.b16 %v4333, %v4331
        %v4352 = vpack.c.b16 %v4336, %v4334
        %v4353 = vpack.c.b16 %v4337, %v4335
        %4370 = vmatprep.subr.bf16.mxu0 %v4339
        %4371 = vmatpush1.bf16.msra.mxu0 %v4338
        %4372 = vmatprep.subr.bf16.mxu0 %v4341
        %4373 = vmatpush1.bf16.msra.mxu0 %v4340
        %4374 = vmatprep.subr.bf16.mxu0 %v4343
        %4375 = vmatpush1.bf16.msra.mxu0 %v4342
        %4376 = vmatprep.subr.bf16.mxu0 %v4345
        %4377 = vmatpush1.bf16.msra.mxu0 %v4344
        %4378 = vmatprep.subr.bf16.mxu0 %v4347
        %4379 = vmatpush1.bf16.msra.mxu0 %v4346
        %4380 = vmatprep.subr.bf16.mxu0 %v4349
        %4381 = vmatpush1.bf16.msra.mxu0 %v4348
        %4382 = vmatprep.subr.bf16.mxu0 %v4351
        %4383 = vmatpush1.bf16.msra.mxu0 %v4350
        %4384 = vmatprep.subr.bf16.mxu0 %v4353
        %4385 = vmatpush1.bf16.msra.mxu0 %v4352
        %4386 = vmatprep.subr.bf16.mxu0 0
        %4387 = vmatpush1.bf16.msra.mxu0 0
        %4388 = vmatprep.subr.bf16.mxu0 0
        %4389 = vmatpush1.bf16.msra.mxu0 0
        %4390 = vmatprep.subr.bf16.mxu0 0
        %4391 = vmatpush1.bf16.msra.mxu0 0
        %4392 = vmatprep.subr.bf16.mxu0 0
        %4393 = vmatpush1.bf16.msra.mxu0 0
        %4394 = vmatprep.subr.bf16.mxu0 0
        %4395 = vmatpush1.bf16.msra.mxu0 0
        %4396 = vmatprep.subr.bf16.mxu0 0
        %4397 = vmatpush1.bf16.msra.mxu0 0
        %4398 = vmatprep.subr.bf16.mxu0 0
        %4399 = vmatpush1.bf16.msra.mxu0 0
        %4400 = vmatprep.subr.bf16.mxu0 0
        %4401 = vmatpush1.bf16.msra.mxu0 0
        %4402 = vmatprep.mubr.bf16.mxu0 0
        %4403 = vmatmul.mubr.bf16.gmra.mrb[0].mxu0 %v4258
        %v4404 = vpop.f32.mrb[0].mxu0
        %v4405 = vadd.f32 %v4283, %v4404
        %v4406 = vpop.f32.mrb[0].mxu0
        %v4407 = vadd.f32 %v4287, %v4406
        %v4408 = vpop.f32.mrb[0].mxu0
        %v4409 = vadd.f32 %v4283, %v4408
        %v4410 = vpop.f32.mrb[0].mxu0
        %v4411 = vadd.f32 %v4287, %v4410
        %4412 = vmatprep.mubr.bf16.mxu0 0
        %4413 = vmatmul.mubr.bf16.gmra.mrb[0].mxu0 %v4259
        %v4414 = vpop.f32.mrb[0].mxu0
        %v4415 = vadd.f32 %v4283, %v4414
        %v4416 = vpop.f32.mrb[0].mxu0
        %v4417 = vadd.f32 %v4287, %v4416
        %v4418 = vpop.f32.mrb[0].mxu0
        %v4419 = vadd.f32 %v4283, %v4418
        %v4420 = vpop.f32.mrb[0].mxu0
        %v4421 = vadd.f32 %v4287, %v4420
        %4422 = vmatprep.mubr.bf16.mxu0 0
        %4423 = vmatmul.mubr.bf16.gmra.mrb[0].mxu0 %v4260
        %v4424 = vpop.f32.mrb[0].mxu0
        %v4425 = vadd.f32 %v4283, %v4424
        %v4426 = vpop.f32.mrb[0].mxu0
        %v4427 = vadd.f32 %v4287, %v4426
        %v4428 = vpop.f32.mrb[0].mxu0
        %v4429 = vadd.f32 %v4283, %v4428
        %v4430 = vpop.f32.mrb[0].mxu0
        %v4431 = vadd.f32 %v4287, %v4430
        %4432 = vmatprep.mubr.bf16.mxu0 0
        %4433 = vmatmul.mubr.bf16.gmra.mrb[0].mxu0 %v4261
        %v4434 = vpop.f32.mrb[0].mxu0
        %v4435 = vadd.f32 %v4283, %v4434
        %v4436 = vpop.f32.mrb[0].mxu0
        %v4437 = vadd.f32 %v4287, %v4436
        %v4438 = vpop.f32.mrb[0].mxu0
        %v4439 = vadd.f32 %v4283, %v4438
        %v4440 = vpop.f32.mrb[0].mxu0
        %v4441 = vadd.f32 %v4287, %v4440
        %4442 = vdwg.mxu0
        %v4443 = vmul.f32 %v4405, %v4405
        %v4444 = vmul.f32 %v4407, %v4407
        %v4445 = vmul.f32 %v4409, %v4409
        %v4446 = vmul.f32 %v4411, %v4411
        %v4447 = vmul.f32 %v4415, %v4415
        %v4448 = vmul.f32 %v4417, %v4417
        %v4449 = vmul.f32 %v4419, %v4419
        %v4450 = vmul.f32 %v4421, %v4421
        %v4451 = vmul.f32 %v4425, %v4425
        %v4452 = vmul.f32 %v4427, %v4427
        %v4453 = vmul.f32 %v4429, %v4429
        %v4454 = vmul.f32 %v4431, %v4431
        %v4455 = vmul.f32 %v4435, %v4435
        %v4456 = vmul.f32 %v4437, %v4437
        %v4457 = vmul.f32 %v4439, %v4439
        %v4458 = vmul.f32 %v4441, %v4441
        %v4459 = vmul.f32 %v4405, %v4443
        %v4460 = vmul.f32 %v4407, %v4444
        %v4461 = vmul.f32 %v4409, %v4445
        %v4462 = vmul.f32 %v4411, %v4446
        %v4463 = vmul.f32 %v4415, %v4447
        %v4464 = vmul.f32 %v4417, %v4448
        %v4465 = vmul.f32 %v4419, %v4449
        %v4466 = vmul.f32 %v4421, %v4450
        %v4467 = vmul.f32 %v4425, %v4451
        %v4468 = vmul.f32 %v4427, %v4452
        %v4469 = vmul.f32 %v4429, %v4453
        %v4470 = vmul.f32 %v4431, %v4454
        %v4471 = vmul.f32 %v4435, %v4455
        %v4472 = vmul.f32 %v4437, %v4456
        %v4473 = vmul.f32 %v4439, %v4457
        %v4474 = vmul.f32 %v4441, %v4458
        %v4475 = vmul.f32 %v4459, 0.044715
        %v4476 = vmul.f32 %v4460, 0.044715
        %v4477 = vmul.f32 %v4461, 0.044715
        %v4478 = vmul.f32 %v4462, 0.044715
        %v4479 = vmul.f32 %v4463, 0.044715
        %v4480 = vmul.f32 %v4464, 0.044715
        %v4481 = vmul.f32 %v4465, 0.044715
        %v4482 = vmul.f32 %v4466, 0.044715
        %v4483 = vmul.f32 %v4467, 0.044715
        %v4484 = vmul.f32 %v4468, 0.044715
        %v4485 = vmul.f32 %v4469, 0.044715
        %v4486 = vmul.f32 %v4470, 0.044715
        %v4487 = vmul.f32 %v4471, 0.044715
        %v4488 = vmul.f32 %v4472, 0.044715
        %v4489 = vmul.f32 %v4473, 0.044715
        %v4490 = vmul.f32 %v4474, 0.044715
        %v4491 = vadd.f32 %v4405, %v4475
        %v4492 = vadd.f32 %v4407, %v4476
        %v4493 = vadd.f32 %v4409, %v4477
        %v4494 = vadd.f32 %v4411, %v4478
        %v4495 = vadd.f32 %v4415, %v4479
        %v4496 = vadd.f32 %v4417, %v4480
        %v4497 = vadd.f32 %v4419, %v4481
        %v4498 = vadd.f32 %v4421, %v4482
        %v4499 = vadd.f32 %v4425, %v4483
        %v4500 = vadd.f32 %v4427, %v4484
        %v4501 = vadd.f32 %v4429, %v4485
        %v4502 = vadd.f32 %v4431, %v4486
        %v4503 = vadd.f32 %v4435, %v4487
        %v4504 = vadd.f32 %v4437, %v4488
        %v4505 = vadd.f32 %v4439, %v4489
        %v4506 = vadd.f32 %v4441, %v4490
        %v4507 = vmul.f32 %v4491, 0.7978846
        %v4508 = vmul.f32 %v4492, 0.7978846
        %v4509 = vmul.f32 %v4493, 0.7978846
        %v4510 = vmul.f32 %v4494, 0.7978846
        %v4511 = vmul.f32 %v4495, 0.7978846
        %v4512 = vmul.f32 %v4496, 0.7978846
        %v4513 = vmul.f32 %v4497, 0.7978846
        %v4514 = vmul.f32 %v4498, 0.7978846
        %v4515 = vmul.f32 %v4499, 0.7978846
        %v4516 = vmul.f32 %v4500, 0.7978846
        %v4517 = vmul.f32 %v4501, 0.7978846
        %v4518 = vmul.f32 %v4502, 0.7978846
        %v4519 = vmul.f32 %v4503, 0.7978846
        %v4520 = vmul.f32 %v4504, 0.7978846
        %v4521 = vmul.f32 %v4505, 0.7978846
        %v4522 = vmul.f32 %v4506, 0.7978846
        %v4523 = vtanh.pop %v4507
        %v4524 = vtanh.pop %v4508
        %v4525 = vtanh.pop %v4509
        %v4526 = vtanh.pop %v4510
        %v4527 = vtanh.pop %v4511
        %v4528 = vtanh.pop %v4512
        %v4529 = vtanh.pop %v4513
        %v4530 = vtanh.pop %v4514
        %v4531 = vtanh.pop %v4515
        %v4532 = vtanh.pop %v4516
        %v4533 = vtanh.pop %v4517
        %v4534 = vtanh.pop %v4518
        %v4535 = vtanh.pop %v4519
        %v4536 = vtanh.pop %v4520
        %v4537 = vtanh.pop %v4521
        %v4538 = vtanh.pop %v4522
        %v4539 = vadd.f32 %v4523, 1.0
        %v4540 = vadd.f32 %v4524, 1.0
        %v4541 = vadd.f32 %v4525, 1.0
        %v4542 = vadd.f32 %v4526, 1.0
        %v4543 = vadd.f32 %v4527, 1.0
        %v4544 = vadd.f32 %v4528, 1.0
        %v4545 = vadd.f32 %v4529, 1.0
        %v4546 = vadd.f32 %v4530, 1.0
        %v4547 = vadd.f32 %v4531, 1.0
        %v4548 = vadd.f32 %v4532, 1.0
        %v4549 = vadd.f32 %v4533, 1.0
        %v4550 = vadd.f32 %v4534, 1.0
        %v4551 = vadd.f32 %v4535, 1.0
        %v4552 = vadd.f32 %v4536, 1.0
        %v4553 = vadd.f32 %v4537, 1.0
        %v4554 = vadd.f32 %v4538, 1.0
        %v4555 = vmul.f32 %v4539, 0.5
        %v4556 = vmul.f32 %v4540, 0.5
        %v4557 = vmul.f32 %v4541, 0.5
        %v4558 = vmul.f32 %v4542, 0.5
        %v4559 = vmul.f32 %v4543, 0.5
        %v4560 = vmul.f32 %v4544, 0.5
        %v4561 = vmul.f32 %v4545, 0.5
        %v4562 = vmul.f32 %v4546, 0.5
        %v4563 = vmul.f32 %v4547, 0.5
        %v4564 = vmul.f32 %v4548, 0.5
        %v4565 = vmul.f32 %v4549, 0.5
        %v4566 = vmul.f32 %v4550, 0.5
        %v4567 = vmul.f32 %v4551, 0.5
        %v4568 = vmul.f32 %v4552, 0.5
        %v4569 = vmul.f32 %v4553, 0.5
        %v4570 = vmul.f32 %v4554, 0.5
        %v4571 = vmul.f32 %v4405, %v4555
        %v4572 = vmul.f32 %v4407, %v4556
        %v4573 = vmul.f32 %v4409, %v4557
        %v4574 = vmul.f32 %v4411, %v4558
        %v4575 = vmul.f32 %v4415, %v4559
        %v4576 = vmul.f32 %v4417, %v4560
        %v4577 = vmul.f32 %v4419, %v4561
        %v4578 = vmul.f32 %v4421, %v4562
        %v4579 = vmul.f32 %v4425, %v4563
        %v4580 = vmul.f32 %v4427, %v4564
        %v4581 = vmul.f32 %v4429, %v4565
        %v4582 = vmul.f32 %v4431, %v4566
        %v4583 = vmul.f32 %v4435, %v4567
        %v4584 = vmul.f32 %v4437, %v4568
        %v4585 = vmul.f32 %v4439, %v4569
        %v4586 = vmul.f32 %v4441, %v4570
        %v4587 = vpack.c.bf16 %v4573, %v4571
        %v4588 = vpack.c.bf16 %v4574, %v4572
        %v4589 = vpack.c.bf16 %v4577, %v4575
        %v4590 = vpack.c.bf16 %v4578, %v4576
        %v4591 = vpack.c.bf16 %v4581, %v4579
        %v4592 = vpack.c.bf16 %v4582, %v4580
        %v4593 = vpack.c.bf16 %v4585, %v4583
        %v4594 = vpack.c.bf16 %v4586, %v4584
        %v4595 = vld [vmem:[%s630] sm:$0xf]
        %v4596 = vld [vmem:[%s630 + $0x4] sm:$0xf]
        %v4597 = vld [vmem:[%s630 + $0x8] sm:$0xf]
        %v4598 = vld [vmem:[%s630 + $0xc] sm:$0xf]
        %v4599 = vld [vmem:[%s630 + $0x10] sm:$0xf]
        %v4600 = vld [vmem:[%s630 + $0x14] sm:$0xf]
        %v4601 = vld [vmem:[%s630 + $0x18] sm:$0xf]
        %v4602 = vld [vmem:[%s630 + $0x1c] sm:$0xf]
        %v4603 = vld [vmem:[%s630 + $0x20] sm:$0xf]
        %v4604 = vld [vmem:[%s630 + $0x24] sm:$0xf]
        %v4605 = vld [vmem:[%s630 + $0x28] sm:$0xf]
        %v4606 = vld [vmem:[%s630 + $0x2c] sm:$0xf]
        %v4607 = vld [vmem:[%s630 + $0x30] sm:$0xf]
        %v4608 = vld [vmem:[%s630 + $0x34] sm:$0xf]
        %v4609 = vld [vmem:[%s630 + $0x38] sm:$0xf]
        %v4610 = vld [vmem:[%s630 + $0x3c] sm:$0xf]
        %v4611 = vld [vmem:[%s630 + $0x40] sm:$0xf]
        %v4612 = vld [vmem:[%s630 + $0x44] sm:$0xf]
        %v4613 = vld [vmem:[%s630 + $0x48] sm:$0xf]
        %v4614 = vld [vmem:[%s630 + $0x4c] sm:$0xf]
        %v4615 = vld [vmem:[%s630 + $0x50] sm:$0xf]
        %v4616 = vld [vmem:[%s630 + $0x54] sm:$0xf]
        %v4617 = vld [vmem:[%s630 + $0x58] sm:$0xf]
        %v4618 = vld [vmem:[%s630 + $0x5c] sm:$0xf]
        %v4619 = vld [vmem:[%s630 + $0x60] sm:$0xf]
        %v4620 = vld [vmem:[%s630 + $0x64] sm:$0xf]
        %v4621 = vld [vmem:[%s630 + $0x68] sm:$0xf]
        %v4622 = vld [vmem:[%s630 + $0x6c] sm:$0xf]
        %v4623 = vld [vmem:[%s630 + $0x70] sm:$0xf]
        %v4624 = vld [vmem:[%s630 + $0x74] sm:$0xf]
        %v4625 = vld [vmem:[%s630 + $0x78] sm:$0xf]
        %v4626 = vld [vmem:[%s630 + $0x7c] sm:$0xf]
        %v4627 = vld [vmem:[%s638] sm:$0x1]
        %v4629 = vlaneseq
        %v4630 = vshrl.u32 %v4629, 7
        %v4631 = vsub.s32 0, %v4630
        %v4632 = vrot.slane %v4627, %v4631
        %v4666 = vunpack.c.l.b16 %v4595
        %v4667 = vunpack.c.l.b16 %v4596
        %v4668 = vunpack.c.l.b16 %v4597
        %v4669 = vunpack.c.l.b16 %v4598
        %v4670 = vunpack.c.l.b16 %v4599
        %v4671 = vunpack.c.l.b16 %v4600
        %v4672 = vunpack.c.l.b16 %v4601
        %v4673 = vunpack.c.l.b16 %v4602
        %v4674 = vunpack.c.l.b16 %v4603
        %v4675 = vunpack.c.l.b16 %v4604
        %v4676 = vunpack.c.l.b16 %v4605
        %v4677 = vunpack.c.l.b16 %v4606
        %v4678 = vunpack.c.l.b16 %v4607
        %v4679 = vunpack.c.l.b16 %v4608
        %v4680 = vunpack.c.l.b16 %v4609
        %v4681 = vunpack.c.l.b16 %v4610
        %v4682 = vunpack.c.l.b16 %v4611
        %v4683 = vunpack.c.l.b16 %v4612
        %v4684 = vunpack.c.l.b16 %v4613
        %v4685 = vunpack.c.l.b16 %v4614
        %v4686 = vunpack.c.l.b16 %v4615
        %v4687 = vunpack.c.l.b16 %v4616
        %v4688 = vunpack.c.l.b16 %v4617
        %v4689 = vunpack.c.l.b16 %v4618
        %v4690 = vunpack.c.l.b16 %v4619
        %v4691 = vunpack.c.l.b16 %v4620
        %v4692 = vunpack.c.l.b16 %v4621
        %v4693 = vunpack.c.l.b16 %v4622
        %v4694 = vunpack.c.l.b16 %v4623
        %v4695 = vunpack.c.l.b16 %v4624
        %v4696 = vunpack.c.l.b16 %v4625
        %v4697 = vunpack.c.l.b16 %v4626
        %v4698 = vpack.c.b16 %v4667, %v4666
        %v4699 = vpack.c.b16 %v4669, %v4668
        %v4700 = vpack.c.b16 %v4671, %v4670
        %v4701 = vpack.c.b16 %v4673, %v4672
        %v4702 = vpack.c.b16 %v4675, %v4674
        %v4703 = vpack.c.b16 %v4677, %v4676
        %v4704 = vpack.c.b16 %v4679, %v4678
        %v4705 = vpack.c.b16 %v4681, %v4680
        %v4706 = vpack.c.b16 %v4683, %v4682
        %v4707 = vpack.c.b16 %v4685, %v4684
        %v4708 = vpack.c.b16 %v4687, %v4686
        %v4709 = vpack.c.b16 %v4689, %v4688
        %v4710 = vpack.c.b16 %v4691, %v4690
        %v4711 = vpack.c.b16 %v4693, %v4692
        %v4712 = vpack.c.b16 %v4695, %v4694
        %v4713 = vpack.c.b16 %v4697, %v4696
        %4730 = vmatprep.subr.bf16.mxu0 0
        %4731 = vmatpush1.bf16.msra.mxu0 %v4698
        %4732 = vmatprep.subr.bf16.mxu0 0
        %4733 = vmatpush1.bf16.msra.mxu0 %v4699
        %4734 = vmatprep.subr.bf16.mxu0 0
        %4735 = vmatpush1.bf16.msra.mxu0 %v4700
        %4736 = vmatprep.subr.bf16.mxu0 0
        %4737 = vmatpush1.bf16.msra.mxu0 %v4701
        %4738 = vmatprep.subr.bf16.mxu0 0
        %4739 = vmatpush1.bf16.msra.mxu0 %v4702
        %4740 = vmatprep.subr.bf16.mxu0 0
        %4741 = vmatpush1.bf16.msra.mxu0 %v4703
        %4742 = vmatprep.subr.bf16.mxu0 0
        %4743 = vmatpush1.bf16.msra.mxu0 %v4704
        %4744 = vmatprep.subr.bf16.mxu0 0
        %4745 = vmatpush1.bf16.msra.mxu0 %v4705
        %4746 = vmatprep.subr.bf16.mxu0 0
        %4747 = vmatpush1.bf16.msra.mxu0 %v4706
        %4748 = vmatprep.subr.bf16.mxu0 0
        %4749 = vmatpush1.bf16.msra.mxu0 %v4707
        %4750 = vmatprep.subr.bf16.mxu0 0
        %4751 = vmatpush1.bf16.msra.mxu0 %v4708
        %4752 = vmatprep.subr.bf16.mxu0 0
        %4753 = vmatpush1.bf16.msra.mxu0 %v4709
        %4754 = vmatprep.subr.bf16.mxu0 0
        %4755 = vmatpush1.bf16.msra.mxu0 %v4710
        %4756 = vmatprep.subr.bf16.mxu0 0
        %4757 = vmatpush1.bf16.msra.mxu0 %v4711
        %4758 = vmatprep.subr.bf16.mxu0 0
        %4759 = vmatpush1.bf16.msra.mxu0 %v4712
        %4760 = vmatprep.subr.bf16.mxu0 0
        %4761 = vmatpush1.bf16.msra.mxu0 %v4713
        %4762 = vmatprep.mubr.bf16.mxu0 %v4588
        %4763 = vmatmul.mubr.bf16.gmra.mrb[0].mxu0 %v4587
        %v4764 = vpop.f32.mrb[0].mxu0
        %v4765 = vadd.f32 %v4632, %v4764
        %v4766 = vpop.f32.mrb[0].mxu0
        %v4767 = vpop.f32.mrb[0].mxu0
        %v4768 = vadd.f32 %v4632, %v4767
        %v4769 = vpop.f32.mrb[0].mxu0
        %4770 = vmatprep.mubr.bf16.mxu0 %v4590
        %4771 = vmatmul.mubr.bf16.gmra.mrb[0].mxu0 %v4589
        %v4772 = vpop.f32.mrb[0].mxu0
        %v4773 = vadd.f32 %v4632, %v4772
        %v4774 = vpop.f32.mrb[0].mxu0
        %v4775 = vpop.f32.mrb[0].mxu0
        %v4776 = vadd.f32 %v4632, %v4775
        %v4777 = vpop.f32.mrb[0].mxu0
        %4778 = vmatprep.mubr.bf16.mxu0 %v4592
        %4779 = vmatmul.mubr.bf16.gmra.mrb[0].mxu0 %v4591
        %v4780 = vpop.f32.mrb[0].mxu0
        %v4781 = vadd.f32 %v4632, %v4780
        %v4782 = vpop.f32.mrb[0].mxu0
        %v4783 = vpop.f32.mrb[0].mxu0
        %v4784 = vadd.f32 %v4632, %v4783
        %v4785 = vpop.f32.mrb[0].mxu0
        %4786 = vmatprep.mubr.bf16.mxu0 %v4594
        %4787 = vmatmul.mubr.bf16.gmra.mrb[0].mxu0 %v4593
        %v4788 = vpop.f32.mrb[0].mxu0
        %v4789 = vadd.f32 %v4632, %v4788
        %v4790 = vpop.f32.mrb[0].mxu0
        %v4791 = vpop.f32.mrb[0].mxu0
        %v4792 = vadd.f32 %v4632, %v4791
        %v4793 = vpop.f32.mrb[0].mxu0
        %4794 = vdwg.mxu0
        %v4795 = vadd.f32 %v4132, %v4765
        %v4796 = vadd.f32 %v4133, %v4768
        %v4797 = vadd.f32 %v4134, %v4773
        %v4798 = vadd.f32 %v4135, %v4776
        %v4799 = vadd.f32 %v4136, %v4781
        %v4800 = vadd.f32 %v4137, %v4784
        %v4801 = vadd.f32 %v4138, %v4789
        %v4802 = vadd.f32 %v4139, %v4792
        %4803 = vst [vmem:[%s722] sm:$0xff] %v4795
        %4804 = vst [vmem:[%s722 + $0x8] sm:$0xff] %v4796
        %4805 = vst [vmem:[%s722 + $0x10] sm:$0xff] %v4797
        %4806 = vst [vmem:[%s722 + $0x18] sm:$0xff] %v4798
        %4807 = vst [vmem:[%s722 + $0x20] sm:$0xff] %v4799
        %4808 = vst [vmem:[%s722 + $0x28] sm:$0xff] %v4800
        %4809 = vst [vmem:[%s722 + $0x30] sm:$0xff] %v4801
        %4810 = vst [vmem:[%s722 + $0x38] sm:$0xff] %v4802
        %s4811 = sand.u32 %s370, 1
        %s4812 = scalar_lea.sflag [#allocation4], %s4811
        %s4813 = sand.u32 %s370, 1
        %s4814 = smul.addr %s4813, 64
        %s4815 = scalar_lea.vmem [#allocation14], %s4814
        // Predicated region
        $region101: #{transformer_forward.1} parent=67 // pred_check
          %p4816 = pneg %p380
        $region102: #{transformer_forward.1} parent=67 // pred_check_branch
          %4818 = sbr.rel (%p4816) target = $region104
        $region103: #{transformer_forward.1} parent=67 // pred_region
          %s4819 = smul.u32 4, %s42
          %s4821 = ssub.s32 1024, 1024
          %4822 = vsyncadd %s4812, %s4821
          %s4823 = smul.addr %s4819, 2
          %s4824 = smul.addr %s4823, 128
          %s4825 = scalar_lea.hbm %s12, %s4824
          %s4826 = sshll.u32 %s4815, 4
          %s4827 = int_to_ptr.vmem [resolvable:$true] %s4826
          %4832 = dma.vmem_to_hbm [thread:$0]  %s4827, 1024, %s4825, %s4812, 128, 128, 8
        $region104: #{transformer_forward.1} parent=67 // pred_fallthru
          _
      $region68: #{transformer_forward.1} parent=5 // pred_fallthru
        _
      %p4833 = scmp.le.s32.totalorder 2, %s33
      // Predicated region
      $region105: #{transformer_forward.1} parent=5 // pred_check
        %p4834 = pneg %p4833
      $region106: #{transformer_forward.1} parent=5 // pred_check_branch
        %4836 = sbr.rel (%p4834) target = $region108
      $region107: #{transformer_forward.1} parent=5 // pred_region
        %s4837 = ssub.s32 %s33, 2
        // Predicated region
        $region109: #{transformer_forward.1} parent=107 // pred_check
          %p4838 = pneg %p386
        $region110: #{transformer_forward.1} parent=107 // pred_check_branch
          %4840 = sbr.rel (%p4838) target = $region112
        $region111: #{transformer_forward.1} parent=107 // pred_region
          %s4841 = sand.u32 %s371, 1
          %s4842 = scalar_lea.sflag [#allocation4], %s4841
          %s4843 = sand.u32 %s371, 1
          %s4844 = smul.addr %s4843, 64
          %s4845 = scalar_lea.vmem [#allocation14], %s4844
          %4846 = dma.done %s4842, 1024
        $region112: #{transformer_forward.1} parent=107 // pred_fallthru
          _
      $region108: #{transformer_forward.1} parent=5 // pred_fallthru
        _
    $region6: #{transformer_forward.1} parent=1 // loop_footer
      %s37 = sadd.s32 1, %s33
    $region7: #{transformer_forward.1} parent=1 // loop_footer_branch
      %32 = sbr.rel target = $region3
    $region8: #{transformer_forward.1} parent=1 // loop_exit
      _
    %4847 = vsyncpa [#allocation3], 1
    %s4848 = scalar_lea.sflag [#allocation3], 1
    %4849 = vsyncpa %s4848, 1
    %4850 = vsyncpa [#allocation6], 1
    %s4851 = scalar_lea.sflag [#allocation6], 1
    %4852 = vsyncpa %s4851, 1
    %4853 = vsyncpa [#allocation9], 1
    %s4854 = scalar_lea.sflag [#allocation9], 1
    %4855 = vsyncpa %s4854, 1
    %4856 = vsyncpa [#allocation12], 1
    %s4857 = scalar_lea.sflag [#allocation12], 1
    %4858 = vsyncpa %s4857, 1
    %4859 = vsyncpa [#allocation4], 1
    %s4860 = scalar_lea.sflag [#allocation4], 1
    %4861 = vsyncpa %s4860, 1

</llo_original>
